<compile_context>
chip_gen: v5e
topology: v5e:2x2
jax: 0.10.0
libtpu: 0.0.40
codegen_flags: <defaults>
</compile_context>

<pallas_src>
import functools

import jax
import jax.numpy as jnp
from jax.experimental import pallas as pl
from jax.experimental.pallas import tpu as pltpu

# ---- model hyper-parameters (small, consistent with the PyTorch module) ----
INP_SIZE = 2      # velocity (x, y)
OUT_SIZE = 2
NUM_LAYERS = 2
HIDDEN = 32       # 4*H = 128 -> gates exactly fill the lane axis
OBS_LEN = 8       # params.dataset.obs_len
PRED_LEN = 8      # params.dataset.pred_len
BATCH = 2


# ------------------------- Pallas kernel ------------------------- #
def make_double_lstm_kernel(num_layers, obs_len, pred_len, hidden, inp_size,
                            out_size, batch):
    H = hidden
    L = num_layers

    def kernel(obs_ref, obs_vel_ref, mean_ref, std_ref,
               enc_w_ref, enc_b_ref, dec_w_ref, dec_b_ref,
               w1_ref, b1_ref, w2_ref, b2_ref,
               pred_ref, out_vel_ref, hid_ref):
        f32 = jnp.float32
        mean = mean_ref[...]                     # (1, 2)
        std = std_ref[...]                       # (1, 2)
        inv_std = 1.0 / std

        enc_w = enc_w_ref[...]                   # (inp_size, H)
        enc_b = enc_b_ref[...]                   # (1, H)
        dec_w = dec_w_ref[...]                   # (H, out_size)
        dec_b = dec_b_ref[...]                   # (1, out_size)

        # Hoisted constant vregs (JAX does not CSE broadcasts): lane mask for
        # the g gate.  PyTorch gate order is i, f, g, o.
        lane = jax.lax.broadcasted_iota(jnp.int32, (batch, 4 * H), 1)
        g_mask = (lane >= 2 * H) & (lane < 3 * H)
        gate_scale = jnp.where(g_mask, 2.0, 1.0).astype(f32)
        gate_shift = jnp.where(g_mask, -1.0, 0.0).astype(f32)

        def cell(x, h, c, w, b):
            # One fused MXU push: gates = [x, h] @ [W_ih; W_hh] + (b_ih + b_hh)
            xh = jnp.concatenate([x, h], axis=-1)                       # (B, 2H)
            gates = jnp.dot(xh, w, preferred_element_type=f32) + b      # (B, 4H)
            # Single EUP pass over the full 128-lane gate vreg:
            #   i/f/o lanes -> sigmoid(g);  g lanes -> tanh(g) = 2*sigmoid(2g)-1
            s = jax.nn.sigmoid(gates * gate_scale)
            act = s * gate_scale + gate_shift
            i_g = act[:, 0 * H:1 * H]
            f_g = act[:, 1 * H:2 * H]
            g_g = act[:, 2 * H:3 * H]
            o_g = act[:, 3 * H:4 * H]
            c_new = f_g * c + i_g * g_g
            h_new = o_g * jnp.tanh(c_new)
            return h_new, c_new

        # ---- encoder: normalize + embed ALL observed steps at once (VPU) ----
        vel = obs_vel_ref[...]                                          # (B, T, inp)
        vn = (vel - mean.reshape(1, 1, inp_size)) * inv_std.reshape(1, 1, inp_size)
        emb = enc_b.reshape(1, 1, H)
        for k in range(inp_size):               # tiny-K contraction on the VPU
            emb = emb + vn[:, :, k:k + 1] * enc_w[k:k + 1, :].reshape(1, 1, H)
        # emb: (B, obs_len, H)

        # ---- observed phase: multi-layer LSTM1 over obs_len steps, zero init ----
        w1 = [w1_ref[l] for l in range(L)]       # (2H, 4H) each, vreg-resident
        b1 = [b1_ref[l] for l in range(L)]       # (1, 4H) each
        h = [jnp.zeros((batch, H), f32) for _ in range(L)]
        c = [jnp.zeros((batch, H), f32) for _ in range(L)]

        x = None
        for t in range(obs_len):                 # static unroll
            x = emb[:, t, :]                                            # (B, H)
            for l in range(L):
                h[l], c[l] = cell(x, h[l], c[l], w1[l], b1[l])
                x = h[l]
        # x == output[:, -1, :] of LSTM1; (h, c) == (obsH, obsC) per layer.

        # ---- prediction phase: stacked LSTMCells, autoregressive ----
        w2 = [w2_ref[l] for l in range(L)]       # separate LSTMCell weights
        b2 = [b2_ref[l] for l in range(L)]

        inner = x
        hid_ref[0:batch, :] = inner              # predlist[0]
        for s in range(1, pred_len):             # static unroll
            for l in range(L):
                h[l], c[l] = cell(inner, h[l], c[l], w2[l], b2[l])
                inner = h[l]
            hid_ref[s * batch:(s + 1) * batch, :] = inner

        # ---- decoder: ONE fused matmul over all pred_len hidden states ----
        hid_mat = hid_ref[...]                                          # (P*B, H)
        vel_all = jnp.dot(hid_mat, dec_w, preferred_element_type=f32) + dec_b

        # ---- de-normalize + cumsum + last observed position ----
        last_obs = obs_ref[:, obs_len - 1, :]                           # (B, 2)
        accum = last_obs
        for s in range(pred_len):
            v = vel_all[s * batch:(s + 1) * batch, :]                   # (B, out)
            out_vel_ref[:, s, :] = v
            accum = accum + (v[:, :2] * std + mean)                     # cumsum
            pred_ref[:, s, :] = accum

    return kernel


def double_lstm_pallas(params, obs, obs_vel, mean2, std2, *, num_layers,
                       obs_len, pred_len, hidden, inp_size, out_size):
    batch = obs.shape[0]
    kernel = make_double_lstm_kernel(num_layers, obs_len, pred_len, hidden,
                                     inp_size, out_size, batch)
    vmem = pltpu.MemorySpace.VMEM
    out_shape = (jax.ShapeDtypeStruct((batch, pred_len, 2), jnp.float32),
                 jax.ShapeDtypeStruct((batch, pred_len, out_size), jnp.float32))
    pred, out_vel = pl.pallas_call(
        kernel,
        out_shape=out_shape,
        in_specs=[pl.BlockSpec(memory_space=vmem)] * 12,
        out_specs=(pl.BlockSpec(memory_space=vmem),
                   pl.BlockSpec(memory_space=vmem)),
        scratch_shapes=[pltpu.VMEM((pred_len * batch, hidden), jnp.float32)],
    )(obs, obs_vel, mean2, std2,
      params["enc_w"], params["enc_b"], params["dec_w"], params["dec_b"],
      params["w1"], params["b1"], params["w2"], params["b2"])
    return pred, out_vel


# ------------------------- parameters ------------------------- #
def _xavier_uniform(key, shape):
    fan_in, fan_out = shape[-2], shape[-1]
    limit = jnp.sqrt(6.0 / (fan_in + fan_out))
    return jax.random.uniform(key, shape, jnp.float32, -limit, limit)


def init_params(key):
    k_enc, k_dec, k_lstm1, k_cells = jax.random.split(key, 4)

    def stacked_fused(k):
        keys = jax.random.split(k, 2 * NUM_LAYERS)
        ws = []
        for l in range(NUM_LAYERS):
            w_ih = _xavier_uniform(keys[2 * l], (HIDDEN, 4 * HIDDEN))
            w_hh = _xavier_uniform(keys[2 * l + 1], (HIDDEN, 4 * HIDDEN))
            ws.append(jnp.concatenate([w_ih, w_hh], axis=0))    # (2H, 4H)
        return jnp.stack(ws)                                    # (L, 2H, 4H)

    return {
        "enc_w": _xavier_uniform(k_enc, (INP_SIZE, HIDDEN)),
        "enc_b": jnp.zeros((1, HIDDEN), jnp.float32),
        "dec_w": _xavier_uniform(k_dec, (HIDDEN, OUT_SIZE)),
        "dec_b": jnp.zeros((1, OUT_SIZE), jnp.float32),
        "w1": stacked_fused(k_lstm1),                           # nn.LSTM
        "b1": jnp.zeros((NUM_LAYERS, 1, 4 * HIDDEN), jnp.float32),  # b_ih+b_hh
        "w2": stacked_fused(k_cells),                           # nn.LSTMCell's
        "b2": jnp.zeros((NUM_LAYERS, 1, 4 * HIDDEN), jnp.float32),
    }


# ------------------------- forward (matches DoubleLSTM.forward) ------------------------- #
@functools.partial(jax.jit, static_argnames=("obs_len", "pred_len"))
def double_lstm_forward(params, obs, obs_vel, mean, std, *, obs_len, pred_len):
    # obs      : (B, obs_len, 2)   absolute positions
    # obs_vel  : (B, obs_len, 2)   observed velocities (otherInp[0]); otherInp[1] unused
    # mean,std : (2,)              extraInfo
    mean2 = mean.reshape(1, 2).astype(jnp.float32)
    std2 = std.reshape(1, 2).astype(jnp.float32)
    pred, out_vel = double_lstm_pallas(
        params, obs, obs_vel, mean2, std2,
        num_layers=NUM_LAYERS, obs_len=obs_len, pred_len=pred_len,
        hidden=HIDDEN, inp_size=INP_SIZE, out_size=OUT_SIZE)
    return pred, out_vel          # == (pred, [outVelocity]) in training mode


# ------------------------- demo ------------------------- #
if __name__ == "__main__":
    key = jax.random.PRNGKey(0)
    k_params, k_obs, k_vel = jax.random.split(key, 3)

    params = init_params(k_params)
    obs = jax.random.normal(k_obs, (BATCH, OBS_LEN, 2), jnp.float32)
    obs_vel = jax.random.normal(k_vel, (BATCH, OBS_LEN, INP_SIZE), jnp.float32)
    mean = jnp.array([0.1, -0.2], jnp.float32)
    std = jnp.array([1.5, 2.0], jnp.float32)

    pred, out_vel = double_lstm_forward(params, obs, obs_vel, mean, std,
                                        obs_len=OBS_LEN, pred_len=PRED_LEN)
    jax.block_until_ready(pred)
    assert pred.shape == (BATCH, PRED_LEN, 2)
    assert out_vel.shape == (BATCH, PRED_LEN, OUT_SIZE)
    assert bool(jnp.all(jnp.isfinite(pred)))
    print("KERNEL_OK")
</pallas_src>

<mosaic_0001>
module attributes {stable_mosaic.version = 11 : i64} {
  func.func @kernel(%arg0: memref<2x8x2xf32, #tpu.memory_space<vmem>>, %arg1: memref<2x8x2xf32, #tpu.memory_space<vmem>>, %arg2: memref<1x2xf32, #tpu.memory_space<vmem>>, %arg3: memref<1x2xf32, #tpu.memory_space<vmem>>, %arg4: memref<2x32xf32, #tpu.memory_space<vmem>>, %arg5: memref<1x32xf32, #tpu.memory_space<vmem>>, %arg6: memref<32x2xf32, #tpu.memory_space<vmem>>, %arg7: memref<1x2xf32, #tpu.memory_space<vmem>>, %arg8: memref<2x64x128xf32, #tpu.memory_space<vmem>>, %arg9: memref<2x1x128xf32, #tpu.memory_space<vmem>>, %arg10: memref<2x64x128xf32, #tpu.memory_space<vmem>>, %arg11: memref<2x1x128xf32, #tpu.memory_space<vmem>>, %arg12: memref<2x8x2xf32, #tpu.memory_space<vmem>>, %arg13: memref<2x8x2xf32, #tpu.memory_space<vmem>>, %arg14: memref<16x32xf32, #tpu.memory_space<vmem>>) attributes {dimension_semantics = [], scalar_prefetch = 0 : i64, scratch_operands = 1 : i64, tpu.core_type = #tpu.core_type<tc>} {
    %c0 = arith.constant 0 : index
    %c0_0 = arith.constant 0 : index
    %0 = vector.load %arg2[%c0, %c0_0] : memref<1x2xf32, #tpu.memory_space<vmem>>, vector<1x2xf32>
    %c0_1 = arith.constant 0 : index
    %c0_2 = arith.constant 0 : index
    %1 = vector.load %arg3[%c0_1, %c0_2] : memref<1x2xf32, #tpu.memory_space<vmem>>, vector<1x2xf32>
    %cst = arith.constant 1.000000e+00 : f32
    %2 = vector.broadcast %cst : f32 to vector<1x2xf32>
    %3 = arith.divf %2, %1 : vector<1x2xf32>
    %c0_3 = arith.constant 0 : index
    %c0_4 = arith.constant 0 : index
    %4 = vector.load %arg4[%c0_3, %c0_4] : memref<2x32xf32, #tpu.memory_space<vmem>>, vector<2x32xf32>
    %c0_5 = arith.constant 0 : index
    %c0_6 = arith.constant 0 : index
    %5 = vector.load %arg5[%c0_5, %c0_6] : memref<1x32xf32, #tpu.memory_space<vmem>>, vector<1x32xf32>
    %c0_7 = arith.constant 0 : index
    %c0_8 = arith.constant 0 : index
    %6 = vector.load %arg6[%c0_7, %c0_8] : memref<32x2xf32, #tpu.memory_space<vmem>>, vector<32x2xf32>
    %c0_9 = arith.constant 0 : index
    %c0_10 = arith.constant 0 : index
    %7 = vector.load %arg7[%c0_9, %c0_10] : memref<1x2xf32, #tpu.memory_space<vmem>>, vector<1x2xf32>
    %8 = tpu.iota {dimensions = array<i32: 1>} : vector<2x128xi32>
    %c64_i32 = arith.constant 64 : i32
    %9 = vector.broadcast %c64_i32 : i32 to vector<2x128xi32>
    %10 = arith.cmpi sge, %8, %9 : vector<2x128xi32>
    %c96_i32 = arith.constant 96 : i32
    %11 = vector.broadcast %c96_i32 : i32 to vector<2x128xi32>
    %12 = arith.cmpi slt, %8, %11 : vector<2x128xi32>
    %13 = arith.andi %10, %12 : vector<2x128xi1>
    %cst_11 = arith.constant 2.000000e+00 : f32
    %cst_12 = arith.constant 1.000000e+00 : f32
    %14 = vector.broadcast %cst_11 : f32 to vector<2x128xf32>
    %15 = vector.broadcast %cst_12 : f32 to vector<2x128xf32>
    %16 = arith.select %13, %14, %15 : vector<2x128xi1>, vector<2x128xf32>
    %cst_13 = arith.constant -1.000000e+00 : f32
    %cst_14 = arith.constant 0.000000e+00 : f32
    %17 = vector.broadcast %cst_13 : f32 to vector<2x128xf32>
    %18 = vector.broadcast %cst_14 : f32 to vector<2x128xf32>
    %19 = arith.select %13, %17, %18 : vector<2x128xi1>, vector<2x128xf32>
    %c0_15 = arith.constant 0 : index
    %c0_16 = arith.constant 0 : index
    %c0_17 = arith.constant 0 : index
    %20 = vector.load %arg1[%c0_15, %c0_16, %c0_17] : memref<2x8x2xf32, #tpu.memory_space<vmem>>, vector<2x8x2xf32>
    %21 = vector.shape_cast %0 : vector<1x2xf32> to vector<1x1x2xf32>
    %22 = vector.broadcast %21 : vector<1x1x2xf32> to vector<2x8x2xf32>
    %23 = arith.subf %20, %22 : vector<2x8x2xf32>
    %24 = vector.shape_cast %3 : vector<1x2xf32> to vector<1x1x2xf32>
    %25 = vector.broadcast %24 : vector<1x1x2xf32> to vector<2x8x2xf32>
    %26 = arith.mulf %23, %25 : vector<2x8x2xf32>
    %27 = vector.shape_cast %5 : vector<1x32xf32> to vector<1x1x32xf32>
    %28 = vector.extract_strided_slice %26 {offsets = [0, 0, 0], sizes = [2, 8, 1], strides = [1, 1, 1]} : vector<2x8x2xf32> to vector<2x8x1xf32>
    %29 = vector.extract_strided_slice %4 {offsets = [0, 0], sizes = [1, 32], strides = [1, 1]} : vector<2x32xf32> to vector<1x32xf32>
    %30 = vector.shape_cast %29 : vector<1x32xf32> to vector<1x1x32xf32>
    %31 = vector.broadcast %28 : vector<2x8x1xf32> to vector<2x8x32xf32>
    %32 = vector.broadcast %30 : vector<1x1x32xf32> to vector<2x8x32xf32>
    %33 = arith.mulf %31, %32 : vector<2x8x32xf32>
    %34 = vector.broadcast %27 : vector<1x1x32xf32> to vector<2x8x32xf32>
    %35 = arith.addf %34, %33 : vector<2x8x32xf32>
    %36 = vector.extract_strided_slice %26 {offsets = [0, 0, 1], sizes = [2, 8, 1], strides = [1, 1, 1]} : vector<2x8x2xf32> to vector<2x8x1xf32>
    %37 = vector.extract_strided_slice %4 {offsets = [1, 0], sizes = [1, 32], strides = [1, 1]} : vector<2x32xf32> to vector<1x32xf32>
    %38 = vector.shape_cast %37 : vector<1x32xf32> to vector<1x1x32xf32>
    %39 = vector.broadcast %36 : vector<2x8x1xf32> to vector<2x8x32xf32>
    %40 = vector.broadcast %38 : vector<1x1x32xf32> to vector<2x8x32xf32>
    %41 = arith.mulf %39, %40 : vector<2x8x32xf32>
    %42 = arith.addf %35, %41 : vector<2x8x32xf32>
    %c0_18 = arith.constant 0 : index
    %c0_19 = arith.constant 0 : index
    %c0_20 = arith.constant 0 : index
    %43 = vector.load %arg8[%c0_18, %c0_19, %c0_20] : memref<2x64x128xf32, #tpu.memory_space<vmem>>, vector<1x64x128xf32>
    %44 = vector.shape_cast %43 : vector<1x64x128xf32> to vector<64x128xf32>
    %c1 = arith.constant 1 : index
    %c0_21 = arith.constant 0 : index
    %c0_22 = arith.constant 0 : index
    %45 = vector.load %arg8[%c1, %c0_21, %c0_22] : memref<2x64x128xf32, #tpu.memory_space<vmem>>, vector<1x64x128xf32>
    %46 = vector.shape_cast %45 : vector<1x64x128xf32> to vector<64x128xf32>
    %c0_23 = arith.constant 0 : index
    %c0_24 = arith.constant 0 : index
    %c0_25 = arith.constant 0 : index
    %47 = vector.load %arg9[%c0_23, %c0_24, %c0_25] : memref<2x1x128xf32, #tpu.memory_space<vmem>>, vector<1x1x128xf32>
    %48 = vector.shape_cast %47 : vector<1x1x128xf32> to vector<1x128xf32>
    %c1_26 = arith.constant 1 : index
    %c0_27 = arith.constant 0 : index
    %c0_28 = arith.constant 0 : index
    %49 = vector.load %arg9[%c1_26, %c0_27, %c0_28] : memref<2x1x128xf32, #tpu.memory_space<vmem>>, vector<1x1x128xf32>
    %50 = vector.shape_cast %49 : vector<1x1x128xf32> to vector<1x128xf32>
    %cst_29 = arith.constant 0.000000e+00 : f32
    %51 = vector.broadcast %cst_29 : f32 to vector<2x32xf32>
    %cst_30 = arith.constant 0.000000e+00 : f32
    %52 = vector.broadcast %cst_30 : f32 to vector<2x32xf32>
    %cst_31 = arith.constant 0.000000e+00 : f32
    %53 = vector.broadcast %cst_31 : f32 to vector<2x32xf32>
    %cst_32 = arith.constant 0.000000e+00 : f32
    %54 = vector.broadcast %cst_32 : f32 to vector<2x32xf32>
    %55 = vector.extract_strided_slice %42 {offsets = [0, 0, 0], sizes = [2, 1, 32], strides = [1, 1, 1]} : vector<2x8x32xf32> to vector<2x1x32xf32>
    %56 = vector.shape_cast %55 : vector<2x1x32xf32> to vector<2x32xf32>
    %57 = tpu.concatenate %56, %51 in 1 : vector<2x32xf32>, vector<2x32xf32> -> vector<2x64xf32>
    %cst_33 = arith.constant dense<0.000000e+00> : vector<2x128xf32>
    %58 = tpu.matmul %57, %44, %cst_33 {dimension_numbers = #tpu.dot_dimension_numbers<[1], [0], [0], [1], [0, 0, 1, 1], [], []>} : vector<2x64xf32>, vector<64x128xf32>, vector<2x128xf32> -> vector<2x128xf32>
    %59 = vector.broadcast %48 : vector<1x128xf32> to vector<2x128xf32>
    %60 = arith.addf %58, %59 : vector<2x128xf32>
    %61 = arith.mulf %60, %16 : vector<2x128xf32>
    %62 = arith.negf %61 : vector<2x128xf32>
    %63 = math.exp %62 : vector<2x128xf32>
    %cst_34 = arith.constant 1.000000e+00 : f32
    %64 = vector.broadcast %cst_34 : f32 to vector<2x128xf32>
    %65 = arith.addf %64, %63 : vector<2x128xf32>
    %66 = arith.divf %64, %65 : vector<2x128xf32>
    %67 = arith.mulf %66, %16 : vector<2x128xf32>
    %68 = arith.addf %67, %19 : vector<2x128xf32>
    %69 = vector.extract_strided_slice %68 {offsets = [0, 0], sizes = [2, 32], strides = [1, 1]} : vector<2x128xf32> to vector<2x32xf32>
    %70 = vector.extract_strided_slice %68 {offsets = [0, 32], sizes = [2, 32], strides = [1, 1]} : vector<2x128xf32> to vector<2x32xf32>
    %71 = vector.extract_strided_slice %68 {offsets = [0, 64], sizes = [2, 32], strides = [1, 1]} : vector<2x128xf32> to vector<2x32xf32>
    %72 = vector.extract_strided_slice %68 {offsets = [0, 96], sizes = [2, 32], strides = [1, 1]} : vector<2x128xf32> to vector<2x32xf32>
    %73 = arith.mulf %70, %53 : vector<2x32xf32>
    %74 = arith.mulf %69, %71 : vector<2x32xf32>
    %75 = arith.addf %73, %74 : vector<2x32xf32>
    %76 = math.tanh %75 : vector<2x32xf32>
    %77 = arith.mulf %72, %76 : vector<2x32xf32>
    %78 = tpu.concatenate %77, %52 in 1 : vector<2x32xf32>, vector<2x32xf32> -> vector<2x64xf32>
    %cst_35 = arith.constant dense<0.000000e+00> : vector<2x128xf32>
    %79 = tpu.matmul %78, %46, %cst_35 {dimension_numbers = #tpu.dot_dimension_numbers<[1], [0], [0], [1], [0, 0, 1, 1], [], []>} : vector<2x64xf32>, vector<64x128xf32>, vector<2x128xf32> -> vector<2x128xf32>
    %80 = vector.broadcast %50 : vector<1x128xf32> to vector<2x128xf32>
    %81 = arith.addf %79, %80 : vector<2x128xf32>
    %82 = arith.mulf %81, %16 : vector<2x128xf32>
    %83 = arith.negf %82 : vector<2x128xf32>
    %84 = math.exp %83 : vector<2x128xf32>
    %cst_36 = arith.constant 1.000000e+00 : f32
    %85 = vector.broadcast %cst_36 : f32 to vector<2x128xf32>
    %86 = arith.addf %85, %84 : vector<2x128xf32>
    %87 = arith.divf %85, %86 : vector<2x128xf32>
    %88 = arith.mulf %87, %16 : vector<2x128xf32>
    %89 = arith.addf %88, %19 : vector<2x128xf32>
    %90 = vector.extract_strided_slice %89 {offsets = [0, 0], sizes = [2, 32], strides = [1, 1]} : vector<2x128xf32> to vector<2x32xf32>
    %91 = vector.extract_strided_slice %89 {offsets = [0, 32], sizes = [2, 32], strides = [1, 1]} : vector<2x128xf32> to vector<2x32xf32>
    %92 = vector.extract_strided_slice %89 {offsets = [0, 64], sizes = [2, 32], strides = [1, 1]} : vector<2x128xf32> to vector<2x32xf32>
    %93 = vector.extract_strided_slice %89 {offsets = [0, 96], sizes = [2, 32], strides = [1, 1]} : vector<2x128xf32> to vector<2x32xf32>
    %94 = arith.mulf %91, %54 : vector<2x32xf32>
    %95 = arith.mulf %90, %92 : vector<2x32xf32>
    %96 = arith.addf %94, %95 : vector<2x32xf32>
    %97 = math.tanh %96 : vector<2x32xf32>
    %98 = arith.mulf %93, %97 : vector<2x32xf32>
    %99 = vector.extract_strided_slice %42 {offsets = [0, 1, 0], sizes = [2, 1, 32], strides = [1, 1, 1]} : vector<2x8x32xf32> to vector<2x1x32xf32>
    %100 = vector.shape_cast %99 : vector<2x1x32xf32> to vector<2x32xf32>
    %101 = tpu.concatenate %100, %77 in 1 : vector<2x32xf32>, vector<2x32xf32> -> vector<2x64xf32>
    %cst_37 = arith.constant dense<0.000000e+00> : vector<2x128xf32>
    %102 = tpu.matmul %101, %44, %cst_37 {dimension_numbers = #tpu.dot_dimension_numbers<[1], [0], [0], [1], [0, 0, 1, 1], [], []>} : vector<2x64xf32>, vector<64x128xf32>, vector<2x128xf32> -> vector<2x128xf32>
    %103 = vector.broadcast %48 : vector<1x128xf32> to vector<2x128xf32>
    %104 = arith.addf %102, %103 : vector<2x128xf32>
    %105 = arith.mulf %104, %16 : vector<2x128xf32>
    %106 = arith.negf %105 : vector<2x128xf32>
    %107 = math.exp %106 : vector<2x128xf32>
    %cst_38 = arith.constant 1.000000e+00 : f32
    %108 = vector.broadcast %cst_38 : f32 to vector<2x128xf32>
    %109 = arith.addf %108, %107 : vector<2x128xf32>
    %110 = arith.divf %108, %109 : vector<2x128xf32>
    %111 = arith.mulf %110, %16 : vector<2x128xf32>
    %112 = arith.addf %111, %19 : vector<2x128xf32>
    %113 = vector.extract_strided_slice %112 {offsets = [0, 0], sizes = [2, 32], strides = [1, 1]} : vector<2x128xf32> to vector<2x32xf32>
    %114 = vector.extract_strided_slice %112 {offsets = [0, 32], sizes = [2, 32], strides = [1, 1]} : vector<2x128xf32> to vector<2x32xf32>
    %115 = vector.extract_strided_slice %112 {offsets = [0, 64], sizes = [2, 32], strides = [1, 1]} : vector<2x128xf32> to vector<2x32xf32>
    %116 = vector.extract_strided_slice %112 {offsets = [0, 96], sizes = [2, 32], strides = [1, 1]} : vector<2x128xf32> to vector<2x32xf32>
    %117 = arith.mulf %114, %75 : vector<2x32xf32>
    %118 = arith.mulf %113, %115 : vector<2x32xf32>
    %119 = arith.addf %117, %118 : vector<2x32xf32>
    %120 = math.tanh %119 : vector<2x32xf32>
    %121 = arith.mulf %116, %120 : vector<2x32xf32>
    %122 = tpu.concatenate %121, %98 in 1 : vector<2x32xf32>, vector<2x32xf32> -> vector<2x64xf32>
    %cst_39 = arith.constant dense<0.000000e+00> : vector<2x128xf32>
    %123 = tpu.matmul %122, %46, %cst_39 {dimension_numbers = #tpu.dot_dimension_numbers<[1], [0], [0], [1], [0, 0, 1, 1], [], []>} : vector<2x64xf32>, vector<64x128xf32>, vector<2x128xf32> -> vector<2x128xf32>
    %124 = vector.broadcast %50 : vector<1x128xf32> to vector<2x128xf32>
    %125 = arith.addf %123, %124 : vector<2x128xf32>
    %126 = arith.mulf %125, %16 : vector<2x128xf32>
    %127 = arith.negf %126 : vector<2x128xf32>
    %128 = math.exp %127 : vector<2x128xf32>
    %cst_40 = arith.constant 1.000000e+00 : f32
    %129 = vector.broadcast %cst_40 : f32 to vector<2x128xf32>
    %130 = arith.addf %129, %128 : vector<2x128xf32>
    %131 = arith.divf %129, %130 : vector<2x128xf32>
    %132 = arith.mulf %131, %16 : vector<2x128xf32>
    %133 = arith.addf %132, %19 : vector<2x128xf32>
    %134 = vector.extract_strided_slice %133 {offsets = [0, 0], sizes = [2, 32], strides = [1, 1]} : vector<2x128xf32> to vector<2x32xf32>
    %135 = vector.extract_strided_slice %133 {offsets = [0, 32], sizes = [2, 32], strides = [1, 1]} : vector<2x128xf32> to vector<2x32xf32>
    %136 = vector.extract_strided_slice %133 {offsets = [0, 64], sizes = [2, 32], strides = [1, 1]} : vector<2x128xf32> to vector<2x32xf32>
    %137 = vector.extract_strided_slice %133 {offsets = [0, 96], sizes = [2, 32], strides = [1, 1]} : vector<2x128xf32> to vector<2x32xf32>
    %138 = arith.mulf %135, %96 : vector<2x32xf32>
    %139 = arith.mulf %134, %136 : vector<2x32xf32>
    %140 = arith.addf %138, %139 : vector<2x32xf32>
    %141 = math.tanh %140 : vector<2x32xf32>
    %142 = arith.mulf %137, %141 : vector<2x32xf32>
    %143 = vector.extract_strided_slice %42 {offsets = [0, 2, 0], sizes = [2, 1, 32], strides = [1, 1, 1]} : vector<2x8x32xf32> to vector<2x1x32xf32>
    %144 = vector.shape_cast %143 : vector<2x1x32xf32> to vector<2x32xf32>
    %145 = tpu.concatenate %144, %121 in 1 : vector<2x32xf32>, vector<2x32xf32> -> vector<2x64xf32>
    %cst_41 = arith.constant dense<0.000000e+00> : vector<2x128xf32>
    %146 = tpu.matmul %145, %44, %cst_41 {dimension_numbers = #tpu.dot_dimension_numbers<[1], [0], [0], [1], [0, 0, 1, 1], [], []>} : vector<2x64xf32>, vector<64x128xf32>, vector<2x128xf32> -> vector<2x128xf32>
    %147 = vector.broadcast %48 : vector<1x128xf32> to vector<2x128xf32>
    %148 = arith.addf %146, %147 : vector<2x128xf32>
    %149 = arith.mulf %148, %16 : vector<2x128xf32>
    %150 = arith.negf %149 : vector<2x128xf32>
    %151 = math.exp %150 : vector<2x128xf32>
    %cst_42 = arith.constant 1.000000e+00 : f32
    %152 = vector.broadcast %cst_42 : f32 to vector<2x128xf32>
    %153 = arith.addf %152, %151 : vector<2x128xf32>
    %154 = arith.divf %152, %153 : vector<2x128xf32>
    %155 = arith.mulf %154, %16 : vector<2x128xf32>
    %156 = arith.addf %155, %19 : vector<2x128xf32>
    %157 = vector.extract_strided_slice %156 {offsets = [0, 0], sizes = [2, 32], strides = [1, 1]} : vector<2x128xf32> to vector<2x32xf32>
    %158 = vector.extract_strided_slice %156 {offsets = [0, 32], sizes = [2, 32], strides = [1, 1]} : vector<2x128xf32> to vector<2x32xf32>
    %159 = vector.extract_strided_slice %156 {offsets = [0, 64], sizes = [2, 32], strides = [1, 1]} : vector<2x128xf32> to vector<2x32xf32>
    %160 = vector.extract_strided_slice %156 {offsets = [0, 96], sizes = [2, 32], strides = [1, 1]} : vector<2x128xf32> to vector<2x32xf32>
    %161 = arith.mulf %158, %119 : vector<2x32xf32>
    %162 = arith.mulf %157, %159 : vector<2x32xf32>
    %163 = arith.addf %161, %162 : vector<2x32xf32>
    %164 = math.tanh %163 : vector<2x32xf32>
    %165 = arith.mulf %160, %164 : vector<2x32xf32>
    %166 = tpu.concatenate %165, %142 in 1 : vector<2x32xf32>, vector<2x32xf32> -> vector<2x64xf32>
    %cst_43 = arith.constant dense<0.000000e+00> : vector<2x128xf32>
    %167 = tpu.matmul %166, %46, %cst_43 {dimension_numbers = #tpu.dot_dimension_numbers<[1], [0], [0], [1], [0, 0, 1, 1], [], []>} : vector<2x64xf32>, vector<64x128xf32>, vector<2x128xf32> -> vector<2x128xf32>
    %168 = vector.broadcast %50 : vector<1x128xf32> to vector<2x128xf32>
    %169 = arith.addf %167, %168 : vector<2x128xf32>
    %170 = arith.mulf %169, %16 : vector<2x128xf32>
    %171 = arith.negf %170 : vector<2x128xf32>
    %172 = math.exp %171 : vector<2x128xf32>
    %cst_44 = arith.constant 1.000000e+00 : f32
    %173 = vector.broadcast %cst_44 : f32 to vector<2x128xf32>
    %174 = arith.addf %173, %172 : vector<2x128xf32>
    %175 = arith.divf %173, %174 : vector<2x128xf32>
    %176 = arith.mulf %175, %16 : vector<2x128xf32>
    %177 = arith.addf %176, %19 : vector<2x128xf32>
    %178 = vector.extract_strided_slice %177 {offsets = [0, 0], sizes = [2, 32], strides = [1, 1]} : vector<2x128xf32> to vector<2x32xf32>
    %179 = vector.extract_strided_slice %177 {offsets = [0, 32], sizes = [2, 32], strides = [1, 1]} : vector<2x128xf32> to vector<2x32xf32>
    %180 = vector.extract_strided_slice %177 {offsets = [0, 64], sizes = [2, 32], strides = [1, 1]} : vector<2x128xf32> to vector<2x32xf32>
    %181 = vector.extract_strided_slice %177 {offsets = [0, 96], sizes = [2, 32], strides = [1, 1]} : vector<2x128xf32> to vector<2x32xf32>
    %182 = arith.mulf %179, %140 : vector<2x32xf32>
    %183 = arith.mulf %178, %180 : vector<2x32xf32>
    %184 = arith.addf %182, %183 : vector<2x32xf32>
    %185 = math.tanh %184 : vector<2x32xf32>
    %186 = arith.mulf %181, %185 : vector<2x32xf32>
    %187 = vector.extract_strided_slice %42 {offsets = [0, 3, 0], sizes = [2, 1, 32], strides = [1, 1, 1]} : vector<2x8x32xf32> to vector<2x1x32xf32>
    %188 = vector.shape_cast %187 : vector<2x1x32xf32> to vector<2x32xf32>
    %189 = tpu.concatenate %188, %165 in 1 : vector<2x32xf32>, vector<2x32xf32> -> vector<2x64xf32>
    %cst_45 = arith.constant dense<0.000000e+00> : vector<2x128xf32>
    %190 = tpu.matmul %189, %44, %cst_45 {dimension_numbers = #tpu.dot_dimension_numbers<[1], [0], [0], [1], [0, 0, 1, 1], [], []>} : vector<2x64xf32>, vector<64x128xf32>, vector<2x128xf32> -> vector<2x128xf32>
    %191 = vector.broadcast %48 : vector<1x128xf32> to vector<2x128xf32>
    %192 = arith.addf %190, %191 : vector<2x128xf32>
    %193 = arith.mulf %192, %16 : vector<2x128xf32>
    %194 = arith.negf %193 : vector<2x128xf32>
    %195 = math.exp %194 : vector<2x128xf32>
    %cst_46 = arith.constant 1.000000e+00 : f32
    %196 = vector.broadcast %cst_46 : f32 to vector<2x128xf32>
    %197 = arith.addf %196, %195 : vector<2x128xf32>
    %198 = arith.divf %196, %197 : vector<2x128xf32>
    %199 = arith.mulf %198, %16 : vector<2x128xf32>
    %200 = arith.addf %199, %19 : vector<2x128xf32>
    %201 = vector.extract_strided_slice %200 {offsets = [0, 0], sizes = [2, 32], strides = [1, 1]} : vector<2x128xf32> to vector<2x32xf32>
    %202 = vector.extract_strided_slice %200 {offsets = [0, 32], sizes = [2, 32], strides = [1, 1]} : vector<2x128xf32> to vector<2x32xf32>
    %203 = vector.extract_strided_slice %200 {offsets = [0, 64], sizes = [2, 32], strides = [1, 1]} : vector<2x128xf32> to vector<2x32xf32>
    %204 = vector.extract_strided_slice %200 {offsets = [0, 96], sizes = [2, 32], strides = [1, 1]} : vector<2x128xf32> to vector<2x32xf32>
    %205 = arith.mulf %202, %163 : vector<2x32xf32>
    %206 = arith.mulf %201, %203 : vector<2x32xf32>
    %207 = arith.addf %205, %206 : vector<2x32xf32>
    %208 = math.tanh %207 : vector<2x32xf32>
    %209 = arith.mulf %204, %208 : vector<2x32xf32>
    %210 = tpu.concatenate %209, %186 in 1 : vector<2x32xf32>, vector<2x32xf32> -> vector<2x64xf32>
    %cst_47 = arith.constant dense<0.000000e+00> : vector<2x128xf32>
    %211 = tpu.matmul %210, %46, %cst_47 {dimension_numbers = #tpu.dot_dimension_numbers<[1], [0], [0], [1], [0, 0, 1, 1], [], []>} : vector<2x64xf32>, vector<64x128xf32>, vector<2x128xf32> -> vector<2x128xf32>
    %212 = vector.broadcast %50 : vector<1x128xf32> to vector<2x128xf32>
    %213 = arith.addf %211, %212 : vector<2x128xf32>
    %214 = arith.mulf %213, %16 : vector<2x128xf32>
    %215 = arith.negf %214 : vector<2x128xf32>
    %216 = math.exp %215 : vector<2x128xf32>
    %cst_48 = arith.constant 1.000000e+00 : f32
    %217 = vector.broadcast %cst_48 : f32 to vector<2x128xf32>
    %218 = arith.addf %217, %216 : vector<2x128xf32>
    %219 = arith.divf %217, %218 : vector<2x128xf32>
    %220 = arith.mulf %219, %16 : vector<2x128xf32>
    %221 = arith.addf %220, %19 : vector<2x128xf32>
    %222 = vector.extract_strided_slice %221 {offsets = [0, 0], sizes = [2, 32], strides = [1, 1]} : vector<2x128xf32> to vector<2x32xf32>
    %223 = vector.extract_strided_slice %221 {offsets = [0, 32], sizes = [2, 32], strides = [1, 1]} : vector<2x128xf32> to vector<2x32xf32>
    %224 = vector.extract_strided_slice %221 {offsets = [0, 64], sizes = [2, 32], strides = [1, 1]} : vector<2x128xf32> to vector<2x32xf32>
    %225 = vector.extract_strided_slice %221 {offsets = [0, 96], sizes = [2, 32], strides = [1, 1]} : vector<2x128xf32> to vector<2x32xf32>
    %226 = arith.mulf %223, %184 : vector<2x32xf32>
    %227 = arith.mulf %222, %224 : vector<2x32xf32>
    %228 = arith.addf %226, %227 : vector<2x32xf32>
    %229 = math.tanh %228 : vector<2x32xf32>
    %230 = arith.mulf %225, %229 : vector<2x32xf32>
    %231 = vector.extract_strided_slice %42 {offsets = [0, 4, 0], sizes = [2, 1, 32], strides = [1, 1, 1]} : vector<2x8x32xf32> to vector<2x1x32xf32>
    %232 = vector.shape_cast %231 : vector<2x1x32xf32> to vector<2x32xf32>
    %233 = tpu.concatenate %232, %209 in 1 : vector<2x32xf32>, vector<2x32xf32> -> vector<2x64xf32>
    %cst_49 = arith.constant dense<0.000000e+00> : vector<2x128xf32>
    %234 = tpu.matmul %233, %44, %cst_49 {dimension_numbers = #tpu.dot_dimension_numbers<[1], [0], [0], [1], [0, 0, 1, 1], [], []>} : vector<2x64xf32>, vector<64x128xf32>, vector<2x128xf32> -> vector<2x128xf32>
    %235 = vector.broadcast %48 : vector<1x128xf32> to vector<2x128xf32>
    %236 = arith.addf %234, %235 : vector<2x128xf32>
    %237 = arith.mulf %236, %16 : vector<2x128xf32>
    %238 = arith.negf %237 : vector<2x128xf32>
    %239 = math.exp %238 : vector<2x128xf32>
    %cst_50 = arith.constant 1.000000e+00 : f32
    %240 = vector.broadcast %cst_50 : f32 to vector<2x128xf32>
    %241 = arith.addf %240, %239 : vector<2x128xf32>
    %242 = arith.divf %240, %241 : vector<2x128xf32>
    %243 = arith.mulf %242, %16 : vector<2x128xf32>
    %244 = arith.addf %243, %19 : vector<2x128xf32>
    %245 = vector.extract_strided_slice %244 {offsets = [0, 0], sizes = [2, 32], strides = [1, 1]} : vector<2x128xf32> to vector<2x32xf32>
    %246 = vector.extract_strided_slice %244 {offsets = [0, 32], sizes = [2, 32], strides = [1, 1]} : vector<2x128xf32> to vector<2x32xf32>
    %247 = vector.extract_strided_slice %244 {offsets = [0, 64], sizes = [2, 32], strides = [1, 1]} : vector<2x128xf32> to vector<2x32xf32>
    %248 = vector.extract_strided_slice %244 {offsets = [0, 96], sizes = [2, 32], strides = [1, 1]} : vector<2x128xf32> to vector<2x32xf32>
    %249 = arith.mulf %246, %207 : vector<2x32xf32>
    %250 = arith.mulf %245, %247 : vector<2x32xf32>
    %251 = arith.addf %249, %250 : vector<2x32xf32>
    %252 = math.tanh %251 : vector<2x32xf32>
    %253 = arith.mulf %248, %252 : vector<2x32xf32>
    %254 = tpu.concatenate %253, %230 in 1 : vector<2x32xf32>, vector<2x32xf32> -> vector<2x64xf32>
    %cst_51 = arith.constant dense<0.000000e+00> : vector<2x128xf32>
    %255 = tpu.matmul %254, %46, %cst_51 {dimension_numbers = #tpu.dot_dimension_numbers<[1], [0], [0], [1], [0, 0, 1, 1], [], []>} : vector<2x64xf32>, vector<64x128xf32>, vector<2x128xf32> -> vector<2x128xf32>
    %256 = vector.broadcast %50 : vector<1x128xf32> to vector<2x128xf32>
    %257 = arith.addf %255, %256 : vector<2x128xf32>
    %258 = arith.mulf %257, %16 : vector<2x128xf32>
    %259 = arith.negf %258 : vector<2x128xf32>
    %260 = math.exp %259 : vector<2x128xf32>
    %cst_52 = arith.constant 1.000000e+00 : f32
    %261 = vector.broadcast %cst_52 : f32 to vector<2x128xf32>
    %262 = arith.addf %261, %260 : vector<2x128xf32>
    %263 = arith.divf %261, %262 : vector<2x128xf32>
    %264 = arith.mulf %263, %16 : vector<2x128xf32>
    %265 = arith.addf %264, %19 : vector<2x128xf32>
    %266 = vector.extract_strided_slice %265 {offsets = [0, 0], sizes = [2, 32], strides = [1, 1]} : vector<2x128xf32> to vector<2x32xf32>
    %267 = vector.extract_strided_slice %265 {offsets = [0, 32], sizes = [2, 32], strides = [1, 1]} : vector<2x128xf32> to vector<2x32xf32>
    %268 = vector.extract_strided_slice %265 {offsets = [0, 64], sizes = [2, 32], strides = [1, 1]} : vector<2x128xf32> to vector<2x32xf32>
    %269 = vector.extract_strided_slice %265 {offsets = [0, 96], sizes = [2, 32], strides = [1, 1]} : vector<2x128xf32> to vector<2x32xf32>
    %270 = arith.mulf %267, %228 : vector<2x32xf32>
    %271 = arith.mulf %266, %268 : vector<2x32xf32>
    %272 = arith.addf %270, %271 : vector<2x32xf32>
    %273 = math.tanh %272 : vector<2x32xf32>
    %274 = arith.mulf %269, %273 : vector<2x32xf32>
    %275 = vector.extract_strided_slice %42 {offsets = [0, 5, 0], sizes = [2, 1, 32], strides = [1, 1, 1]} : vector<2x8x32xf32> to vector<2x1x32xf32>
    %276 = vector.shape_cast %275 : vector<2x1x32xf32> to vector<2x32xf32>
    %277 = tpu.concatenate %276, %253 in 1 : vector<2x32xf32>, vector<2x32xf32> -> vector<2x64xf32>
    %cst_53 = arith.constant dense<0.000000e+00> : vector<2x128xf32>
    %278 = tpu.matmul %277, %44, %cst_53 {dimension_numbers = #tpu.dot_dimension_numbers<[1], [0], [0], [1], [0, 0, 1, 1], [], []>} : vector<2x64xf32>, vector<64x128xf32>, vector<2x128xf32> -> vector<2x128xf32>
    %279 = vector.broadcast %48 : vector<1x128xf32> to vector<2x128xf32>
    %280 = arith.addf %278, %279 : vector<2x128xf32>
    %281 = arith.mulf %280, %16 : vector<2x128xf32>
    %282 = arith.negf %281 : vector<2x128xf32>
    %283 = math.exp %282 : vector<2x128xf32>
    %cst_54 = arith.constant 1.000000e+00 : f32
    %284 = vector.broadcast %cst_54 : f32 to vector<2x128xf32>
    %285 = arith.addf %284, %283 : vector<2x128xf32>
    %286 = arith.divf %284, %285 : vector<2x128xf32>
    %287 = arith.mulf %286, %16 : vector<2x128xf32>
    %288 = arith.addf %287, %19 : vector<2x128xf32>
    %289 = vector.extract_strided_slice %288 {offsets = [0, 0], sizes = [2, 32], strides = [1, 1]} : vector<2x128xf32> to vector<2x32xf32>
    %290 = vector.extract_strided_slice %288 {offsets = [0, 32], sizes = [2, 32], strides = [1, 1]} : vector<2x128xf32> to vector<2x32xf32>
    %291 = vector.extract_strided_slice %288 {offsets = [0, 64], sizes = [2, 32], strides = [1, 1]} : vector<2x128xf32> to vector<2x32xf32>
    %292 = vector.extract_strided_slice %288 {offsets = [0, 96], sizes = [2, 32], strides = [1, 1]} : vector<2x128xf32> to vector<2x32xf32>
    %293 = arith.mulf %290, %251 : vector<2x32xf32>
    %294 = arith.mulf %289, %291 : vector<2x32xf32>
    %295 = arith.addf %293, %294 : vector<2x32xf32>
    %296 = math.tanh %295 : vector<2x32xf32>
    %297 = arith.mulf %292, %296 : vector<2x32xf32>
    %298 = tpu.concatenate %297, %274 in 1 : vector<2x32xf32>, vector<2x32xf32> -> vector<2x64xf32>
    %cst_55 = arith.constant dense<0.000000e+00> : vector<2x128xf32>
    %299 = tpu.matmul %298, %46, %cst_55 {dimension_numbers = #tpu.dot_dimension_numbers<[1], [0], [0], [1], [0, 0, 1, 1], [], []>} : vector<2x64xf32>, vector<64x128xf32>, vector<2x128xf32> -> vector<2x128xf32>
    %300 = vector.broadcast %50 : vector<1x128xf32> to vector<2x128xf32>
    %301 = arith.addf %299, %300 : vector<2x128xf32>
    %302 = arith.mulf %301, %16 : vector<2x128xf32>
    %303 = arith.negf %302 : vector<2x128xf32>
    %304 = math.exp %303 : vector<2x128xf32>
    %cst_56 = arith.constant 1.000000e+00 : f32
    %305 = vector.broadcast %cst_56 : f32 to vector<2x128xf32>
    %306 = arith.addf %305, %304 : vector<2x128xf32>
    %307 = arith.divf %305, %306 : vector<2x128xf32>
    %308 = arith.mulf %307, %16 : vector<2x128xf32>
    %309 = arith.addf %308, %19 : vector<2x128xf32>
    %310 = vector.extract_strided_slice %309 {offsets = [0, 0], sizes = [2, 32], strides = [1, 1]} : vector<2x128xf32> to vector<2x32xf32>
    %311 = vector.extract_strided_slice %309 {offsets = [0, 32], sizes = [2, 32], strides = [1, 1]} : vector<2x128xf32> to vector<2x32xf32>
    %312 = vector.extract_strided_slice %309 {offsets = [0, 64], sizes = [2, 32], strides = [1, 1]} : vector<2x128xf32> to vector<2x32xf32>
    %313 = vector.extract_strided_slice %309 {offsets = [0, 96], sizes = [2, 32], strides = [1, 1]} : vector<2x128xf32> to vector<2x32xf32>
    %314 = arith.mulf %311, %272 : vector<2x32xf32>
    %315 = arith.mulf %310, %312 : vector<2x32xf32>
    %316 = arith.addf %314, %315 : vector<2x32xf32>
    %317 = math.tanh %316 : vector<2x32xf32>
    %318 = arith.mulf %313, %317 : vector<2x32xf32>
    %319 = vector.extract_strided_slice %42 {offsets = [0, 6, 0], sizes = [2, 1, 32], strides = [1, 1, 1]} : vector<2x8x32xf32> to vector<2x1x32xf32>
    %320 = vector.shape_cast %319 : vector<2x1x32xf32> to vector<2x32xf32>
    %321 = tpu.concatenate %320, %297 in 1 : vector<2x32xf32>, vector<2x32xf32> -> vector<2x64xf32>
    %cst_57 = arith.constant dense<0.000000e+00> : vector<2x128xf32>
    %322 = tpu.matmul %321, %44, %cst_57 {dimension_numbers = #tpu.dot_dimension_numbers<[1], [0], [0], [1], [0, 0, 1, 1], [], []>} : vector<2x64xf32>, vector<64x128xf32>, vector<2x128xf32> -> vector<2x128xf32>
    %323 = vector.broadcast %48 : vector<1x128xf32> to vector<2x128xf32>
    %324 = arith.addf %322, %323 : vector<2x128xf32>
    %325 = arith.mulf %324, %16 : vector<2x128xf32>
    %326 = arith.negf %325 : vector<2x128xf32>
    %327 = math.exp %326 : vector<2x128xf32>
    %cst_58 = arith.constant 1.000000e+00 : f32
    %328 = vector.broadcast %cst_58 : f32 to vector<2x128xf32>
    %329 = arith.addf %328, %327 : vector<2x128xf32>
    %330 = arith.divf %328, %329 : vector<2x128xf32>
    %331 = arith.mulf %330, %16 : vector<2x128xf32>
    %332 = arith.addf %331, %19 : vector<2x128xf32>
    %333 = vector.extract_strided_slice %332 {offsets = [0, 0], sizes = [2, 32], strides = [1, 1]} : vector<2x128xf32> to vector<2x32xf32>
    %334 = vector.extract_strided_slice %332 {offsets = [0, 32], sizes = [2, 32], strides = [1, 1]} : vector<2x128xf32> to vector<2x32xf32>
    %335 = vector.extract_strided_slice %332 {offsets = [0, 64], sizes = [2, 32], strides = [1, 1]} : vector<2x128xf32> to vector<2x32xf32>
    %336 = vector.extract_strided_slice %332 {offsets = [0, 96], sizes = [2, 32], strides = [1, 1]} : vector<2x128xf32> to vector<2x32xf32>
    %337 = arith.mulf %334, %295 : vector<2x32xf32>
    %338 = arith.mulf %333, %335 : vector<2x32xf32>
    %339 = arith.addf %337, %338 : vector<2x32xf32>
    %340 = math.tanh %339 : vector<2x32xf32>
    %341 = arith.mulf %336, %340 : vector<2x32xf32>
    %342 = tpu.concatenate %341, %318 in 1 : vector<2x32xf32>, vector<2x32xf32> -> vector<2x64xf32>
    %cst_59 = arith.constant dense<0.000000e+00> : vector<2x128xf32>
    %343 = tpu.matmul %342, %46, %cst_59 {dimension_numbers = #tpu.dot_dimension_numbers<[1], [0], [0], [1], [0, 0, 1, 1], [], []>} : vector<2x64xf32>, vector<64x128xf32>, vector<2x128xf32> -> vector<2x128xf32>
    %344 = vector.broadcast %50 : vector<1x128xf32> to vector<2x128xf32>
    %345 = arith.addf %343, %344 : vector<2x128xf32>
    %346 = arith.mulf %345, %16 : vector<2x128xf32>
    %347 = arith.negf %346 : vector<2x128xf32>
    %348 = math.exp %347 : vector<2x128xf32>
    %cst_60 = arith.constant 1.000000e+00 : f32
    %349 = vector.broadcast %cst_60 : f32 to vector<2x128xf32>
    %350 = arith.addf %349, %348 : vector<2x128xf32>
    %351 = arith.divf %349, %350 : vector<2x128xf32>
    %352 = arith.mulf %351, %16 : vector<2x128xf32>
    %353 = arith.addf %352, %19 : vector<2x128xf32>
    %354 = vector.extract_strided_slice %353 {offsets = [0, 0], sizes = [2, 32], strides = [1, 1]} : vector<2x128xf32> to vector<2x32xf32>
    %355 = vector.extract_strided_slice %353 {offsets = [0, 32], sizes = [2, 32], strides = [1, 1]} : vector<2x128xf32> to vector<2x32xf32>
    %356 = vector.extract_strided_slice %353 {offsets = [0, 64], sizes = [2, 32], strides = [1, 1]} : vector<2x128xf32> to vector<2x32xf32>
    %357 = vector.extract_strided_slice %353 {offsets = [0, 96], sizes = [2, 32], strides = [1, 1]} : vector<2x128xf32> to vector<2x32xf32>
    %358 = arith.mulf %355, %316 : vector<2x32xf32>
    %359 = arith.mulf %354, %356 : vector<2x32xf32>
    %360 = arith.addf %358, %359 : vector<2x32xf32>
    %361 = math.tanh %360 : vector<2x32xf32>
    %362 = arith.mulf %357, %361 : vector<2x32xf32>
    %363 = vector.extract_strided_slice %42 {offsets = [0, 7, 0], sizes = [2, 1, 32], strides = [1, 1, 1]} : vector<2x8x32xf32> to vector<2x1x32xf32>
    %364 = vector.shape_cast %363 : vector<2x1x32xf32> to vector<2x32xf32>
    %365 = tpu.concatenate %364, %341 in 1 : vector<2x32xf32>, vector<2x32xf32> -> vector<2x64xf32>
    %cst_61 = arith.constant dense<0.000000e+00> : vector<2x128xf32>
    %366 = tpu.matmul %365, %44, %cst_61 {dimension_numbers = #tpu.dot_dimension_numbers<[1], [0], [0], [1], [0, 0, 1, 1], [], []>} : vector<2x64xf32>, vector<64x128xf32>, vector<2x128xf32> -> vector<2x128xf32>
    %367 = vector.broadcast %48 : vector<1x128xf32> to vector<2x128xf32>
    %368 = arith.addf %366, %367 : vector<2x128xf32>
    %369 = arith.mulf %368, %16 : vector<2x128xf32>
    %370 = arith.negf %369 : vector<2x128xf32>
    %371 = math.exp %370 : vector<2x128xf32>
    %cst_62 = arith.constant 1.000000e+00 : f32
    %372 = vector.broadcast %cst_62 : f32 to vector<2x128xf32>
    %373 = arith.addf %372, %371 : vector<2x128xf32>
    %374 = arith.divf %372, %373 : vector<2x128xf32>
    %375 = arith.mulf %374, %16 : vector<2x128xf32>
    %376 = arith.addf %375, %19 : vector<2x128xf32>
    %377 = vector.extract_strided_slice %376 {offsets = [0, 0], sizes = [2, 32], strides = [1, 1]} : vector<2x128xf32> to vector<2x32xf32>
    %378 = vector.extract_strided_slice %376 {offsets = [0, 32], sizes = [2, 32], strides = [1, 1]} : vector<2x128xf32> to vector<2x32xf32>
    %379 = vector.extract_strided_slice %376 {offsets = [0, 64], sizes = [2, 32], strides = [1, 1]} : vector<2x128xf32> to vector<2x32xf32>
    %380 = vector.extract_strided_slice %376 {offsets = [0, 96], sizes = [2, 32], strides = [1, 1]} : vector<2x128xf32> to vector<2x32xf32>
    %381 = arith.mulf %378, %339 : vector<2x32xf32>
    %382 = arith.mulf %377, %379 : vector<2x32xf32>
    %383 = arith.addf %381, %382 : vector<2x32xf32>
    %384 = math.tanh %383 : vector<2x32xf32>
    %385 = arith.mulf %380, %384 : vector<2x32xf32>
    %386 = tpu.concatenate %385, %362 in 1 : vector<2x32xf32>, vector<2x32xf32> -> vector<2x64xf32>
    %cst_63 = arith.constant dense<0.000000e+00> : vector<2x128xf32>
    %387 = tpu.matmul %386, %46, %cst_63 {dimension_numbers = #tpu.dot_dimension_numbers<[1], [0], [0], [1], [0, 0, 1, 1], [], []>} : vector<2x64xf32>, vector<64x128xf32>, vector<2x128xf32> -> vector<2x128xf32>
    %388 = vector.broadcast %50 : vector<1x128xf32> to vector<2x128xf32>
    %389 = arith.addf %387, %388 : vector<2x128xf32>
    %390 = arith.mulf %389, %16 : vector<2x128xf32>
    %391 = arith.negf %390 : vector<2x128xf32>
    %392 = math.exp %391 : vector<2x128xf32>
    %cst_64 = arith.constant 1.000000e+00 : f32
    %393 = vector.broadcast %cst_64 : f32 to vector<2x128xf32>
    %394 = arith.addf %393, %392 : vector<2x128xf32>
    %395 = arith.divf %393, %394 : vector<2x128xf32>
    %396 = arith.mulf %395, %16 : vector<2x128xf32>
    %397 = arith.addf %396, %19 : vector<2x128xf32>
    %398 = vector.extract_strided_slice %397 {offsets = [0, 0], sizes = [2, 32], strides = [1, 1]} : vector<2x128xf32> to vector<2x32xf32>
    %399 = vector.extract_strided_slice %397 {offsets = [0, 32], sizes = [2, 32], strides = [1, 1]} : vector<2x128xf32> to vector<2x32xf32>
    %400 = vector.extract_strided_slice %397 {offsets = [0, 64], sizes = [2, 32], strides = [1, 1]} : vector<2x128xf32> to vector<2x32xf32>
    %401 = vector.extract_strided_slice %397 {offsets = [0, 96], sizes = [2, 32], strides = [1, 1]} : vector<2x128xf32> to vector<2x32xf32>
    %402 = arith.mulf %399, %360 : vector<2x32xf32>
    %403 = arith.mulf %398, %400 : vector<2x32xf32>
    %404 = arith.addf %402, %403 : vector<2x32xf32>
    %405 = math.tanh %404 : vector<2x32xf32>
    %406 = arith.mulf %401, %405 : vector<2x32xf32>
    %c0_65 = arith.constant 0 : index
    %c0_66 = arith.constant 0 : index
    %c0_67 = arith.constant 0 : index
    %407 = vector.load %arg10[%c0_65, %c0_66, %c0_67] : memref<2x64x128xf32, #tpu.memory_space<vmem>>, vector<1x64x128xf32>
    %408 = vector.shape_cast %407 : vector<1x64x128xf32> to vector<64x128xf32>
    %c1_68 = arith.constant 1 : index
    %c0_69 = arith.constant 0 : index
    %c0_70 = arith.constant 0 : index
    %409 = vector.load %arg10[%c1_68, %c0_69, %c0_70] : memref<2x64x128xf32, #tpu.memory_space<vmem>>, vector<1x64x128xf32>
    %410 = vector.shape_cast %409 : vector<1x64x128xf32> to vector<64x128xf32>
    %c0_71 = arith.constant 0 : index
    %c0_72 = arith.constant 0 : index
    %c0_73 = arith.constant 0 : index
    %411 = vector.load %arg11[%c0_71, %c0_72, %c0_73] : memref<2x1x128xf32, #tpu.memory_space<vmem>>, vector<1x1x128xf32>
    %412 = vector.shape_cast %411 : vector<1x1x128xf32> to vector<1x128xf32>
    %c1_74 = arith.constant 1 : index
    %c0_75 = arith.constant 0 : index
    %c0_76 = arith.constant 0 : index
    %413 = vector.load %arg11[%c1_74, %c0_75, %c0_76] : memref<2x1x128xf32, #tpu.memory_space<vmem>>, vector<1x1x128xf32>
    %414 = vector.shape_cast %413 : vector<1x1x128xf32> to vector<1x128xf32>
    %c0_77 = arith.constant 0 : index
    %c0_78 = arith.constant 0 : index
    %415 = vector.load %arg14[%c0_77, %c0_78] : memref<16x32xf32, #tpu.memory_space<vmem>>, vector<2x32xf32>
    tpu.vector_store %arg14[%c0_77, %c0_78], %406 {strides = array<i32>} : memref<16x32xf32, #tpu.memory_space<vmem>>, vector<2x32xf32>,
    %416 = tpu.concatenate %406, %385 in 1 : vector<2x32xf32>, vector<2x32xf32> -> vector<2x64xf32>
    %cst_79 = arith.constant dense<0.000000e+00> : vector<2x128xf32>
    %417 = tpu.matmul %416, %408, %cst_79 {dimension_numbers = #tpu.dot_dimension_numbers<[1], [0], [0], [1], [0, 0, 1, 1], [], []>} : vector<2x64xf32>, vector<64x128xf32>, vector<2x128xf32> -> vector<2x128xf32>
    %418 = vector.broadcast %412 : vector<1x128xf32> to vector<2x128xf32>
    %419 = arith.addf %417, %418 : vector<2x128xf32>
    %420 = arith.mulf %419, %16 : vector<2x128xf32>
    %421 = arith.negf %420 : vector<2x128xf32>
    %422 = math.exp %421 : vector<2x128xf32>
    %cst_80 = arith.constant 1.000000e+00 : f32
    %423 = vector.broadcast %cst_80 : f32 to vector<2x128xf32>
    %424 = arith.addf %423, %422 : vector<2x128xf32>
    %425 = arith.divf %423, %424 : vector<2x128xf32>
    %426 = arith.mulf %425, %16 : vector<2x128xf32>
    %427 = arith.addf %426, %19 : vector<2x128xf32>
    %428 = vector.extract_strided_slice %427 {offsets = [0, 0], sizes = [2, 32], strides = [1, 1]} : vector<2x128xf32> to vector<2x32xf32>
    %429 = vector.extract_strided_slice %427 {offsets = [0, 32], sizes = [2, 32], strides = [1, 1]} : vector<2x128xf32> to vector<2x32xf32>
    %430 = vector.extract_strided_slice %427 {offsets = [0, 64], sizes = [2, 32], strides = [1, 1]} : vector<2x128xf32> to vector<2x32xf32>
    %431 = vector.extract_strided_slice %427 {offsets = [0, 96], sizes = [2, 32], strides = [1, 1]} : vector<2x128xf32> to vector<2x32xf32>
    %432 = arith.mulf %429, %383 : vector<2x32xf32>
    %433 = arith.mulf %428, %430 : vector<2x32xf32>
    %434 = arith.addf %432, %433 : vector<2x32xf32>
    %435 = math.tanh %434 : vector<2x32xf32>
    %436 = arith.mulf %431, %435 : vector<2x32xf32>
    %437 = tpu.concatenate %436, %406 in 1 : vector<2x32xf32>, vector<2x32xf32> -> vector<2x64xf32>
    %cst_81 = arith.constant dense<0.000000e+00> : vector<2x128xf32>
    %438 = tpu.matmul %437, %410, %cst_81 {dimension_numbers = #tpu.dot_dimension_numbers<[1], [0], [0], [1], [0, 0, 1, 1], [], []>} : vector<2x64xf32>, vector<64x128xf32>, vector<2x128xf32> -> vector<2x128xf32>
    %439 = vector.broadcast %414 : vector<1x128xf32> to vector<2x128xf32>
    %440 = arith.addf %438, %439 : vector<2x128xf32>
    %441 = arith.mulf %440, %16 : vector<2x128xf32>
    %442 = arith.negf %441 : vector<2x128xf32>
    %443 = math.exp %442 : vector<2x128xf32>
    %cst_82 = arith.constant 1.000000e+00 : f32
    %444 = vector.broadcast %cst_82 : f32 to vector<2x128xf32>
    %445 = arith.addf %444, %443 : vector<2x128xf32>
    %446 = arith.divf %444, %445 : vector<2x128xf32>
    %447 = arith.mulf %446, %16 : vector<2x128xf32>
    %448 = arith.addf %447, %19 : vector<2x128xf32>
    %449 = vector.extract_strided_slice %448 {offsets = [0, 0], sizes = [2, 32], strides = [1, 1]} : vector<2x128xf32> to vector<2x32xf32>
    %450 = vector.extract_strided_slice %448 {offsets = [0, 32], sizes = [2, 32], strides = [1, 1]} : vector<2x128xf32> to vector<2x32xf32>
    %451 = vector.extract_strided_slice %448 {offsets = [0, 64], sizes = [2, 32], strides = [1, 1]} : vector<2x128xf32> to vector<2x32xf32>
    %452 = vector.extract_strided_slice %448 {offsets = [0, 96], sizes = [2, 32], strides = [1, 1]} : vector<2x128xf32> to vector<2x32xf32>
    %453 = arith.mulf %450, %404 : vector<2x32xf32>
    %454 = arith.mulf %449, %451 : vector<2x32xf32>
    %455 = arith.addf %453, %454 : vector<2x32xf32>
    %456 = math.tanh %455 : vector<2x32xf32>
    %457 = arith.mulf %452, %456 : vector<2x32xf32>
    %c2 = arith.constant 2 : index
    %c0_83 = arith.constant 0 : index
    %458 = vector.load %arg14[%c2, %c0_83] : memref<16x32xf32, #tpu.memory_space<vmem>>, vector<2x32xf32>
    tpu.vector_store %arg14[%c2, %c0_83], %457 {strides = array<i32>} : memref<16x32xf32, #tpu.memory_space<vmem>>, vector<2x32xf32>,
    %459 = tpu.concatenate %457, %436 in 1 : vector<2x32xf32>, vector<2x32xf32> -> vector<2x64xf32>
    %cst_84 = arith.constant dense<0.000000e+00> : vector<2x128xf32>
    %460 = tpu.matmul %459, %408, %cst_84 {dimension_numbers = #tpu.dot_dimension_numbers<[1], [0], [0], [1], [0, 0, 1, 1], [], []>} : vector<2x64xf32>, vector<64x128xf32>, vector<2x128xf32> -> vector<2x128xf32>
    %461 = vector.broadcast %412 : vector<1x128xf32> to vector<2x128xf32>
    %462 = arith.addf %460, %461 : vector<2x128xf32>
    %463 = arith.mulf %462, %16 : vector<2x128xf32>
    %464 = arith.negf %463 : vector<2x128xf32>
    %465 = math.exp %464 : vector<2x128xf32>
    %cst_85 = arith.constant 1.000000e+00 : f32
    %466 = vector.broadcast %cst_85 : f32 to vector<2x128xf32>
    %467 = arith.addf %466, %465 : vector<2x128xf32>
    %468 = arith.divf %466, %467 : vector<2x128xf32>
    %469 = arith.mulf %468, %16 : vector<2x128xf32>
    %470 = arith.addf %469, %19 : vector<2x128xf32>
    %471 = vector.extract_strided_slice %470 {offsets = [0, 0], sizes = [2, 32], strides = [1, 1]} : vector<2x128xf32> to vector<2x32xf32>
    %472 = vector.extract_strided_slice %470 {offsets = [0, 32], sizes = [2, 32], strides = [1, 1]} : vector<2x128xf32> to vector<2x32xf32>
    %473 = vector.extract_strided_slice %470 {offsets = [0, 64], sizes = [2, 32], strides = [1, 1]} : vector<2x128xf32> to vector<2x32xf32>
    %474 = vector.extract_strided_slice %470 {offsets = [0, 96], sizes = [2, 32], strides = [1, 1]} : vector<2x128xf32> to vector<2x32xf32>
    %475 = arith.mulf %472, %434 : vector<2x32xf32>
    %476 = arith.mulf %471, %473 : vector<2x32xf32>
    %477 = arith.addf %475, %476 : vector<2x32xf32>
    %478 = math.tanh %477 : vector<2x32xf32>
    %479 = arith.mulf %474, %478 : vector<2x32xf32>
    %480 = tpu.concatenate %479, %457 in 1 : vector<2x32xf32>, vector<2x32xf32> -> vector<2x64xf32>
    %cst_86 = arith.constant dense<0.000000e+00> : vector<2x128xf32>
    %481 = tpu.matmul %480, %410, %cst_86 {dimension_numbers = #tpu.dot_dimension_numbers<[1], [0], [0], [1], [0, 0, 1, 1], [], []>} : vector<2x64xf32>, vector<64x128xf32>, vector<2x128xf32> -> vector<2x128xf32>
    %482 = vector.broadcast %414 : vector<1x128xf32> to vector<2x128xf32>
    %483 = arith.addf %481, %482 : vector<2x128xf32>
    %484 = arith.mulf %483, %16 : vector<2x128xf32>
    %485 = arith.negf %484 : vector<2x128xf32>
    %486 = math.exp %485 : vector<2x128xf32>
    %cst_87 = arith.constant 1.000000e+00 : f32
    %487 = vector.broadcast %cst_87 : f32 to vector<2x128xf32>
    %488 = arith.addf %487, %486 : vector<2x128xf32>
    %489 = arith.divf %487, %488 : vector<2x128xf32>
    %490 = arith.mulf %489, %16 : vector<2x128xf32>
    %491 = arith.addf %490, %19 : vector<2x128xf32>
    %492 = vector.extract_strided_slice %491 {offsets = [0, 0], sizes = [2, 32], strides = [1, 1]} : vector<2x128xf32> to vector<2x32xf32>
    %493 = vector.extract_strided_slice %491 {offsets = [0, 32], sizes = [2, 32], strides = [1, 1]} : vector<2x128xf32> to vector<2x32xf32>
    %494 = vector.extract_strided_slice %491 {offsets = [0, 64], sizes = [2, 32], strides = [1, 1]} : vector<2x128xf32> to vector<2x32xf32>
    %495 = vector.extract_strided_slice %491 {offsets = [0, 96], sizes = [2, 32], strides = [1, 1]} : vector<2x128xf32> to vector<2x32xf32>
    %496 = arith.mulf %493, %455 : vector<2x32xf32>
    %497 = arith.mulf %492, %494 : vector<2x32xf32>
    %498 = arith.addf %496, %497 : vector<2x32xf32>
    %499 = math.tanh %498 : vector<2x32xf32>
    %500 = arith.mulf %495, %499 : vector<2x32xf32>
    %c4 = arith.constant 4 : index
    %c0_88 = arith.constant 0 : index
    %501 = vector.load %arg14[%c4, %c0_88] : memref<16x32xf32, #tpu.memory_space<vmem>>, vector<2x32xf32>
    tpu.vector_store %arg14[%c4, %c0_88], %500 {strides = array<i32>} : memref<16x32xf32, #tpu.memory_space<vmem>>, vector<2x32xf32>,
    %502 = tpu.concatenate %500, %479 in 1 : vector<2x32xf32>, vector<2x32xf32> -> vector<2x64xf32>
    %cst_89 = arith.constant dense<0.000000e+00> : vector<2x128xf32>
    %503 = tpu.matmul %502, %408, %cst_89 {dimension_numbers = #tpu.dot_dimension_numbers<[1], [0], [0], [1], [0, 0, 1, 1], [], []>} : vector<2x64xf32>, vector<64x128xf32>, vector<2x128xf32> -> vector<2x128xf32>
    %504 = vector.broadcast %412 : vector<1x128xf32> to vector<2x128xf32>
    %505 = arith.addf %503, %504 : vector<2x128xf32>
    %506 = arith.mulf %505, %16 : vector<2x128xf32>
    %507 = arith.negf %506 : vector<2x128xf32>
    %508 = math.exp %507 : vector<2x128xf32>
    %cst_90 = arith.constant 1.000000e+00 : f32
    %509 = vector.broadcast %cst_90 : f32 to vector<2x128xf32>
    %510 = arith.addf %509, %508 : vector<2x128xf32>
    %511 = arith.divf %509, %510 : vector<2x128xf32>
    %512 = arith.mulf %511, %16 : vector<2x128xf32>
    %513 = arith.addf %512, %19 : vector<2x128xf32>
    %514 = vector.extract_strided_slice %513 {offsets = [0, 0], sizes = [2, 32], strides = [1, 1]} : vector<2x128xf32> to vector<2x32xf32>
    %515 = vector.extract_strided_slice %513 {offsets = [0, 32], sizes = [2, 32], strides = [1, 1]} : vector<2x128xf32> to vector<2x32xf32>
    %516 = vector.extract_strided_slice %513 {offsets = [0, 64], sizes = [2, 32], strides = [1, 1]} : vector<2x128xf32> to vector<2x32xf32>
    %517 = vector.extract_strided_slice %513 {offsets = [0, 96], sizes = [2, 32], strides = [1, 1]} : vector<2x128xf32> to vector<2x32xf32>
    %518 = arith.mulf %515, %477 : vector<2x32xf32>
    %519 = arith.mulf %514, %516 : vector<2x32xf32>
    %520 = arith.addf %518, %519 : vector<2x32xf32>
    %521 = math.tanh %520 : vector<2x32xf32>
    %522 = arith.mulf %517, %521 : vector<2x32xf32>
    %523 = tpu.concatenate %522, %500 in 1 : vector<2x32xf32>, vector<2x32xf32> -> vector<2x64xf32>
    %cst_91 = arith.constant dense<0.000000e+00> : vector<2x128xf32>
    %524 = tpu.matmul %523, %410, %cst_91 {dimension_numbers = #tpu.dot_dimension_numbers<[1], [0], [0], [1], [0, 0, 1, 1], [], []>} : vector<2x64xf32>, vector<64x128xf32>, vector<2x128xf32> -> vector<2x128xf32>
    %525 = vector.broadcast %414 : vector<1x128xf32> to vector<2x128xf32>
    %526 = arith.addf %524, %525 : vector<2x128xf32>
    %527 = arith.mulf %526, %16 : vector<2x128xf32>
    %528 = arith.negf %527 : vector<2x128xf32>
    %529 = math.exp %528 : vector<2x128xf32>
    %cst_92 = arith.constant 1.000000e+00 : f32
    %530 = vector.broadcast %cst_92 : f32 to vector<2x128xf32>
    %531 = arith.addf %530, %529 : vector<2x128xf32>
    %532 = arith.divf %530, %531 : vector<2x128xf32>
    %533 = arith.mulf %532, %16 : vector<2x128xf32>
    %534 = arith.addf %533, %19 : vector<2x128xf32>
    %535 = vector.extract_strided_slice %534 {offsets = [0, 0], sizes = [2, 32], strides = [1, 1]} : vector<2x128xf32> to vector<2x32xf32>
    %536 = vector.extract_strided_slice %534 {offsets = [0, 32], sizes = [2, 32], strides = [1, 1]} : vector<2x128xf32> to vector<2x32xf32>
    %537 = vector.extract_strided_slice %534 {offsets = [0, 64], sizes = [2, 32], strides = [1, 1]} : vector<2x128xf32> to vector<2x32xf32>
    %538 = vector.extract_strided_slice %534 {offsets = [0, 96], sizes = [2, 32], strides = [1, 1]} : vector<2x128xf32> to vector<2x32xf32>
    %539 = arith.mulf %536, %498 : vector<2x32xf32>
    %540 = arith.mulf %535, %537 : vector<2x32xf32>
    %541 = arith.addf %539, %540 : vector<2x32xf32>
    %542 = math.tanh %541 : vector<2x32xf32>
    %543 = arith.mulf %538, %542 : vector<2x32xf32>
    %c6 = arith.constant 6 : index
    %c0_93 = arith.constant 0 : index
    %544 = vector.load %arg14[%c6, %c0_93] : memref<16x32xf32, #tpu.memory_space<vmem>>, vector<2x32xf32>
    tpu.vector_store %arg14[%c6, %c0_93], %543 {strides = array<i32>} : memref<16x32xf32, #tpu.memory_space<vmem>>, vector<2x32xf32>,
    %545 = tpu.concatenate %543, %522 in 1 : vector<2x32xf32>, vector<2x32xf32> -> vector<2x64xf32>
    %cst_94 = arith.constant dense<0.000000e+00> : vector<2x128xf32>
    %546 = tpu.matmul %545, %408, %cst_94 {dimension_numbers = #tpu.dot_dimension_numbers<[1], [0], [0], [1], [0, 0, 1, 1], [], []>} : vector<2x64xf32>, vector<64x128xf32>, vector<2x128xf32> -> vector<2x128xf32>
    %547 = vector.broadcast %412 : vector<1x128xf32> to vector<2x128xf32>
    %548 = arith.addf %546, %547 : vector<2x128xf32>
    %549 = arith.mulf %548, %16 : vector<2x128xf32>
    %550 = arith.negf %549 : vector<2x128xf32>
    %551 = math.exp %550 : vector<2x128xf32>
    %cst_95 = arith.constant 1.000000e+00 : f32
    %552 = vector.broadcast %cst_95 : f32 to vector<2x128xf32>
    %553 = arith.addf %552, %551 : vector<2x128xf32>
    %554 = arith.divf %552, %553 : vector<2x128xf32>
    %555 = arith.mulf %554, %16 : vector<2x128xf32>
    %556 = arith.addf %555, %19 : vector<2x128xf32>
    %557 = vector.extract_strided_slice %556 {offsets = [0, 0], sizes = [2, 32], strides = [1, 1]} : vector<2x128xf32> to vector<2x32xf32>
    %558 = vector.extract_strided_slice %556 {offsets = [0, 32], sizes = [2, 32], strides = [1, 1]} : vector<2x128xf32> to vector<2x32xf32>
    %559 = vector.extract_strided_slice %556 {offsets = [0, 64], sizes = [2, 32], strides = [1, 1]} : vector<2x128xf32> to vector<2x32xf32>
    %560 = vector.extract_strided_slice %556 {offsets = [0, 96], sizes = [2, 32], strides = [1, 1]} : vector<2x128xf32> to vector<2x32xf32>
    %561 = arith.mulf %558, %520 : vector<2x32xf32>
    %562 = arith.mulf %557, %559 : vector<2x32xf32>
    %563 = arith.addf %561, %562 : vector<2x32xf32>
    %564 = math.tanh %563 : vector<2x32xf32>
    %565 = arith.mulf %560, %564 : vector<2x32xf32>
    %566 = tpu.concatenate %565, %543 in 1 : vector<2x32xf32>, vector<2x32xf32> -> vector<2x64xf32>
    %cst_96 = arith.constant dense<0.000000e+00> : vector<2x128xf32>
    %567 = tpu.matmul %566, %410, %cst_96 {dimension_numbers = #tpu.dot_dimension_numbers<[1], [0], [0], [1], [0, 0, 1, 1], [], []>} : vector<2x64xf32>, vector<64x128xf32>, vector<2x128xf32> -> vector<2x128xf32>
    %568 = vector.broadcast %414 : vector<1x128xf32> to vector<2x128xf32>
    %569 = arith.addf %567, %568 : vector<2x128xf32>
    %570 = arith.mulf %569, %16 : vector<2x128xf32>
    %571 = arith.negf %570 : vector<2x128xf32>
    %572 = math.exp %571 : vector<2x128xf32>
    %cst_97 = arith.constant 1.000000e+00 : f32
    %573 = vector.broadcast %cst_97 : f32 to vector<2x128xf32>
    %574 = arith.addf %573, %572 : vector<2x128xf32>
    %575 = arith.divf %573, %574 : vector<2x128xf32>
    %576 = arith.mulf %575, %16 : vector<2x128xf32>
    %577 = arith.addf %576, %19 : vector<2x128xf32>
    %578 = vector.extract_strided_slice %577 {offsets = [0, 0], sizes = [2, 32], strides = [1, 1]} : vector<2x128xf32> to vector<2x32xf32>
    %579 = vector.extract_strided_slice %577 {offsets = [0, 32], sizes = [2, 32], strides = [1, 1]} : vector<2x128xf32> to vector<2x32xf32>
    %580 = vector.extract_strided_slice %577 {offsets = [0, 64], sizes = [2, 32], strides = [1, 1]} : vector<2x128xf32> to vector<2x32xf32>
    %581 = vector.extract_strided_slice %577 {offsets = [0, 96], sizes = [2, 32], strides = [1, 1]} : vector<2x128xf32> to vector<2x32xf32>
    %582 = arith.mulf %579, %541 : vector<2x32xf32>
    %583 = arith.mulf %578, %580 : vector<2x32xf32>
    %584 = arith.addf %582, %583 : vector<2x32xf32>
    %585 = math.tanh %584 : vector<2x32xf32>
    %586 = arith.mulf %581, %585 : vector<2x32xf32>
    %c8 = arith.constant 8 : index
    %c0_98 = arith.constant 0 : index
    %587 = vector.load %arg14[%c8, %c0_98] : memref<16x32xf32, #tpu.memory_space<vmem>>, vector<2x32xf32>
    tpu.vector_store %arg14[%c8, %c0_98], %586 {strides = array<i32>} : memref<16x32xf32, #tpu.memory_space<vmem>>, vector<2x32xf32>,
    %588 = tpu.concatenate %586, %565 in 1 : vector<2x32xf32>, vector<2x32xf32> -> vector<2x64xf32>
    %cst_99 = arith.constant dense<0.000000e+00> : vector<2x128xf32>
    %589 = tpu.matmul %588, %408, %cst_99 {dimension_numbers = #tpu.dot_dimension_numbers<[1], [0], [0], [1], [0, 0, 1, 1], [], []>} : vector<2x64xf32>, vector<64x128xf32>, vector<2x128xf32> -> vector<2x128xf32>
    %590 = vector.broadcast %412 : vector<1x128xf32> to vector<2x128xf32>
    %591 = arith.addf %589, %590 : vector<2x128xf32>
    %592 = arith.mulf %591, %16 : vector<2x128xf32>
    %593 = arith.negf %592 : vector<2x128xf32>
    %594 = math.exp %593 : vector<2x128xf32>
    %cst_100 = arith.constant 1.000000e+00 : f32
    %595 = vector.broadcast %cst_100 : f32 to vector<2x128xf32>
    %596 = arith.addf %595, %594 : vector<2x128xf32>
    %597 = arith.divf %595, %596 : vector<2x128xf32>
    %598 = arith.mulf %597, %16 : vector<2x128xf32>
    %599 = arith.addf %598, %19 : vector<2x128xf32>
    %600 = vector.extract_strided_slice %599 {offsets = [0, 0], sizes = [2, 32], strides = [1, 1]} : vector<2x128xf32> to vector<2x32xf32>
    %601 = vector.extract_strided_slice %599 {offsets = [0, 32], sizes = [2, 32], strides = [1, 1]} : vector<2x128xf32> to vector<2x32xf32>
    %602 = vector.extract_strided_slice %599 {offsets = [0, 64], sizes = [2, 32], strides = [1, 1]} : vector<2x128xf32> to vector<2x32xf32>
    %603 = vector.extract_strided_slice %599 {offsets = [0, 96], sizes = [2, 32], strides = [1, 1]} : vector<2x128xf32> to vector<2x32xf32>
    %604 = arith.mulf %601, %563 : vector<2x32xf32>
    %605 = arith.mulf %600, %602 : vector<2x32xf32>
    %606 = arith.addf %604, %605 : vector<2x32xf32>
    %607 = math.tanh %606 : vector<2x32xf32>
    %608 = arith.mulf %603, %607 : vector<2x32xf32>
    %609 = tpu.concatenate %608, %586 in 1 : vector<2x32xf32>, vector<2x32xf32> -> vector<2x64xf32>
    %cst_101 = arith.constant dense<0.000000e+00> : vector<2x128xf32>
    %610 = tpu.matmul %609, %410, %cst_101 {dimension_numbers = #tpu.dot_dimension_numbers<[1], [0], [0], [1], [0, 0, 1, 1], [], []>} : vector<2x64xf32>, vector<64x128xf32>, vector<2x128xf32> -> vector<2x128xf32>
    %611 = vector.broadcast %414 : vector<1x128xf32> to vector<2x128xf32>
    %612 = arith.addf %610, %611 : vector<2x128xf32>
    %613 = arith.mulf %612, %16 : vector<2x128xf32>
    %614 = arith.negf %613 : vector<2x128xf32>
    %615 = math.exp %614 : vector<2x128xf32>
    %cst_102 = arith.constant 1.000000e+00 : f32
    %616 = vector.broadcast %cst_102 : f32 to vector<2x128xf32>
    %617 = arith.addf %616, %615 : vector<2x128xf32>
    %618 = arith.divf %616, %617 : vector<2x128xf32>
    %619 = arith.mulf %618, %16 : vector<2x128xf32>
    %620 = arith.addf %619, %19 : vector<2x128xf32>
    %621 = vector.extract_strided_slice %620 {offsets = [0, 0], sizes = [2, 32], strides = [1, 1]} : vector<2x128xf32> to vector<2x32xf32>
    %622 = vector.extract_strided_slice %620 {offsets = [0, 32], sizes = [2, 32], strides = [1, 1]} : vector<2x128xf32> to vector<2x32xf32>
    %623 = vector.extract_strided_slice %620 {offsets = [0, 64], sizes = [2, 32], strides = [1, 1]} : vector<2x128xf32> to vector<2x32xf32>
    %624 = vector.extract_strided_slice %620 {offsets = [0, 96], sizes = [2, 32], strides = [1, 1]} : vector<2x128xf32> to vector<2x32xf32>
    %625 = arith.mulf %622, %584 : vector<2x32xf32>
    %626 = arith.mulf %621, %623 : vector<2x32xf32>
    %627 = arith.addf %625, %626 : vector<2x32xf32>
    %628 = math.tanh %627 : vector<2x32xf32>
    %629 = arith.mulf %624, %628 : vector<2x32xf32>
    %c10 = arith.constant 10 : index
    %c0_103 = arith.constant 0 : index
    %630 = vector.load %arg14[%c10, %c0_103] : memref<16x32xf32, #tpu.memory_space<vmem>>, vector<2x32xf32>
    tpu.vector_store %arg14[%c10, %c0_103], %629 {strides = array<i32>} : memref<16x32xf32, #tpu.memory_space<vmem>>, vector<2x32xf32>,
    %631 = tpu.concatenate %629, %608 in 1 : vector<2x32xf32>, vector<2x32xf32> -> vector<2x64xf32>
    %cst_104 = arith.constant dense<0.000000e+00> : vector<2x128xf32>
    %632 = tpu.matmul %631, %408, %cst_104 {dimension_numbers = #tpu.dot_dimension_numbers<[1], [0], [0], [1], [0, 0, 1, 1], [], []>} : vector<2x64xf32>, vector<64x128xf32>, vector<2x128xf32> -> vector<2x128xf32>
    %633 = vector.broadcast %412 : vector<1x128xf32> to vector<2x128xf32>
    %634 = arith.addf %632, %633 : vector<2x128xf32>
    %635 = arith.mulf %634, %16 : vector<2x128xf32>
    %636 = arith.negf %635 : vector<2x128xf32>
    %637 = math.exp %636 : vector<2x128xf32>
    %cst_105 = arith.constant 1.000000e+00 : f32
    %638 = vector.broadcast %cst_105 : f32 to vector<2x128xf32>
    %639 = arith.addf %638, %637 : vector<2x128xf32>
    %640 = arith.divf %638, %639 : vector<2x128xf32>
    %641 = arith.mulf %640, %16 : vector<2x128xf32>
    %642 = arith.addf %641, %19 : vector<2x128xf32>
    %643 = vector.extract_strided_slice %642 {offsets = [0, 0], sizes = [2, 32], strides = [1, 1]} : vector<2x128xf32> to vector<2x32xf32>
    %644 = vector.extract_strided_slice %642 {offsets = [0, 32], sizes = [2, 32], strides = [1, 1]} : vector<2x128xf32> to vector<2x32xf32>
    %645 = vector.extract_strided_slice %642 {offsets = [0, 64], sizes = [2, 32], strides = [1, 1]} : vector<2x128xf32> to vector<2x32xf32>
    %646 = vector.extract_strided_slice %642 {offsets = [0, 96], sizes = [2, 32], strides = [1, 1]} : vector<2x128xf32> to vector<2x32xf32>
    %647 = arith.mulf %644, %606 : vector<2x32xf32>
    %648 = arith.mulf %643, %645 : vector<2x32xf32>
    %649 = arith.addf %647, %648 : vector<2x32xf32>
    %650 = math.tanh %649 : vector<2x32xf32>
    %651 = arith.mulf %646, %650 : vector<2x32xf32>
    %652 = tpu.concatenate %651, %629 in 1 : vector<2x32xf32>, vector<2x32xf32> -> vector<2x64xf32>
    %cst_106 = arith.constant dense<0.000000e+00> : vector<2x128xf32>
    %653 = tpu.matmul %652, %410, %cst_106 {dimension_numbers = #tpu.dot_dimension_numbers<[1], [0], [0], [1], [0, 0, 1, 1], [], []>} : vector<2x64xf32>, vector<64x128xf32>, vector<2x128xf32> -> vector<2x128xf32>
    %654 = vector.broadcast %414 : vector<1x128xf32> to vector<2x128xf32>
    %655 = arith.addf %653, %654 : vector<2x128xf32>
    %656 = arith.mulf %655, %16 : vector<2x128xf32>
    %657 = arith.negf %656 : vector<2x128xf32>
    %658 = math.exp %657 : vector<2x128xf32>
    %cst_107 = arith.constant 1.000000e+00 : f32
    %659 = vector.broadcast %cst_107 : f32 to vector<2x128xf32>
    %660 = arith.addf %659, %658 : vector<2x128xf32>
    %661 = arith.divf %659, %660 : vector<2x128xf32>
    %662 = arith.mulf %661, %16 : vector<2x128xf32>
    %663 = arith.addf %662, %19 : vector<2x128xf32>
    %664 = vector.extract_strided_slice %663 {offsets = [0, 0], sizes = [2, 32], strides = [1, 1]} : vector<2x128xf32> to vector<2x32xf32>
    %665 = vector.extract_strided_slice %663 {offsets = [0, 32], sizes = [2, 32], strides = [1, 1]} : vector<2x128xf32> to vector<2x32xf32>
    %666 = vector.extract_strided_slice %663 {offsets = [0, 64], sizes = [2, 32], strides = [1, 1]} : vector<2x128xf32> to vector<2x32xf32>
    %667 = vector.extract_strided_slice %663 {offsets = [0, 96], sizes = [2, 32], strides = [1, 1]} : vector<2x128xf32> to vector<2x32xf32>
    %668 = arith.mulf %665, %627 : vector<2x32xf32>
    %669 = arith.mulf %664, %666 : vector<2x32xf32>
    %670 = arith.addf %668, %669 : vector<2x32xf32>
    %671 = math.tanh %670 : vector<2x32xf32>
    %672 = arith.mulf %667, %671 : vector<2x32xf32>
    %c12 = arith.constant 12 : index
    %c0_108 = arith.constant 0 : index
    %673 = vector.load %arg14[%c12, %c0_108] : memref<16x32xf32, #tpu.memory_space<vmem>>, vector<2x32xf32>
    tpu.vector_store %arg14[%c12, %c0_108], %672 {strides = array<i32>} : memref<16x32xf32, #tpu.memory_space<vmem>>, vector<2x32xf32>,
    %674 = tpu.concatenate %672, %651 in 1 : vector<2x32xf32>, vector<2x32xf32> -> vector<2x64xf32>
    %cst_109 = arith.constant dense<0.000000e+00> : vector<2x128xf32>
    %675 = tpu.matmul %674, %408, %cst_109 {dimension_numbers = #tpu.dot_dimension_numbers<[1], [0], [0], [1], [0, 0, 1, 1], [], []>} : vector<2x64xf32>, vector<64x128xf32>, vector<2x128xf32> -> vector<2x128xf32>
    %676 = vector.broadcast %412 : vector<1x128xf32> to vector<2x128xf32>
    %677 = arith.addf %675, %676 : vector<2x128xf32>
    %678 = arith.mulf %677, %16 : vector<2x128xf32>
    %679 = arith.negf %678 : vector<2x128xf32>
    %680 = math.exp %679 : vector<2x128xf32>
    %cst_110 = arith.constant 1.000000e+00 : f32
    %681 = vector.broadcast %cst_110 : f32 to vector<2x128xf32>
    %682 = arith.addf %681, %680 : vector<2x128xf32>
    %683 = arith.divf %681, %682 : vector<2x128xf32>
    %684 = arith.mulf %683, %16 : vector<2x128xf32>
    %685 = arith.addf %684, %19 : vector<2x128xf32>
    %686 = vector.extract_strided_slice %685 {offsets = [0, 0], sizes = [2, 32], strides = [1, 1]} : vector<2x128xf32> to vector<2x32xf32>
    %687 = vector.extract_strided_slice %685 {offsets = [0, 32], sizes = [2, 32], strides = [1, 1]} : vector<2x128xf32> to vector<2x32xf32>
    %688 = vector.extract_strided_slice %685 {offsets = [0, 64], sizes = [2, 32], strides = [1, 1]} : vector<2x128xf32> to vector<2x32xf32>
    %689 = vector.extract_strided_slice %685 {offsets = [0, 96], sizes = [2, 32], strides = [1, 1]} : vector<2x128xf32> to vector<2x32xf32>
    %690 = arith.mulf %687, %649 : vector<2x32xf32>
    %691 = arith.mulf %686, %688 : vector<2x32xf32>
    %692 = arith.addf %690, %691 : vector<2x32xf32>
    %693 = math.tanh %692 : vector<2x32xf32>
    %694 = arith.mulf %689, %693 : vector<2x32xf32>
    %695 = tpu.concatenate %694, %672 in 1 : vector<2x32xf32>, vector<2x32xf32> -> vector<2x64xf32>
    %cst_111 = arith.constant dense<0.000000e+00> : vector<2x128xf32>
    %696 = tpu.matmul %695, %410, %cst_111 {dimension_numbers = #tpu.dot_dimension_numbers<[1], [0], [0], [1], [0, 0, 1, 1], [], []>} : vector<2x64xf32>, vector<64x128xf32>, vector<2x128xf32> -> vector<2x128xf32>
    %697 = vector.broadcast %414 : vector<1x128xf32> to vector<2x128xf32>
    %698 = arith.addf %696, %697 : vector<2x128xf32>
    %699 = arith.mulf %698, %16 : vector<2x128xf32>
    %700 = arith.negf %699 : vector<2x128xf32>
    %701 = math.exp %700 : vector<2x128xf32>
    %cst_112 = arith.constant 1.000000e+00 : f32
    %702 = vector.broadcast %cst_112 : f32 to vector<2x128xf32>
    %703 = arith.addf %702, %701 : vector<2x128xf32>
    %704 = arith.divf %702, %703 : vector<2x128xf32>
    %705 = arith.mulf %704, %16 : vector<2x128xf32>
    %706 = arith.addf %705, %19 : vector<2x128xf32>
    %707 = vector.extract_strided_slice %706 {offsets = [0, 0], sizes = [2, 32], strides = [1, 1]} : vector<2x128xf32> to vector<2x32xf32>
    %708 = vector.extract_strided_slice %706 {offsets = [0, 32], sizes = [2, 32], strides = [1, 1]} : vector<2x128xf32> to vector<2x32xf32>
    %709 = vector.extract_strided_slice %706 {offsets = [0, 64], sizes = [2, 32], strides = [1, 1]} : vector<2x128xf32> to vector<2x32xf32>
    %710 = vector.extract_strided_slice %706 {offsets = [0, 96], sizes = [2, 32], strides = [1, 1]} : vector<2x128xf32> to vector<2x32xf32>
    %711 = arith.mulf %708, %670 : vector<2x32xf32>
    %712 = arith.mulf %707, %709 : vector<2x32xf32>
    %713 = arith.addf %711, %712 : vector<2x32xf32>
    %714 = math.tanh %713 : vector<2x32xf32>
    %715 = arith.mulf %710, %714 : vector<2x32xf32>
    %c14 = arith.constant 14 : index
    %c0_113 = arith.constant 0 : index
    %716 = vector.load %arg14[%c14, %c0_113] : memref<16x32xf32, #tpu.memory_space<vmem>>, vector<2x32xf32>
    tpu.vector_store %arg14[%c14, %c0_113], %715 {strides = array<i32>} : memref<16x32xf32, #tpu.memory_space<vmem>>, vector<2x32xf32>,
    %c0_114 = arith.constant 0 : index
    %c0_115 = arith.constant 0 : index
    %717 = vector.load %arg14[%c0_114, %c0_115] : memref<16x32xf32, #tpu.memory_space<vmem>>, vector<16x32xf32>
    %cst_116 = arith.constant dense<0.000000e+00> : vector<16x2xf32>
    %718 = tpu.matmul %717, %6, %cst_116 {dimension_numbers = #tpu.dot_dimension_numbers<[1], [0], [0], [1], [0, 0, 1, 1], [], []>} : vector<16x32xf32>, vector<32x2xf32>, vector<16x2xf32> -> vector<16x2xf32>
    %719 = vector.broadcast %7 : vector<1x2xf32> to vector<16x2xf32>
    %720 = arith.addf %718, %719 : vector<16x2xf32>
    %c0_117 = arith.constant 0 : index
    %c7 = arith.constant 7 : index
    %c0_118 = arith.constant 0 : index
    %721 = vector.load %arg0[%c0_117, %c7, %c0_118] : memref<2x8x2xf32, #tpu.memory_space<vmem>>, vector<2x1x2xf32>
    %722 = vector.shape_cast %721 : vector<2x1x2xf32> to vector<2x2xf32>
    %723 = vector.extract_strided_slice %720 {offsets = [0, 0], sizes = [2, 2], strides = [1, 1]} : vector<16x2xf32> to vector<2x2xf32>
    %c0_119 = arith.constant 0 : index
    %c0_120 = arith.constant 0 : index
    %c0_121 = arith.constant 0 : index
    %724 = vector.load %arg13[%c0_119, %c0_120, %c0_121] : memref<2x8x2xf32, #tpu.memory_space<vmem>>, vector<2x1x2xf32>
    %725 = vector.shape_cast %724 : vector<2x1x2xf32> to vector<2x2xf32>
    %726 = vector.shape_cast %723 : vector<2x2xf32> to vector<2x1x2xf32>
    tpu.vector_store %arg13[%c0_119, %c0_120, %c0_121], %726 {strides = array<i32>} : memref<2x8x2xf32, #tpu.memory_space<vmem>>, vector<2x1x2xf32>,
    %727 = vector.broadcast %1 : vector<1x2xf32> to vector<2x2xf32>
    %728 = arith.mulf %723, %727 : vector<2x2xf32>
    %729 = vector.broadcast %0 : vector<1x2xf32> to vector<2x2xf32>
    %730 = arith.addf %728, %729 : vector<2x2xf32>
    %731 = arith.addf %722, %730 : vector<2x2xf32>
    %c0_122 = arith.constant 0 : index
    %c0_123 = arith.constant 0 : index
    %c0_124 = arith.constant 0 : index
    %732 = vector.load %arg12[%c0_122, %c0_123, %c0_124] : memref<2x8x2xf32, #tpu.memory_space<vmem>>, vector<2x1x2xf32>
    %733 = vector.shape_cast %732 : vector<2x1x2xf32> to vector<2x2xf32>
    %734 = vector.shape_cast %731 : vector<2x2xf32> to vector<2x1x2xf32>
    tpu.vector_store %arg12[%c0_122, %c0_123, %c0_124], %734 {strides = array<i32>} : memref<2x8x2xf32, #tpu.memory_space<vmem>>, vector<2x1x2xf32>,
    %735 = vector.extract_strided_slice %720 {offsets = [2, 0], sizes = [2, 2], strides = [1, 1]} : vector<16x2xf32> to vector<2x2xf32>
    %c0_125 = arith.constant 0 : index
    %c1_126 = arith.constant 1 : index
    %c0_127 = arith.constant 0 : index
    %736 = vector.load %arg13[%c0_125, %c1_126, %c0_127] : memref<2x8x2xf32, #tpu.memory_space<vmem>>, vector<2x1x2xf32>
    %737 = vector.shape_cast %736 : vector<2x1x2xf32> to vector<2x2xf32>
    %738 = vector.shape_cast %735 : vector<2x2xf32> to vector<2x1x2xf32>
    tpu.vector_store %arg13[%c0_125, %c1_126, %c0_127], %738 {strides = array<i32>} : memref<2x8x2xf32, #tpu.memory_space<vmem>>, vector<2x1x2xf32>,
    %739 = vector.broadcast %1 : vector<1x2xf32> to vector<2x2xf32>
    %740 = arith.mulf %735, %739 : vector<2x2xf32>
    %741 = vector.broadcast %0 : vector<1x2xf32> to vector<2x2xf32>
    %742 = arith.addf %740, %741 : vector<2x2xf32>
    %743 = arith.addf %731, %742 : vector<2x2xf32>
    %c0_128 = arith.constant 0 : index
    %c1_129 = arith.constant 1 : index
    %c0_130 = arith.constant 0 : index
    %744 = vector.load %arg12[%c0_128, %c1_129, %c0_130] : memref<2x8x2xf32, #tpu.memory_space<vmem>>, vector<2x1x2xf32>
    %745 = vector.shape_cast %744 : vector<2x1x2xf32> to vector<2x2xf32>
    %746 = vector.shape_cast %743 : vector<2x2xf32> to vector<2x1x2xf32>
    tpu.vector_store %arg12[%c0_128, %c1_129, %c0_130], %746 {strides = array<i32>} : memref<2x8x2xf32, #tpu.memory_space<vmem>>, vector<2x1x2xf32>,
    %747 = vector.extract_strided_slice %720 {offsets = [4, 0], sizes = [2, 2], strides = [1, 1]} : vector<16x2xf32> to vector<2x2xf32>
    %c0_131 = arith.constant 0 : index
    %c2_132 = arith.constant 2 : index
    %c0_133 = arith.constant 0 : index
    %748 = vector.load %arg13[%c0_131, %c2_132, %c0_133] : memref<2x8x2xf32, #tpu.memory_space<vmem>>, vector<2x1x2xf32>
    %749 = vector.shape_cast %748 : vector<2x1x2xf32> to vector<2x2xf32>
    %750 = vector.shape_cast %747 : vector<2x2xf32> to vector<2x1x2xf32>
    tpu.vector_store %arg13[%c0_131, %c2_132, %c0_133], %750 {strides = array<i32>} : memref<2x8x2xf32, #tpu.memory_space<vmem>>, vector<2x1x2xf32>,
    %751 = vector.broadcast %1 : vector<1x2xf32> to vector<2x2xf32>
    %752 = arith.mulf %747, %751 : vector<2x2xf32>
    %753 = vector.broadcast %0 : vector<1x2xf32> to vector<2x2xf32>
    %754 = arith.addf %752, %753 : vector<2x2xf32>
    %755 = arith.addf %743, %754 : vector<2x2xf32>
    %c0_134 = arith.constant 0 : index
    %c2_135 = arith.constant 2 : index
    %c0_136 = arith.constant 0 : index
    %756 = vector.load %arg12[%c0_134, %c2_135, %c0_136] : memref<2x8x2xf32, #tpu.memory_space<vmem>>, vector<2x1x2xf32>
    %757 = vector.shape_cast %756 : vector<2x1x2xf32> to vector<2x2xf32>
    %758 = vector.shape_cast %755 : vector<2x2xf32> to vector<2x1x2xf32>
    tpu.vector_store %arg12[%c0_134, %c2_135, %c0_136], %758 {strides = array<i32>} : memref<2x8x2xf32, #tpu.memory_space<vmem>>, vector<2x1x2xf32>,
    %759 = vector.extract_strided_slice %720 {offsets = [6, 0], sizes = [2, 2], strides = [1, 1]} : vector<16x2xf32> to vector<2x2xf32>
    %c0_137 = arith.constant 0 : index
    %c3 = arith.constant 3 : index
    %c0_138 = arith.constant 0 : index
    %760 = vector.load %arg13[%c0_137, %c3, %c0_138] : memref<2x8x2xf32, #tpu.memory_space<vmem>>, vector<2x1x2xf32>
    %761 = vector.shape_cast %760 : vector<2x1x2xf32> to vector<2x2xf32>
    %762 = vector.shape_cast %759 : vector<2x2xf32> to vector<2x1x2xf32>
    tpu.vector_store %arg13[%c0_137, %c3, %c0_138], %762 {strides = array<i32>} : memref<2x8x2xf32, #tpu.memory_space<vmem>>, vector<2x1x2xf32>,
    %763 = vector.broadcast %1 : vector<1x2xf32> to vector<2x2xf32>
    %764 = arith.mulf %759, %763 : vector<2x2xf32>
    %765 = vector.broadcast %0 : vector<1x2xf32> to vector<2x2xf32>
    %766 = arith.addf %764, %765 : vector<2x2xf32>
    %767 = arith.addf %755, %766 : vector<2x2xf32>
    %c0_139 = arith.constant 0 : index
    %c3_140 = arith.constant 3 : index
    %c0_141 = arith.constant 0 : index
    %768 = vector.load %arg12[%c0_139, %c3_140, %c0_141] : memref<2x8x2xf32, #tpu.memory_space<vmem>>, vector<2x1x2xf32>
    %769 = vector.shape_cast %768 : vector<2x1x2xf32> to vector<2x2xf32>
    %770 = vector.shape_cast %767 : vector<2x2xf32> to vector<2x1x2xf32>
    tpu.vector_store %arg12[%c0_139, %c3_140, %c0_141], %770 {strides = array<i32>} : memref<2x8x2xf32, #tpu.memory_space<vmem>>, vector<2x1x2xf32>,
    %771 = vector.extract_strided_slice %720 {offsets = [8, 0], sizes = [2, 2], strides = [1, 1]} : vector<16x2xf32> to vector<2x2xf32>
    %c0_142 = arith.constant 0 : index
    %c4_143 = arith.constant 4 : index
    %c0_144 = arith.constant 0 : index
    %772 = vector.load %arg13[%c0_142, %c4_143, %c0_144] : memref<2x8x2xf32, #tpu.memory_space<vmem>>, vector<2x1x2xf32>
    %773 = vector.shape_cast %772 : vector<2x1x2xf32> to vector<2x2xf32>
    %774 = vector.shape_cast %771 : vector<2x2xf32> to vector<2x1x2xf32>
    tpu.vector_store %arg13[%c0_142, %c4_143, %c0_144], %774 {strides = array<i32>} : memref<2x8x2xf32, #tpu.memory_space<vmem>>, vector<2x1x2xf32>,
    %775 = vector.broadcast %1 : vector<1x2xf32> to vector<2x2xf32>
    %776 = arith.mulf %771, %775 : vector<2x2xf32>
    %777 = vector.broadcast %0 : vector<1x2xf32> to vector<2x2xf32>
    %778 = arith.addf %776, %777 : vector<2x2xf32>
    %779 = arith.addf %767, %778 : vector<2x2xf32>
    %c0_145 = arith.constant 0 : index
    %c4_146 = arith.constant 4 : index
    %c0_147 = arith.constant 0 : index
    %780 = vector.load %arg12[%c0_145, %c4_146, %c0_147] : memref<2x8x2xf32, #tpu.memory_space<vmem>>, vector<2x1x2xf32>
    %781 = vector.shape_cast %780 : vector<2x1x2xf32> to vector<2x2xf32>
    %782 = vector.shape_cast %779 : vector<2x2xf32> to vector<2x1x2xf32>
    tpu.vector_store %arg12[%c0_145, %c4_146, %c0_147], %782 {strides = array<i32>} : memref<2x8x2xf32, #tpu.memory_space<vmem>>, vector<2x1x2xf32>,
    %783 = vector.extract_strided_slice %720 {offsets = [10, 0], sizes = [2, 2], strides = [1, 1]} : vector<16x2xf32> to vector<2x2xf32>
    %c0_148 = arith.constant 0 : index
    %c5 = arith.constant 5 : index
    %c0_149 = arith.constant 0 : index
    %784 = vector.load %arg13[%c0_148, %c5, %c0_149] : memref<2x8x2xf32, #tpu.memory_space<vmem>>, vector<2x1x2xf32>
    %785 = vector.shape_cast %784 : vector<2x1x2xf32> to vector<2x2xf32>
    %786 = vector.shape_cast %783 : vector<2x2xf32> to vector<2x1x2xf32>
    tpu.vector_store %arg13[%c0_148, %c5, %c0_149], %786 {strides = array<i32>} : memref<2x8x2xf32, #tpu.memory_space<vmem>>, vector<2x1x2xf32>,
    %787 = vector.broadcast %1 : vector<1x2xf32> to vector<2x2xf32>
    %788 = arith.mulf %783, %787 : vector<2x2xf32>
    %789 = vector.broadcast %0 : vector<1x2xf32> to vector<2x2xf32>
    %790 = arith.addf %788, %789 : vector<2x2xf32>
    %791 = arith.addf %779, %790 : vector<2x2xf32>
    %c0_150 = arith.constant 0 : index
    %c5_151 = arith.constant 5 : index
    %c0_152 = arith.constant 0 : index
    %792 = vector.load %arg12[%c0_150, %c5_151, %c0_152] : memref<2x8x2xf32, #tpu.memory_space<vmem>>, vector<2x1x2xf32>
    %793 = vector.shape_cast %792 : vector<2x1x2xf32> to vector<2x2xf32>
    %794 = vector.shape_cast %791 : vector<2x2xf32> to vector<2x1x2xf32>
    tpu.vector_store %arg12[%c0_150, %c5_151, %c0_152], %794 {strides = array<i32>} : memref<2x8x2xf32, #tpu.memory_space<vmem>>, vector<2x1x2xf32>,
    %795 = vector.extract_strided_slice %720 {offsets = [12, 0], sizes = [2, 2], strides = [1, 1]} : vector<16x2xf32> to vector<2x2xf32>
    %c0_153 = arith.constant 0 : index
    %c6_154 = arith.constant 6 : index
    %c0_155 = arith.constant 0 : index
    %796 = vector.load %arg13[%c0_153, %c6_154, %c0_155] : memref<2x8x2xf32, #tpu.memory_space<vmem>>, vector<2x1x2xf32>
    %797 = vector.shape_cast %796 : vector<2x1x2xf32> to vector<2x2xf32>
    %798 = vector.shape_cast %795 : vector<2x2xf32> to vector<2x1x2xf32>
    tpu.vector_store %arg13[%c0_153, %c6_154, %c0_155], %798 {strides = array<i32>} : memref<2x8x2xf32, #tpu.memory_space<vmem>>, vector<2x1x2xf32>,
    %799 = vector.broadcast %1 : vector<1x2xf32> to vector<2x2xf32>
    %800 = arith.mulf %795, %799 : vector<2x2xf32>
    %801 = vector.broadcast %0 : vector<1x2xf32> to vector<2x2xf32>
    %802 = arith.addf %800, %801 : vector<2x2xf32>
    %803 = arith.addf %791, %802 : vector<2x2xf32>
    %c0_156 = arith.constant 0 : index
    %c6_157 = arith.constant 6 : index
    %c0_158 = arith.constant 0 : index
    %804 = vector.load %arg12[%c0_156, %c6_157, %c0_158] : memref<2x8x2xf32, #tpu.memory_space<vmem>>, vector<2x1x2xf32>
    %805 = vector.shape_cast %804 : vector<2x1x2xf32> to vector<2x2xf32>
    %806 = vector.shape_cast %803 : vector<2x2xf32> to vector<2x1x2xf32>
    tpu.vector_store %arg12[%c0_156, %c6_157, %c0_158], %806 {strides = array<i32>} : memref<2x8x2xf32, #tpu.memory_space<vmem>>, vector<2x1x2xf32>,
    %807 = vector.extract_strided_slice %720 {offsets = [14, 0], sizes = [2, 2], strides = [1, 1]} : vector<16x2xf32> to vector<2x2xf32>
    %c0_159 = arith.constant 0 : index
    %c7_160 = arith.constant 7 : index
    %c0_161 = arith.constant 0 : index
    %808 = vector.load %arg13[%c0_159, %c7_160, %c0_161] : memref<2x8x2xf32, #tpu.memory_space<vmem>>, vector<2x1x2xf32>
    %809 = vector.shape_cast %808 : vector<2x1x2xf32> to vector<2x2xf32>
    %810 = vector.shape_cast %807 : vector<2x2xf32> to vector<2x1x2xf32>
    tpu.vector_store %arg13[%c0_159, %c7_160, %c0_161], %810 {strides = array<i32>} : memref<2x8x2xf32, #tpu.memory_space<vmem>>, vector<2x1x2xf32>,
    %811 = vector.broadcast %1 : vector<1x2xf32> to vector<2x2xf32>
    %812 = arith.mulf %807, %811 : vector<2x2xf32>
    %813 = vector.broadcast %0 : vector<1x2xf32> to vector<2x2xf32>
    %814 = arith.addf %812, %813 : vector<2x2xf32>
    %815 = arith.addf %803, %814 : vector<2x2xf32>
    %c0_162 = arith.constant 0 : index
    %c7_163 = arith.constant 7 : index
    %c0_164 = arith.constant 0 : index
    %816 = vector.load %arg12[%c0_162, %c7_163, %c0_164] : memref<2x8x2xf32, #tpu.memory_space<vmem>>, vector<2x1x2xf32>
    %817 = vector.shape_cast %816 : vector<2x1x2xf32> to vector<2x2xf32>
    %818 = vector.shape_cast %815 : vector<2x2xf32> to vector<2x1x2xf32>
    tpu.vector_store %arg12[%c0_162, %c7_163, %c0_164], %818 {strides = array<i32>} : memref<2x8x2xf32, #tpu.memory_space<vmem>>, vector<2x1x2xf32>,
    return
  }
}

</mosaic_0001>

<llo_original>
// kernel: double_lstm_forward.1
$region0: #{double_lstm_forward.1}
  #allocation0 [shape = 'u32[]', space=smem, size = 0x4, offset = 0x4, fixed_abs, tag = 'smem constant byte address 0x4 - core index']
  #allocation1 [shape = 'u32[72,128]{1,0:T(1,128)}', space=vmem, size = 0x9000, scoped, tag = 'internal scratch']
  #allocation2 [shape = 'f32[16,32]{1,0:T(8,128)}', space=vmem, size = 0x2000, scoped, tag = 'scratch operand']
  %s0 = inlined_call_operand.vmem [shape: f32[2,8,2], index: 0, kind: input, shape index: {}]
  %s1 = inlined_call_operand.vmem [shape: f32[2,8,2], index: 1, kind: input, shape index: {}]
  %s2 = inlined_call_operand.vmem [shape: f32[1,2], index: 2, kind: input, shape index: {}]
  %s3 = inlined_call_operand.vmem [shape: f32[1,2], index: 3, kind: input, shape index: {}]
  %s4 = inlined_call_operand.vmem [shape: f32[2,32], index: 4, kind: input, shape index: {}]
  %s5 = inlined_call_operand.vmem [shape: f32[1,32], index: 5, kind: input, shape index: {}]
  %s6 = inlined_call_operand.vmem [shape: f32[32,2], index: 6, kind: input, shape index: {}]
  %s7 = inlined_call_operand.vmem [shape: f32[1,2], index: 7, kind: input, shape index: {}]
  %s8 = inlined_call_operand.hbm [shape: f32[2,64,128], index: 8, kind: input, shape index: {}]
  %s9 = inlined_call_operand.vmem [shape: f32[2,1,128], index: 9, kind: input, shape index: {}]
  %s10 = inlined_call_operand.hbm [shape: f32[2,64,128], index: 10, kind: input, shape index: {}]
  %s11 = inlined_call_operand.vmem [shape: f32[2,1,128], index: 11, kind: input, shape index: {}]
  %s12 = inlined_call_operand.vmem [shape: f32[2,8,2], index: 12, kind: output, shape index: {0}]
  %s13 = inlined_call_operand.vmem [shape: f32[2,8,2], index: 13, kind: output, shape index: {1}]
  %14 = xla_tuple %s12, %s13
  %s15 = sld [smem:[#allocation0]]
  $region74: #{double_lstm_forward.1} parent=0
    _
  %s17 = ssub.s32 1, %s15
  %s18 = scalar_select 0, %s17, %s15
  $region1: #{double_lstm_forward.1} parent=0
    #allocation3 [shape = 'u8[65536]{0}', space=vmem, size = 0x10000, scoped, tag = 'input window, operand 8, single buffered']
    #allocation4 [shape = 's32[1]{0}', space=sflag, size = 0x4, scoped, tag = 'scoped memory for double_lstm_forward.1']
    #allocation5 [shape = 'u8[65536]{0}', space=vmem, size = 0x10000, scoped, tag = 'input window, operand 10, single buffered']
    #allocation6 [shape = 's32[1]{0}', space=sflag, size = 0x4, scoped, tag = 'scoped memory for double_lstm_forward.1']
    %19 = vsyncpa [#allocation4], 0
    %20 = vsyncpa [#allocation6], 0
    // Predicated region
    $region2: #{double_lstm_forward.1} parent=1 // pred_check
      _
    $region3: #{double_lstm_forward.1} parent=1 // pred_check_branch
      %22 = sbr.rel (0) target = $region5
    $region4: #{double_lstm_forward.1} parent=1 // pred_region
      _
    $region5: #{double_lstm_forward.1} parent=1 // pred_fallthru
      _
    // Predicated region
    $region6: #{double_lstm_forward.1} parent=1 // pred_check
      _
    $region7: #{double_lstm_forward.1} parent=1 // pred_check_branch
      %24 = sbr.rel (0) target = $region9
    $region8: #{double_lstm_forward.1} parent=1 // pred_region
      _
    $region9: #{double_lstm_forward.1} parent=1 // pred_fallthru
      _
    // Predicated region
    $region10: #{double_lstm_forward.1} parent=1 // pred_check
      _
    $region11: #{double_lstm_forward.1} parent=1 // pred_check_branch
      %26 = sbr.rel (0) target = $region13
    $region12: #{double_lstm_forward.1} parent=1 // pred_region
      _
    $region13: #{double_lstm_forward.1} parent=1 // pred_fallthru
      _
    // Predicated region
    $region14: #{double_lstm_forward.1} parent=1 // pred_check
      _
    $region15: #{double_lstm_forward.1} parent=1 // pred_check_branch
      %28 = sbr.rel (0) target = $region17
    $region16: #{double_lstm_forward.1} parent=1 // pred_region
      _
    $region17: #{double_lstm_forward.1} parent=1 // pred_fallthru
      _
    // Predicated region
    $region18: #{double_lstm_forward.1} parent=1 // pred_check
      _
    $region19: #{double_lstm_forward.1} parent=1 // pred_check_branch
      %30 = sbr.rel (0) target = $region21
    $region20: #{double_lstm_forward.1} parent=1 // pred_region
      _
    $region21: #{double_lstm_forward.1} parent=1 // pred_fallthru
      _
    // Predicated region
    $region22: #{double_lstm_forward.1} parent=1 // pred_check
      _
    $region23: #{double_lstm_forward.1} parent=1 // pred_check_branch
      %32 = sbr.rel (0) target = $region25
    $region24: #{double_lstm_forward.1} parent=1 // pred_region
      _
    $region25: #{double_lstm_forward.1} parent=1 // pred_fallthru
      _
    // Predicated region
    $region26: #{double_lstm_forward.1} parent=1 // pred_check
      _
    $region27: #{double_lstm_forward.1} parent=1 // pred_check_branch
      %34 = sbr.rel (0) target = $region29
    $region28: #{double_lstm_forward.1} parent=1 // pred_region
      _
    $region29: #{double_lstm_forward.1} parent=1 // pred_fallthru
      _
    // Predicated region
    $region30: #{double_lstm_forward.1} parent=1 // pred_check
      _
    $region31: #{double_lstm_forward.1} parent=1 // pred_check_branch
      %36 = sbr.rel (0) target = $region33
    $region32: #{double_lstm_forward.1} parent=1 // pred_region
      _
    $region33: #{double_lstm_forward.1} parent=1 // pred_fallthru
      _
    // Predicated region
    $region34: #{double_lstm_forward.1} parent=1 // pred_check
      _
    $region35: #{double_lstm_forward.1} parent=1 // pred_check_branch
      %38 = sbr.rel (0) target = $region37
    $region36: #{double_lstm_forward.1} parent=1 // pred_region
      %40 = vsyncadd [#allocation4], 0
      %s41 = sshll.u32 %s8, 4
      %s42 = int_to_ptr.hbm [resolvable:$true] %s41
      %s43 = sshll.u32 [#allocation3], 4
      %s44 = int_to_ptr.vmem [resolvable:$true] %s43
      %49 = dma.hbm_to_vmem [thread:$0]  %s42, 2048, %s44, [#allocation4], 128, 128, 8
    $region37: #{double_lstm_forward.1} parent=1 // pred_fallthru
      _
    // Predicated region
    $region38: #{double_lstm_forward.1} parent=1 // pred_check
      _
    $region39: #{double_lstm_forward.1} parent=1 // pred_check_branch
      %51 = sbr.rel (0) target = $region41
    $region40: #{double_lstm_forward.1} parent=1 // pred_region
      _
    $region41: #{double_lstm_forward.1} parent=1 // pred_fallthru
      _
    // Predicated region
    $region42: #{double_lstm_forward.1} parent=1 // pred_check
      _
    $region43: #{double_lstm_forward.1} parent=1 // pred_check_branch
      %53 = sbr.rel (0) target = $region45
    $region44: #{double_lstm_forward.1} parent=1 // pred_region
      %55 = vsyncadd [#allocation6], 0
      %s56 = sshll.u32 %s10, 4
      %s57 = int_to_ptr.hbm [resolvable:$true] %s56
      %s58 = sshll.u32 [#allocation5], 4
      %s59 = int_to_ptr.vmem [resolvable:$true] %s58
      %64 = dma.hbm_to_vmem [thread:$0]  %s57, 2048, %s59, [#allocation6], 128, 128, 8
    $region45: #{double_lstm_forward.1} parent=1 // pred_fallthru
      _
    // Predicated region
    $region46: #{double_lstm_forward.1} parent=1 // pred_check
      _
    $region47: #{double_lstm_forward.1} parent=1 // pred_check_branch
      %66 = sbr.rel (0) target = $region49
    $region48: #{double_lstm_forward.1} parent=1 // pred_region
      _
    $region49: #{double_lstm_forward.1} parent=1 // pred_fallthru
      _
    // Predicated region
    $region50: #{double_lstm_forward.1} parent=1 // pred_check
      _
    $region51: #{double_lstm_forward.1} parent=1 // pred_check_branch
      %68 = sbr.rel (0) target = $region53
    $region52: #{double_lstm_forward.1} parent=1 // pred_region
      %70 = dma.done [#allocation4], 2048
    $region53: #{double_lstm_forward.1} parent=1 // pred_fallthru
      _
    // Predicated region
    $region54: #{double_lstm_forward.1} parent=1 // pred_check
      _
    $region55: #{double_lstm_forward.1} parent=1 // pred_check_branch
      %72 = sbr.rel (0) target = $region57
    $region56: #{double_lstm_forward.1} parent=1 // pred_region
      %74 = dma.done [#allocation6], 2048
    $region57: #{double_lstm_forward.1} parent=1 // pred_fallthru
      _
    %v75 = vld [vmem:[%s2] sm:$0x1]
    %v76 = vld [vmem:[%s3] sm:$0x1]
    %v77 = vrcp.pop %v76
    %v78 = vmul.f32 %v76, %v77
    %v79 = vsub.f32 1.0, %v78
    %v80 = vmul.f32 %v77, %v79
    %v81 = vadd.f32 %v77, %v80
    %vm82 = vweird.f32 %v76
    %vm83 = vweird.f32 %v77
    %vm84 = vmor %vm82, %vm83
    %v85 = vsel %vm84, %v77, %v81
    %v86 = vand.u32 2147483647, %v76
    %vm87 = vcmp.eq.f32.partialorder %v86, 8.507059e+37
    %v88 = vand.u32 %v76, 2147483648
    %v89 = vor.u32 1.1754944e-38, %v88
    %v90 = vsel %vm87, %v89, %v85
    %v91 = vmul.f32 1.0, %v90
    %v92 = vld [vmem:[%s4] sm:$0x3]
    %v93 = vld [vmem:[%s5] sm:$0x1]
    %v94 = vld [vmem:[%s6] sm:$0xff]
    %v95 = vld [vmem:[%s6 + $0x8] sm:$0xff]
    %v96 = vld [vmem:[%s6 + $0x10] sm:$0xff]
    %v97 = vld [vmem:[%s6 + $0x18] sm:$0xff]
    %v98 = vld [vmem:[%s7] sm:$0x1]
    %v99 = vlaneseq
    %v100 = vand.u32 %v99, 127
    %vm101 = vcmp.ge.s32.totalorder %v100, 64
    %vm102 = vcmp.lt.s32.totalorder %v100, 96
    %vm103 = vmand %vm101, %vm102
    %v104 = vsel %vm103, 2.0, 1.0
    %v105 = vsel %vm103, -1.0, 0.0
    %v106 = vld [vmem:[%s1] sm:$0xff]
    %v107 = vld [vmem:[%s1 + $0x8] sm:$0xff]
    %v109 = vperm.slane %v75, 0
    %v111 = vsub.f32 %v106, %v109
    %v112 = vsub.f32 %v107, %v109
    %v114 = vperm.slane %v91, 0
    %v116 = vmul.f32 %v111, %v114
    %v117 = vmul.f32 %v112, %v114
    %119 = vset.pattern.permute.xlu0 0
    %120 = vperm.xlu0 %119, %v116
    %v121 = vpop.permute.xlu0 %120
    %124 = vset.pattern.permute.xlu0 0
    %125 = vperm.xlu0 %124, %v117
    %v126 = vpop.permute.xlu0 %125
    %v128 = vperm.slane %v92, 0
    %v129 = vmul.f32 %v121, %v128
    %v130 = vmul.f32 %v126, %v128
    %v132 = vperm.slane %v93, 0
    %v134 = vadd.f32 %v132, %v129
    %v135 = vadd.f32 %v132, %v130
    %136 = vset.pattern.permute.xlu0 1
    %137 = vperm.xlu0 %136, %v116
    %v138 = vpop.permute.xlu0 %137
    %140 = vset.pattern.permute.xlu0 1
    %141 = vperm.xlu0 %140, %v117
    %v142 = vpop.permute.xlu0 %141
    %v144 = vperm.slane %v92, 1
    %v145 = vmul.f32 %v138, %v144
    %v146 = vmul.f32 %v142, %v144
    %v147 = vadd.f32 %v134, %v145
    %v148 = vadd.f32 %v135, %v146
    %v149 = vld [vmem:[#allocation3] sm:$0xff]
    %v150 = vld [vmem:[#allocation3 + $0x8] sm:$0xff]
    %v151 = vld [vmem:[#allocation3 + $0x10] sm:$0xff]
    %v152 = vld [vmem:[#allocation3 + $0x18] sm:$0xff]
    %v153 = vld [vmem:[#allocation3 + $0x20] sm:$0xff]
    %v154 = vld [vmem:[#allocation3 + $0x28] sm:$0xff]
    %v155 = vld [vmem:[#allocation3 + $0x30] sm:$0xff]
    %v156 = vld [vmem:[#allocation3 + $0x38] sm:$0xff]
    %s157 = scalar_lea.vmem [#allocation3], 64
    %v158 = vld [vmem:[%s157] sm:$0xff]
    %v159 = vld [vmem:[%s157 + $0x8] sm:$0xff]
    %v160 = vld [vmem:[%s157 + $0x10] sm:$0xff]
    %v161 = vld [vmem:[%s157 + $0x18] sm:$0xff]
    %v162 = vld [vmem:[%s157 + $0x20] sm:$0xff]
    %v163 = vld [vmem:[%s157 + $0x28] sm:$0xff]
    %v164 = vld [vmem:[%s157 + $0x30] sm:$0xff]
    %v165 = vld [vmem:[%s157 + $0x38] sm:$0xff]
    %v166 = vld [vmem:[%s9] sm:$0x1]
    %s167 = scalar_lea.vmem %s9, 1
    %v168 = vld [vmem:[%s167] sm:$0x1]
    %v171 = vrot.slane %v148, 7
    %vm172 = vcmask 1041409
    %v173 = vsel %vm172, %v171, %v147
    %vm175 = vcmask 261120
    %v176 = vsel %vm175, %v173, 0.0
    %v178 = vperm.slane %v166, 0
    %vm180 = vcmask 523264
    %v182 = vsel %vm180, %v176, 0
    %184 = vmatpush.msra.mxu0 0.0
    %185 = vmatpush.msra.mxu0 0.0
    %186 = vmatpush.msra.mxu0 0.0
    %187 = vmatpush.msra.mxu0 0.0
    %188 = vmatpush.msra.mxu0 0.0
    %189 = vmatpush.msra.mxu0 0.0
    %190 = vmatpush.msra.mxu0 0.0
    %191 = vmatpush.msra.mxu0 0.0
    %192 = vmatpush.msra.mxu0 %v156
    %193 = vmatpush.msra.mxu0 %v155
    %194 = vmatpush.msra.mxu0 %v154
    %195 = vmatpush.msra.mxu0 %v153
    %196 = vmatpush.msra.mxu0 %v152
    %197 = vmatpush.msra.mxu0 %v151
    %198 = vmatpush.msra.mxu0 %v150
    %199 = vmatpush.msra.mxu0 %v149
    %200 = vmatmul.f32.gmra.mxu0 %v182
    %v201 = vpop.f32.mrf.mxu0
    %v202 = vadd.f32 %v178, %v201
    %203 = vdwg.mxu0
    %v204 = vmul.f32 %v202, %v104
    %v205 = vxor.u32 %v204, 2147483648
    %v206 = vmul.f32 %v205, 1.442695
    %v207 = vpow.pop %v206
    %v208 = vadd.f32 %v207, 1.0
    %v209 = vrcp.pop %v208
    %v210 = vmul.f32 %v208, %v209
    %v211 = vsub.f32 1.0, %v210
    %v212 = vmul.f32 %v209, %v211
    %v213 = vadd.f32 %v209, %v212
    %vm214 = vweird.f32 %v208
    %vm215 = vweird.f32 %v209
    %vm216 = vmor %vm214, %vm215
    %v217 = vsel %vm216, %v209, %v213
    %v218 = vand.u32 2147483647, %v208
    %vm219 = vcmp.eq.f32.partialorder %v218, 8.507059e+37
    %v220 = vand.u32 %v208, 2147483648
    %v221 = vor.u32 1.1754944e-38, %v220
    %v222 = vsel %vm219, %v221, %v217
    %v223 = vmul.f32 1.0, %v222
    %v224 = vmul.f32 %v223, %v104
    %v225 = vadd.f32 %v224, %v105
    %v226 = vmul.f32 %v225, 0.0
    %228 = vrot.lane.b32.xlu0 %v225, 64
    %v229 = vpop.permute.xlu0 %228
    %v231 = vmul.f32 %v225, %v229
    %233 = vrot.lane.b32.xlu0 %v231, 32
    %v234 = vpop.permute.xlu0 %233
    %v236 = vadd.f32 %v226, %v234
    %v237 = vtanh.pop %v236
    %239 = vrot.lane.b32.xlu0 %v237, 64
    %v240 = vpop.permute.xlu0 %239
    %v242 = vmul.f32 %v225, %v240
    %244 = vrot.lane.b32.xlu0 %v242, 32
    %v245 = vpop.permute.xlu0 %244
    %v247 = vsel %vm175, %v245, 0.0
    %v249 = vperm.slane %v168, 0
    %v252 = vsel %vm180, %v247, 0
    %254 = vmatpush.msra.mxu0 0.0
    %255 = vmatpush.msra.mxu0 0.0
    %256 = vmatpush.msra.mxu0 0.0
    %257 = vmatpush.msra.mxu0 0.0
    %258 = vmatpush.msra.mxu0 0.0
    %259 = vmatpush.msra.mxu0 0.0
    %260 = vmatpush.msra.mxu0 0.0
    %261 = vmatpush.msra.mxu0 0.0
    %262 = vmatpush.msra.mxu0 %v165
    %263 = vmatpush.msra.mxu0 %v164
    %264 = vmatpush.msra.mxu0 %v163
    %265 = vmatpush.msra.mxu0 %v162
    %266 = vmatpush.msra.mxu0 %v161
    %267 = vmatpush.msra.mxu0 %v160
    %268 = vmatpush.msra.mxu0 %v159
    %269 = vmatpush.msra.mxu0 %v158
    %270 = vmatmul.f32.gmra.mxu0 %v252
    %v271 = vpop.f32.mrf.mxu0
    %v272 = vadd.f32 %v249, %v271
    %273 = vdwg.mxu0
    %v274 = vmul.f32 %v272, %v104
    %v275 = vxor.u32 %v274, 2147483648
    %v276 = vmul.f32 %v275, 1.442695
    %v277 = vpow.pop %v276
    %v278 = vadd.f32 %v277, 1.0
    %v279 = vrcp.pop %v278
    %v280 = vmul.f32 %v278, %v279
    %v281 = vsub.f32 1.0, %v280
    %v282 = vmul.f32 %v279, %v281
    %v283 = vadd.f32 %v279, %v282
    %vm284 = vweird.f32 %v278
    %vm285 = vweird.f32 %v279
    %vm286 = vmor %vm284, %vm285
    %v287 = vsel %vm286, %v279, %v283
    %v288 = vand.u32 2147483647, %v278
    %vm289 = vcmp.eq.f32.partialorder %v288, 8.507059e+37
    %v290 = vand.u32 %v278, 2147483648
    %v291 = vor.u32 1.1754944e-38, %v290
    %v292 = vsel %vm289, %v291, %v287
    %v293 = vmul.f32 1.0, %v292
    %v294 = vmul.f32 %v293, %v104
    %v295 = vadd.f32 %v294, %v105
    %v296 = vmul.f32 %v295, 0.0
    %298 = vrot.lane.b32.xlu0 %v295, 64
    %v299 = vpop.permute.xlu0 %298
    %v301 = vmul.f32 %v295, %v299
    %303 = vrot.lane.b32.xlu0 %v301, 32
    %v304 = vpop.permute.xlu0 %303
    %v306 = vadd.f32 %v296, %v304
    %v307 = vtanh.pop %v306
    %309 = vrot.lane.b32.xlu0 %v307, 64
    %v310 = vpop.permute.xlu0 %309
    %v312 = vmul.f32 %v295, %v310
    %vm313 = vcmask 1042434
    %v314 = vsel %vm313, %v171, %v147
    %v316 = vrot.slane %v242, 7
    %317 = vrot.lane.b32.xlu0 %v316, 64
    %v318 = vpop.permute.xlu0 %317
    %v320 = vsel %vm175, %v314, %v318
    %v322 = vrot.slane %v320, 1
    %v323 = vsel %vm180, %v322, 0
    %325 = vmatpush.msra.mxu0 0.0
    %326 = vmatpush.msra.mxu0 0.0
    %327 = vmatpush.msra.mxu0 0.0
    %328 = vmatpush.msra.mxu0 0.0
    %329 = vmatpush.msra.mxu0 0.0
    %330 = vmatpush.msra.mxu0 0.0
    %331 = vmatpush.msra.mxu0 0.0
    %332 = vmatpush.msra.mxu0 0.0
    %333 = vmatpush.msra.mxu0 %v156
    %334 = vmatpush.msra.mxu0 %v155
    %335 = vmatpush.msra.mxu0 %v154
    %336 = vmatpush.msra.mxu0 %v153
    %337 = vmatpush.msra.mxu0 %v152
    %338 = vmatpush.msra.mxu0 %v151
    %339 = vmatpush.msra.mxu0 %v150
    %340 = vmatpush.msra.mxu0 %v149
    %341 = vmatmul.f32.gmra.mxu0 %v323
    %v342 = vpop.f32.mrf.mxu0
    %v343 = vadd.f32 %v178, %v342
    %344 = vdwg.mxu0
    %v345 = vmul.f32 %v343, %v104
    %v346 = vxor.u32 %v345, 2147483648
    %v347 = vmul.f32 %v346, 1.442695
    %v348 = vpow.pop %v347
    %v349 = vadd.f32 %v348, 1.0
    %v350 = vrcp.pop %v349
    %v351 = vmul.f32 %v349, %v350
    %v352 = vsub.f32 1.0, %v351
    %v353 = vmul.f32 %v350, %v352
    %v354 = vadd.f32 %v350, %v353
    %vm355 = vweird.f32 %v349
    %vm356 = vweird.f32 %v350
    %vm357 = vmor %vm355, %vm356
    %v358 = vsel %vm357, %v350, %v354
    %v359 = vand.u32 2147483647, %v349
    %vm360 = vcmp.eq.f32.partialorder %v359, 8.507059e+37
    %v361 = vand.u32 %v349, 2147483648
    %v362 = vor.u32 1.1754944e-38, %v361
    %v363 = vsel %vm360, %v362, %v358
    %v364 = vmul.f32 1.0, %v363
    %v365 = vmul.f32 %v364, %v104
    %v366 = vadd.f32 %v365, %v105
    %v367 = vmul.f32 %v366, %v236
    %369 = vrot.lane.b32.xlu0 %v366, 64
    %v370 = vpop.permute.xlu0 %369
    %v372 = vmul.f32 %v366, %v370
    %374 = vrot.lane.b32.xlu0 %v372, 32
    %v375 = vpop.permute.xlu0 %374
    %v377 = vadd.f32 %v367, %v375
    %v378 = vtanh.pop %v377
    %380 = vrot.lane.b32.xlu0 %v378, 64
    %v381 = vpop.permute.xlu0 %380
    %v383 = vmul.f32 %v366, %v381
    %385 = vrot.lane.b32.xlu0 %v383, 32
    %v386 = vpop.permute.xlu0 %385
    %389 = vrot.lane.b32.xlu0 %v312, 64
    %v390 = vpop.permute.xlu0 %389
    %v392 = vsel %vm175, %v386, %v390
    %v394 = vsel %vm180, %v392, 0
    %396 = vmatpush.msra.mxu0 0.0
    %397 = vmatpush.msra.mxu0 0.0
    %398 = vmatpush.msra.mxu0 0.0
    %399 = vmatpush.msra.mxu0 0.0
    %400 = vmatpush.msra.mxu0 0.0
    %401 = vmatpush.msra.mxu0 0.0
    %402 = vmatpush.msra.mxu0 0.0
    %403 = vmatpush.msra.mxu0 0.0
    %404 = vmatpush.msra.mxu0 %v165
    %405 = vmatpush.msra.mxu0 %v164
    %406 = vmatpush.msra.mxu0 %v163
    %407 = vmatpush.msra.mxu0 %v162
    %408 = vmatpush.msra.mxu0 %v161
    %409 = vmatpush.msra.mxu0 %v160
    %410 = vmatpush.msra.mxu0 %v159
    %411 = vmatpush.msra.mxu0 %v158
    %412 = vmatmul.f32.gmra.mxu0 %v394
    %v413 = vpop.f32.mrf.mxu0
    %v414 = vadd.f32 %v249, %v413
    %415 = vdwg.mxu0
    %v416 = vmul.f32 %v414, %v104
    %v417 = vxor.u32 %v416, 2147483648
    %v418 = vmul.f32 %v417, 1.442695
    %v419 = vpow.pop %v418
    %v420 = vadd.f32 %v419, 1.0
    %v421 = vrcp.pop %v420
    %v422 = vmul.f32 %v420, %v421
    %v423 = vsub.f32 1.0, %v422
    %v424 = vmul.f32 %v421, %v423
    %v425 = vadd.f32 %v421, %v424
    %vm426 = vweird.f32 %v420
    %vm427 = vweird.f32 %v421
    %vm428 = vmor %vm426, %vm427
    %v429 = vsel %vm428, %v421, %v425
    %v430 = vand.u32 2147483647, %v420
    %vm431 = vcmp.eq.f32.partialorder %v430, 8.507059e+37
    %v432 = vand.u32 %v420, 2147483648
    %v433 = vor.u32 1.1754944e-38, %v432
    %v434 = vsel %vm431, %v433, %v429
    %v435 = vmul.f32 1.0, %v434
    %v436 = vmul.f32 %v435, %v104
    %v437 = vadd.f32 %v436, %v105
    %v438 = vmul.f32 %v437, %v306
    %440 = vrot.lane.b32.xlu0 %v437, 64
    %v441 = vpop.permute.xlu0 %440
    %v443 = vmul.f32 %v437, %v441
    %445 = vrot.lane.b32.xlu0 %v443, 32
    %v446 = vpop.permute.xlu0 %445
    %v448 = vadd.f32 %v438, %v446
    %v449 = vtanh.pop %v448
    %451 = vrot.lane.b32.xlu0 %v449, 64
    %v452 = vpop.permute.xlu0 %451
    %v454 = vmul.f32 %v437, %v452
    %vm455 = vcmask 1043459
    %v456 = vsel %vm455, %v171, %v147
    %v458 = vrot.slane %v383, 6
    %459 = vrot.lane.b32.xlu0 %v458, 64
    %v460 = vpop.permute.xlu0 %459
    %v462 = vsel %vm175, %v456, %v460
    %v464 = vrot.slane %v462, 2
    %v465 = vsel %vm180, %v464, 0
    %467 = vmatpush.msra.mxu0 0.0
    %468 = vmatpush.msra.mxu0 0.0
    %469 = vmatpush.msra.mxu0 0.0
    %470 = vmatpush.msra.mxu0 0.0
    %471 = vmatpush.msra.mxu0 0.0
    %472 = vmatpush.msra.mxu0 0.0
    %473 = vmatpush.msra.mxu0 0.0
    %474 = vmatpush.msra.mxu0 0.0
    %475 = vmatpush.msra.mxu0 %v156
    %476 = vmatpush.msra.mxu0 %v155
    %477 = vmatpush.msra.mxu0 %v154
    %478 = vmatpush.msra.mxu0 %v153
    %479 = vmatpush.msra.mxu0 %v152
    %480 = vmatpush.msra.mxu0 %v151
    %481 = vmatpush.msra.mxu0 %v150
    %482 = vmatpush.msra.mxu0 %v149
    %483 = vmatmul.f32.gmra.mxu0 %v465
    %v484 = vpop.f32.mrf.mxu0
    %v485 = vadd.f32 %v178, %v484
    %486 = vdwg.mxu0
    %v487 = vmul.f32 %v485, %v104
    %v488 = vxor.u32 %v487, 2147483648
    %v489 = vmul.f32 %v488, 1.442695
    %v490 = vpow.pop %v489
    %v491 = vadd.f32 %v490, 1.0
    %v492 = vrcp.pop %v491
    %v493 = vmul.f32 %v491, %v492
    %v494 = vsub.f32 1.0, %v493
    %v495 = vmul.f32 %v492, %v494
    %v496 = vadd.f32 %v492, %v495
    %vm497 = vweird.f32 %v491
    %vm498 = vweird.f32 %v492
    %vm499 = vmor %vm497, %vm498
    %v500 = vsel %vm499, %v492, %v496
    %v501 = vand.u32 2147483647, %v491
    %vm502 = vcmp.eq.f32.partialorder %v501, 8.507059e+37
    %v503 = vand.u32 %v491, 2147483648
    %v504 = vor.u32 1.1754944e-38, %v503
    %v505 = vsel %vm502, %v504, %v500
    %v506 = vmul.f32 1.0, %v505
    %v507 = vmul.f32 %v506, %v104
    %v508 = vadd.f32 %v507, %v105
    %v509 = vmul.f32 %v508, %v377
    %511 = vrot.lane.b32.xlu0 %v508, 64
    %v512 = vpop.permute.xlu0 %511
    %v514 = vmul.f32 %v508, %v512
    %516 = vrot.lane.b32.xlu0 %v514, 32
    %v517 = vpop.permute.xlu0 %516
    %v519 = vadd.f32 %v509, %v517
    %v520 = vtanh.pop %v519
    %522 = vrot.lane.b32.xlu0 %v520, 64
    %v523 = vpop.permute.xlu0 %522
    %v525 = vmul.f32 %v508, %v523
    %527 = vrot.lane.b32.xlu0 %v525, 32
    %v528 = vpop.permute.xlu0 %527
    %531 = vrot.lane.b32.xlu0 %v454, 64
    %v532 = vpop.permute.xlu0 %531
    %v534 = vsel %vm175, %v528, %v532
    %v536 = vsel %vm180, %v534, 0
    %538 = vmatpush.msra.mxu0 0.0
    %539 = vmatpush.msra.mxu0 0.0
    %540 = vmatpush.msra.mxu0 0.0
    %541 = vmatpush.msra.mxu0 0.0
    %542 = vmatpush.msra.mxu0 0.0
    %543 = vmatpush.msra.mxu0 0.0
    %544 = vmatpush.msra.mxu0 0.0
    %545 = vmatpush.msra.mxu0 0.0
    %546 = vmatpush.msra.mxu0 %v165
    %547 = vmatpush.msra.mxu0 %v164
    %548 = vmatpush.msra.mxu0 %v163
    %549 = vmatpush.msra.mxu0 %v162
    %550 = vmatpush.msra.mxu0 %v161
    %551 = vmatpush.msra.mxu0 %v160
    %552 = vmatpush.msra.mxu0 %v159
    %553 = vmatpush.msra.mxu0 %v158
    %554 = vmatmul.f32.gmra.mxu0 %v536
    %v555 = vpop.f32.mrf.mxu0
    %v556 = vadd.f32 %v249, %v555
    %557 = vdwg.mxu0
    %v558 = vmul.f32 %v556, %v104
    %v559 = vxor.u32 %v558, 2147483648
    %v560 = vmul.f32 %v559, 1.442695
    %v561 = vpow.pop %v560
    %v562 = vadd.f32 %v561, 1.0
    %v563 = vrcp.pop %v562
    %v564 = vmul.f32 %v562, %v563
    %v565 = vsub.f32 1.0, %v564
    %v566 = vmul.f32 %v563, %v565
    %v567 = vadd.f32 %v563, %v566
    %vm568 = vweird.f32 %v562
    %vm569 = vweird.f32 %v563
    %vm570 = vmor %vm568, %vm569
    %v571 = vsel %vm570, %v563, %v567
    %v572 = vand.u32 2147483647, %v562
    %vm573 = vcmp.eq.f32.partialorder %v572, 8.507059e+37
    %v574 = vand.u32 %v562, 2147483648
    %v575 = vor.u32 1.1754944e-38, %v574
    %v576 = vsel %vm573, %v575, %v571
    %v577 = vmul.f32 1.0, %v576
    %v578 = vmul.f32 %v577, %v104
    %v579 = vadd.f32 %v578, %v105
    %v580 = vmul.f32 %v579, %v448
    %582 = vrot.lane.b32.xlu0 %v579, 64
    %v583 = vpop.permute.xlu0 %582
    %v585 = vmul.f32 %v579, %v583
    %587 = vrot.lane.b32.xlu0 %v585, 32
    %v588 = vpop.permute.xlu0 %587
    %v590 = vadd.f32 %v580, %v588
    %v591 = vtanh.pop %v590
    %593 = vrot.lane.b32.xlu0 %v591, 64
    %v594 = vpop.permute.xlu0 %593
    %v596 = vmul.f32 %v579, %v594
    %vm597 = vcmask 1044484
    %v598 = vsel %vm597, %v171, %v147
    %v600 = vrot.slane %v525, 5
    %601 = vrot.lane.b32.xlu0 %v600, 64
    %v602 = vpop.permute.xlu0 %601
    %v604 = vsel %vm175, %v598, %v602
    %v606 = vrot.slane %v604, 3
    %v607 = vsel %vm180, %v606, 0
    %609 = vmatpush.msra.mxu0 0.0
    %610 = vmatpush.msra.mxu0 0.0
    %611 = vmatpush.msra.mxu0 0.0
    %612 = vmatpush.msra.mxu0 0.0
    %613 = vmatpush.msra.mxu0 0.0
    %614 = vmatpush.msra.mxu0 0.0
    %615 = vmatpush.msra.mxu0 0.0
    %616 = vmatpush.msra.mxu0 0.0
    %617 = vmatpush.msra.mxu0 %v156
    %618 = vmatpush.msra.mxu0 %v155
    %619 = vmatpush.msra.mxu0 %v154
    %620 = vmatpush.msra.mxu0 %v153
    %621 = vmatpush.msra.mxu0 %v152
    %622 = vmatpush.msra.mxu0 %v151
    %623 = vmatpush.msra.mxu0 %v150
    %624 = vmatpush.msra.mxu0 %v149
    %625 = vmatmul.f32.gmra.mxu0 %v607
    %v626 = vpop.f32.mrf.mxu0
    %v627 = vadd.f32 %v178, %v626
    %628 = vdwg.mxu0
    %v629 = vmul.f32 %v627, %v104
    %v630 = vxor.u32 %v629, 2147483648
    %v631 = vmul.f32 %v630, 1.442695
    %v632 = vpow.pop %v631
    %v633 = vadd.f32 %v632, 1.0
    %v634 = vrcp.pop %v633
    %v635 = vmul.f32 %v633, %v634
    %v636 = vsub.f32 1.0, %v635
    %v637 = vmul.f32 %v634, %v636
    %v638 = vadd.f32 %v634, %v637
    %vm639 = vweird.f32 %v633
    %vm640 = vweird.f32 %v634
    %vm641 = vmor %vm639, %vm640
    %v642 = vsel %vm641, %v634, %v638
    %v643 = vand.u32 2147483647, %v633
    %vm644 = vcmp.eq.f32.partialorder %v643, 8.507059e+37
    %v645 = vand.u32 %v633, 2147483648
    %v646 = vor.u32 1.1754944e-38, %v645
    %v647 = vsel %vm644, %v646, %v642
    %v648 = vmul.f32 1.0, %v647
    %v649 = vmul.f32 %v648, %v104
    %v650 = vadd.f32 %v649, %v105
    %v651 = vmul.f32 %v650, %v519
    %653 = vrot.lane.b32.xlu0 %v650, 64
    %v654 = vpop.permute.xlu0 %653
    %v656 = vmul.f32 %v650, %v654
    %658 = vrot.lane.b32.xlu0 %v656, 32
    %v659 = vpop.permute.xlu0 %658
    %v661 = vadd.f32 %v651, %v659
    %v662 = vtanh.pop %v661
    %664 = vrot.lane.b32.xlu0 %v662, 64
    %v665 = vpop.permute.xlu0 %664
    %v667 = vmul.f32 %v650, %v665
    %669 = vrot.lane.b32.xlu0 %v667, 32
    %v670 = vpop.permute.xlu0 %669
    %673 = vrot.lane.b32.xlu0 %v596, 64
    %v674 = vpop.permute.xlu0 %673
    %v676 = vsel %vm175, %v670, %v674
    %v678 = vsel %vm180, %v676, 0
    %680 = vmatpush.msra.mxu0 0.0
    %681 = vmatpush.msra.mxu0 0.0
    %682 = vmatpush.msra.mxu0 0.0
    %683 = vmatpush.msra.mxu0 0.0
    %684 = vmatpush.msra.mxu0 0.0
    %685 = vmatpush.msra.mxu0 0.0
    %686 = vmatpush.msra.mxu0 0.0
    %687 = vmatpush.msra.mxu0 0.0
    %688 = vmatpush.msra.mxu0 %v165
    %689 = vmatpush.msra.mxu0 %v164
    %690 = vmatpush.msra.mxu0 %v163
    %691 = vmatpush.msra.mxu0 %v162
    %692 = vmatpush.msra.mxu0 %v161
    %693 = vmatpush.msra.mxu0 %v160
    %694 = vmatpush.msra.mxu0 %v159
    %695 = vmatpush.msra.mxu0 %v158
    %696 = vmatmul.f32.gmra.mxu0 %v678
    %v697 = vpop.f32.mrf.mxu0
    %v698 = vadd.f32 %v249, %v697
    %699 = vdwg.mxu0
    %v700 = vmul.f32 %v698, %v104
    %v701 = vxor.u32 %v700, 2147483648
    %v702 = vmul.f32 %v701, 1.442695
    %v703 = vpow.pop %v702
    %v704 = vadd.f32 %v703, 1.0
    %v705 = vrcp.pop %v704
    %v706 = vmul.f32 %v704, %v705
    %v707 = vsub.f32 1.0, %v706
    %v708 = vmul.f32 %v705, %v707
    %v709 = vadd.f32 %v705, %v708
    %vm710 = vweird.f32 %v704
    %vm711 = vweird.f32 %v705
    %vm712 = vmor %vm710, %vm711
    %v713 = vsel %vm712, %v705, %v709
    %v714 = vand.u32 2147483647, %v704
    %vm715 = vcmp.eq.f32.partialorder %v714, 8.507059e+37
    %v716 = vand.u32 %v704, 2147483648
    %v717 = vor.u32 1.1754944e-38, %v716
    %v718 = vsel %vm715, %v717, %v713
    %v719 = vmul.f32 1.0, %v718
    %v720 = vmul.f32 %v719, %v104
    %v721 = vadd.f32 %v720, %v105
    %v722 = vmul.f32 %v721, %v590
    %724 = vrot.lane.b32.xlu0 %v721, 64
    %v725 = vpop.permute.xlu0 %724
    %v727 = vmul.f32 %v721, %v725
    %729 = vrot.lane.b32.xlu0 %v727, 32
    %v730 = vpop.permute.xlu0 %729
    %v732 = vadd.f32 %v722, %v730
    %v733 = vtanh.pop %v732
    %735 = vrot.lane.b32.xlu0 %v733, 64
    %v736 = vpop.permute.xlu0 %735
    %v738 = vmul.f32 %v721, %v736
    %vm739 = vcmask 1045509
    %v740 = vsel %vm739, %v171, %v147
    %v742 = vrot.slane %v667, 4
    %743 = vrot.lane.b32.xlu0 %v742, 64
    %v744 = vpop.permute.xlu0 %743
    %v746 = vsel %vm175, %v740, %v744
    %v748 = vrot.slane %v746, 4
    %v749 = vsel %vm180, %v748, 0
    %751 = vmatpush.msra.mxu0 0.0
    %752 = vmatpush.msra.mxu0 0.0
    %753 = vmatpush.msra.mxu0 0.0
    %754 = vmatpush.msra.mxu0 0.0
    %755 = vmatpush.msra.mxu0 0.0
    %756 = vmatpush.msra.mxu0 0.0
    %757 = vmatpush.msra.mxu0 0.0
    %758 = vmatpush.msra.mxu0 0.0
    %759 = vmatpush.msra.mxu0 %v156
    %760 = vmatpush.msra.mxu0 %v155
    %761 = vmatpush.msra.mxu0 %v154
    %762 = vmatpush.msra.mxu0 %v153
    %763 = vmatpush.msra.mxu0 %v152
    %764 = vmatpush.msra.mxu0 %v151
    %765 = vmatpush.msra.mxu0 %v150
    %766 = vmatpush.msra.mxu0 %v149
    %767 = vmatmul.f32.gmra.mxu0 %v749
    %v768 = vpop.f32.mrf.mxu0
    %v769 = vadd.f32 %v178, %v768
    %770 = vdwg.mxu0
    %v771 = vmul.f32 %v769, %v104
    %v772 = vxor.u32 %v771, 2147483648
    %v773 = vmul.f32 %v772, 1.442695
    %v774 = vpow.pop %v773
    %v775 = vadd.f32 %v774, 1.0
    %v776 = vrcp.pop %v775
    %v777 = vmul.f32 %v775, %v776
    %v778 = vsub.f32 1.0, %v777
    %v779 = vmul.f32 %v776, %v778
    %v780 = vadd.f32 %v776, %v779
    %vm781 = vweird.f32 %v775
    %vm782 = vweird.f32 %v776
    %vm783 = vmor %vm781, %vm782
    %v784 = vsel %vm783, %v776, %v780
    %v785 = vand.u32 2147483647, %v775
    %vm786 = vcmp.eq.f32.partialorder %v785, 8.507059e+37
    %v787 = vand.u32 %v775, 2147483648
    %v788 = vor.u32 1.1754944e-38, %v787
    %v789 = vsel %vm786, %v788, %v784
    %v790 = vmul.f32 1.0, %v789
    %v791 = vmul.f32 %v790, %v104
    %v792 = vadd.f32 %v791, %v105
    %v793 = vmul.f32 %v792, %v661
    %795 = vrot.lane.b32.xlu0 %v792, 64
    %v796 = vpop.permute.xlu0 %795
    %v798 = vmul.f32 %v792, %v796
    %800 = vrot.lane.b32.xlu0 %v798, 32
    %v801 = vpop.permute.xlu0 %800
    %v803 = vadd.f32 %v793, %v801
    %v804 = vtanh.pop %v803
    %806 = vrot.lane.b32.xlu0 %v804, 64
    %v807 = vpop.permute.xlu0 %806
    %v809 = vmul.f32 %v792, %v807
    %811 = vrot.lane.b32.xlu0 %v809, 32
    %v812 = vpop.permute.xlu0 %811
    %815 = vrot.lane.b32.xlu0 %v738, 64
    %v816 = vpop.permute.xlu0 %815
    %v818 = vsel %vm175, %v812, %v816
    %v820 = vsel %vm180, %v818, 0
    %822 = vmatpush.msra.mxu0 0.0
    %823 = vmatpush.msra.mxu0 0.0
    %824 = vmatpush.msra.mxu0 0.0
    %825 = vmatpush.msra.mxu0 0.0
    %826 = vmatpush.msra.mxu0 0.0
    %827 = vmatpush.msra.mxu0 0.0
    %828 = vmatpush.msra.mxu0 0.0
    %829 = vmatpush.msra.mxu0 0.0
    %830 = vmatpush.msra.mxu0 %v165
    %831 = vmatpush.msra.mxu0 %v164
    %832 = vmatpush.msra.mxu0 %v163
    %833 = vmatpush.msra.mxu0 %v162
    %834 = vmatpush.msra.mxu0 %v161
    %835 = vmatpush.msra.mxu0 %v160
    %836 = vmatpush.msra.mxu0 %v159
    %837 = vmatpush.msra.mxu0 %v158
    %838 = vmatmul.f32.gmra.mxu0 %v820
    %v839 = vpop.f32.mrf.mxu0
    %v840 = vadd.f32 %v249, %v839
    %841 = vdwg.mxu0
    %v842 = vmul.f32 %v840, %v104
    %v843 = vxor.u32 %v842, 2147483648
    %v844 = vmul.f32 %v843, 1.442695
    %v845 = vpow.pop %v844
    %v846 = vadd.f32 %v845, 1.0
    %v847 = vrcp.pop %v846
    %v848 = vmul.f32 %v846, %v847
    %v849 = vsub.f32 1.0, %v848
    %v850 = vmul.f32 %v847, %v849
    %v851 = vadd.f32 %v847, %v850
    %vm852 = vweird.f32 %v846
    %vm853 = vweird.f32 %v847
    %vm854 = vmor %vm852, %vm853
    %v855 = vsel %vm854, %v847, %v851
    %v856 = vand.u32 2147483647, %v846
    %vm857 = vcmp.eq.f32.partialorder %v856, 8.507059e+37
    %v858 = vand.u32 %v846, 2147483648
    %v859 = vor.u32 1.1754944e-38, %v858
    %v860 = vsel %vm857, %v859, %v855
    %v861 = vmul.f32 1.0, %v860
    %v862 = vmul.f32 %v861, %v104
    %v863 = vadd.f32 %v862, %v105
    %v864 = vmul.f32 %v863, %v732
    %866 = vrot.lane.b32.xlu0 %v863, 64
    %v867 = vpop.permute.xlu0 %866
    %v869 = vmul.f32 %v863, %v867
    %871 = vrot.lane.b32.xlu0 %v869, 32
    %v872 = vpop.permute.xlu0 %871
    %v874 = vadd.f32 %v864, %v872
    %v875 = vtanh.pop %v874
    %877 = vrot.lane.b32.xlu0 %v875, 64
    %v878 = vpop.permute.xlu0 %877
    %v880 = vmul.f32 %v863, %v878
    %vm881 = vcmask 1046534
    %v882 = vsel %vm881, %v171, %v147
    %v884 = vrot.slane %v809, 3
    %885 = vrot.lane.b32.xlu0 %v884, 64
    %v886 = vpop.permute.xlu0 %885
    %v888 = vsel %vm175, %v882, %v886
    %v890 = vrot.slane %v888, 5
    %v891 = vsel %vm180, %v890, 0
    %893 = vmatpush.msra.mxu0 0.0
    %894 = vmatpush.msra.mxu0 0.0
    %895 = vmatpush.msra.mxu0 0.0
    %896 = vmatpush.msra.mxu0 0.0
    %897 = vmatpush.msra.mxu0 0.0
    %898 = vmatpush.msra.mxu0 0.0
    %899 = vmatpush.msra.mxu0 0.0
    %900 = vmatpush.msra.mxu0 0.0
    %901 = vmatpush.msra.mxu0 %v156
    %902 = vmatpush.msra.mxu0 %v155
    %903 = vmatpush.msra.mxu0 %v154
    %904 = vmatpush.msra.mxu0 %v153
    %905 = vmatpush.msra.mxu0 %v152
    %906 = vmatpush.msra.mxu0 %v151
    %907 = vmatpush.msra.mxu0 %v150
    %908 = vmatpush.msra.mxu0 %v149
    %909 = vmatmul.f32.gmra.mxu0 %v891
    %v910 = vpop.f32.mrf.mxu0
    %v911 = vadd.f32 %v178, %v910
    %912 = vdwg.mxu0
    %v913 = vmul.f32 %v911, %v104
    %v914 = vxor.u32 %v913, 2147483648
    %v915 = vmul.f32 %v914, 1.442695
    %v916 = vpow.pop %v915
    %v917 = vadd.f32 %v916, 1.0
    %v918 = vrcp.pop %v917
    %v919 = vmul.f32 %v917, %v918
    %v920 = vsub.f32 1.0, %v919
    %v921 = vmul.f32 %v918, %v920
    %v922 = vadd.f32 %v918, %v921
    %vm923 = vweird.f32 %v917
    %vm924 = vweird.f32 %v918
    %vm925 = vmor %vm923, %vm924
    %v926 = vsel %vm925, %v918, %v922
    %v927 = vand.u32 2147483647, %v917
    %vm928 = vcmp.eq.f32.partialorder %v927, 8.507059e+37
    %v929 = vand.u32 %v917, 2147483648
    %v930 = vor.u32 1.1754944e-38, %v929
    %v931 = vsel %vm928, %v930, %v926
    %v932 = vmul.f32 1.0, %v931
    %v933 = vmul.f32 %v932, %v104
    %v934 = vadd.f32 %v933, %v105
    %v935 = vmul.f32 %v934, %v803
    %937 = vrot.lane.b32.xlu0 %v934, 64
    %v938 = vpop.permute.xlu0 %937
    %v940 = vmul.f32 %v934, %v938
    %942 = vrot.lane.b32.xlu0 %v940, 32
    %v943 = vpop.permute.xlu0 %942
    %v945 = vadd.f32 %v935, %v943
    %v946 = vtanh.pop %v945
    %948 = vrot.lane.b32.xlu0 %v946, 64
    %v949 = vpop.permute.xlu0 %948
    %v951 = vmul.f32 %v934, %v949
    %953 = vrot.lane.b32.xlu0 %v951, 32
    %v954 = vpop.permute.xlu0 %953
    %957 = vrot.lane.b32.xlu0 %v880, 64
    %v958 = vpop.permute.xlu0 %957
    %v960 = vsel %vm175, %v954, %v958
    %v962 = vsel %vm180, %v960, 0
    %964 = vmatpush.msra.mxu0 0.0
    %965 = vmatpush.msra.mxu0 0.0
    %966 = vmatpush.msra.mxu0 0.0
    %967 = vmatpush.msra.mxu0 0.0
    %968 = vmatpush.msra.mxu0 0.0
    %969 = vmatpush.msra.mxu0 0.0
    %970 = vmatpush.msra.mxu0 0.0
    %971 = vmatpush.msra.mxu0 0.0
    %972 = vmatpush.msra.mxu0 %v165
    %973 = vmatpush.msra.mxu0 %v164
    %974 = vmatpush.msra.mxu0 %v163
    %975 = vmatpush.msra.mxu0 %v162
    %976 = vmatpush.msra.mxu0 %v161
    %977 = vmatpush.msra.mxu0 %v160
    %978 = vmatpush.msra.mxu0 %v159
    %979 = vmatpush.msra.mxu0 %v158
    %980 = vmatmul.f32.gmra.mxu0 %v962
    %v981 = vpop.f32.mrf.mxu0
    %v982 = vadd.f32 %v249, %v981
    %983 = vdwg.mxu0
    %v984 = vmul.f32 %v982, %v104
    %v985 = vxor.u32 %v984, 2147483648
    %v986 = vmul.f32 %v985, 1.442695
    %v987 = vpow.pop %v986
    %v988 = vadd.f32 %v987, 1.0
    %v989 = vrcp.pop %v988
    %v990 = vmul.f32 %v988, %v989
    %v991 = vsub.f32 1.0, %v990
    %v992 = vmul.f32 %v989, %v991
    %v993 = vadd.f32 %v989, %v992
    %vm994 = vweird.f32 %v988
    %vm995 = vweird.f32 %v989
    %vm996 = vmor %vm994, %vm995
    %v997 = vsel %vm996, %v989, %v993
    %v998 = vand.u32 2147483647, %v988
    %vm999 = vcmp.eq.f32.partialorder %v998, 8.507059e+37
    %v1000 = vand.u32 %v988, 2147483648
    %v1001 = vor.u32 1.1754944e-38, %v1000
    %v1002 = vsel %vm999, %v1001, %v997
    %v1003 = vmul.f32 1.0, %v1002
    %v1004 = vmul.f32 %v1003, %v104
    %v1005 = vadd.f32 %v1004, %v105
    %v1006 = vmul.f32 %v1005, %v874
    %1008 = vrot.lane.b32.xlu0 %v1005, 64
    %v1009 = vpop.permute.xlu0 %1008
    %v1011 = vmul.f32 %v1005, %v1009
    %1013 = vrot.lane.b32.xlu0 %v1011, 32
    %v1014 = vpop.permute.xlu0 %1013
    %v1016 = vadd.f32 %v1006, %v1014
    %v1017 = vtanh.pop %v1016
    %1019 = vrot.lane.b32.xlu0 %v1017, 64
    %v1020 = vpop.permute.xlu0 %1019
    %v1022 = vmul.f32 %v1005, %v1020
    %vm1023 = vcmask 1047559
    %v1024 = vsel %vm1023, %v171, %v147
    %v1026 = vrot.slane %v951, 2
    %1027 = vrot.lane.b32.xlu0 %v1026, 64
    %v1028 = vpop.permute.xlu0 %1027
    %v1030 = vsel %vm175, %v1024, %v1028
    %v1032 = vrot.slane %v1030, 6
    %v1033 = vsel %vm180, %v1032, 0
    %1035 = vmatpush.msra.mxu0 0.0
    %1036 = vmatpush.msra.mxu0 0.0
    %1037 = vmatpush.msra.mxu0 0.0
    %1038 = vmatpush.msra.mxu0 0.0
    %1039 = vmatpush.msra.mxu0 0.0
    %1040 = vmatpush.msra.mxu0 0.0
    %1041 = vmatpush.msra.mxu0 0.0
    %1042 = vmatpush.msra.mxu0 0.0
    %1043 = vmatpush.msra.mxu0 %v156
    %1044 = vmatpush.msra.mxu0 %v155
    %1045 = vmatpush.msra.mxu0 %v154
    %1046 = vmatpush.msra.mxu0 %v153
    %1047 = vmatpush.msra.mxu0 %v152
    %1048 = vmatpush.msra.mxu0 %v151
    %1049 = vmatpush.msra.mxu0 %v150
    %1050 = vmatpush.msra.mxu0 %v149
    %1051 = vmatmul.f32.gmra.mxu0 %v1033
    %v1052 = vpop.f32.mrf.mxu0
    %v1053 = vadd.f32 %v178, %v1052
    %1054 = vdwg.mxu0
    %v1055 = vmul.f32 %v1053, %v104
    %v1056 = vxor.u32 %v1055, 2147483648
    %v1057 = vmul.f32 %v1056, 1.442695
    %v1058 = vpow.pop %v1057
    %v1059 = vadd.f32 %v1058, 1.0
    %v1060 = vrcp.pop %v1059
    %v1061 = vmul.f32 %v1059, %v1060
    %v1062 = vsub.f32 1.0, %v1061
    %v1063 = vmul.f32 %v1060, %v1062
    %v1064 = vadd.f32 %v1060, %v1063
    %vm1065 = vweird.f32 %v1059
    %vm1066 = vweird.f32 %v1060
    %vm1067 = vmor %vm1065, %vm1066
    %v1068 = vsel %vm1067, %v1060, %v1064
    %v1069 = vand.u32 2147483647, %v1059
    %vm1070 = vcmp.eq.f32.partialorder %v1069, 8.507059e+37
    %v1071 = vand.u32 %v1059, 2147483648
    %v1072 = vor.u32 1.1754944e-38, %v1071
    %v1073 = vsel %vm1070, %v1072, %v1068
    %v1074 = vmul.f32 1.0, %v1073
    %v1075 = vmul.f32 %v1074, %v104
    %v1076 = vadd.f32 %v1075, %v105
    %v1077 = vmul.f32 %v1076, %v945
    %1079 = vrot.lane.b32.xlu0 %v1076, 64
    %v1080 = vpop.permute.xlu0 %1079
    %v1082 = vmul.f32 %v1076, %v1080
    %1084 = vrot.lane.b32.xlu0 %v1082, 32
    %v1085 = vpop.permute.xlu0 %1084
    %v1087 = vadd.f32 %v1077, %v1085
    %v1088 = vtanh.pop %v1087
    %1090 = vrot.lane.b32.xlu0 %v1088, 64
    %v1091 = vpop.permute.xlu0 %1090
    %v1093 = vmul.f32 %v1076, %v1091
    %1095 = vrot.lane.b32.xlu0 %v1093, 32
    %v1096 = vpop.permute.xlu0 %1095
    %1099 = vrot.lane.b32.xlu0 %v1022, 64
    %v1100 = vpop.permute.xlu0 %1099
    %v1102 = vsel %vm175, %v1096, %v1100
    %v1104 = vsel %vm180, %v1102, 0
    %1106 = vmatpush.msra.mxu0 0.0
    %1107 = vmatpush.msra.mxu0 0.0
    %1108 = vmatpush.msra.mxu0 0.0
    %1109 = vmatpush.msra.mxu0 0.0
    %1110 = vmatpush.msra.mxu0 0.0
    %1111 = vmatpush.msra.mxu0 0.0
    %1112 = vmatpush.msra.mxu0 0.0
    %1113 = vmatpush.msra.mxu0 0.0
    %1114 = vmatpush.msra.mxu0 %v165
    %1115 = vmatpush.msra.mxu0 %v164
    %1116 = vmatpush.msra.mxu0 %v163
    %1117 = vmatpush.msra.mxu0 %v162
    %1118 = vmatpush.msra.mxu0 %v161
    %1119 = vmatpush.msra.mxu0 %v160
    %1120 = vmatpush.msra.mxu0 %v159
    %1121 = vmatpush.msra.mxu0 %v158
    %1122 = vmatmul.f32.gmra.mxu0 %v1104
    %v1123 = vpop.f32.mrf.mxu0
    %v1124 = vadd.f32 %v249, %v1123
    %1125 = vdwg.mxu0
    %v1126 = vmul.f32 %v1124, %v104
    %v1127 = vxor.u32 %v1126, 2147483648
    %v1128 = vmul.f32 %v1127, 1.442695
    %v1129 = vpow.pop %v1128
    %v1130 = vadd.f32 %v1129, 1.0
    %v1131 = vrcp.pop %v1130
    %v1132 = vmul.f32 %v1130, %v1131
    %v1133 = vsub.f32 1.0, %v1132
    %v1134 = vmul.f32 %v1131, %v1133
    %v1135 = vadd.f32 %v1131, %v1134
    %vm1136 = vweird.f32 %v1130
    %vm1137 = vweird.f32 %v1131
    %vm1138 = vmor %vm1136, %vm1137
    %v1139 = vsel %vm1138, %v1131, %v1135
    %v1140 = vand.u32 2147483647, %v1130
    %vm1141 = vcmp.eq.f32.partialorder %v1140, 8.507059e+37
    %v1142 = vand.u32 %v1130, 2147483648
    %v1143 = vor.u32 1.1754944e-38, %v1142
    %v1144 = vsel %vm1141, %v1143, %v1139
    %v1145 = vmul.f32 1.0, %v1144
    %v1146 = vmul.f32 %v1145, %v104
    %v1147 = vadd.f32 %v1146, %v105
    %v1148 = vmul.f32 %v1147, %v1016
    %1150 = vrot.lane.b32.xlu0 %v1147, 64
    %v1151 = vpop.permute.xlu0 %1150
    %v1153 = vmul.f32 %v1147, %v1151
    %1155 = vrot.lane.b32.xlu0 %v1153, 32
    %v1156 = vpop.permute.xlu0 %1155
    %v1158 = vadd.f32 %v1148, %v1156
    %v1159 = vtanh.pop %v1158
    %1161 = vrot.lane.b32.xlu0 %v1159, 64
    %v1162 = vpop.permute.xlu0 %1161
    %v1164 = vmul.f32 %v1147, %v1162
    %v1167 = vrot.slane %v1093, 1
    %1168 = vrot.lane.b32.xlu0 %v1167, 64
    %v1169 = vpop.permute.xlu0 %1168
    %v1171 = vsel %vm175, %v147, %v1169
    %v1172 = vsel %vm175, %v171, %v1169
    %vm1175 = vcmask 1040384
    %v1176 = vrot.slane %v1171, 7
    %v1177 = vrot.slane %v1172, 7
    %v1178 = vsel %vm1175, %v1176, %v1177
    %v1179 = vsel %vm180, %v1178, 0
    %1181 = vmatpush.msra.mxu0 0.0
    %1182 = vmatpush.msra.mxu0 0.0
    %1183 = vmatpush.msra.mxu0 0.0
    %1184 = vmatpush.msra.mxu0 0.0
    %1185 = vmatpush.msra.mxu0 0.0
    %1186 = vmatpush.msra.mxu0 0.0
    %1187 = vmatpush.msra.mxu0 0.0
    %1188 = vmatpush.msra.mxu0 0.0
    %1189 = vmatpush.msra.mxu0 %v156
    %1190 = vmatpush.msra.mxu0 %v155
    %1191 = vmatpush.msra.mxu0 %v154
    %1192 = vmatpush.msra.mxu0 %v153
    %1193 = vmatpush.msra.mxu0 %v152
    %1194 = vmatpush.msra.mxu0 %v151
    %1195 = vmatpush.msra.mxu0 %v150
    %1196 = vmatpush.msra.mxu0 %v149
    %1197 = vmatmul.f32.gmra.mxu0 %v1179
    %v1198 = vpop.f32.mrf.mxu0
    %v1199 = vadd.f32 %v178, %v1198
    %1200 = vdwg.mxu0
    %v1201 = vmul.f32 %v1199, %v104
    %v1202 = vxor.u32 %v1201, 2147483648
    %v1203 = vmul.f32 %v1202, 1.442695
    %v1204 = vpow.pop %v1203
    %v1205 = vadd.f32 %v1204, 1.0
    %v1206 = vrcp.pop %v1205
    %v1207 = vmul.f32 %v1205, %v1206
    %v1208 = vsub.f32 1.0, %v1207
    %v1209 = vmul.f32 %v1206, %v1208
    %v1210 = vadd.f32 %v1206, %v1209
    %vm1211 = vweird.f32 %v1205
    %vm1212 = vweird.f32 %v1206
    %vm1213 = vmor %vm1211, %vm1212
    %v1214 = vsel %vm1213, %v1206, %v1210
    %v1215 = vand.u32 2147483647, %v1205
    %vm1216 = vcmp.eq.f32.partialorder %v1215, 8.507059e+37
    %v1217 = vand.u32 %v1205, 2147483648
    %v1218 = vor.u32 1.1754944e-38, %v1217
    %v1219 = vsel %vm1216, %v1218, %v1214
    %v1220 = vmul.f32 1.0, %v1219
    %v1221 = vmul.f32 %v1220, %v104
    %v1222 = vadd.f32 %v1221, %v105
    %v1223 = vmul.f32 %v1222, %v1087
    %1225 = vrot.lane.b32.xlu0 %v1222, 64
    %v1226 = vpop.permute.xlu0 %1225
    %v1228 = vmul.f32 %v1222, %v1226
    %1230 = vrot.lane.b32.xlu0 %v1228, 32
    %v1231 = vpop.permute.xlu0 %1230
    %v1233 = vadd.f32 %v1223, %v1231
    %v1234 = vtanh.pop %v1233
    %1236 = vrot.lane.b32.xlu0 %v1234, 64
    %v1237 = vpop.permute.xlu0 %1236
    %v1239 = vmul.f32 %v1222, %v1237
    %1241 = vrot.lane.b32.xlu0 %v1239, 32
    %v1242 = vpop.permute.xlu0 %1241
    %1245 = vrot.lane.b32.xlu0 %v1164, 64
    %v1246 = vpop.permute.xlu0 %1245
    %v1248 = vsel %vm175, %v1242, %v1246
    %v1250 = vsel %vm180, %v1248, 0
    %1252 = vmatpush.msra.mxu0 0.0
    %1253 = vmatpush.msra.mxu0 0.0
    %1254 = vmatpush.msra.mxu0 0.0
    %1255 = vmatpush.msra.mxu0 0.0
    %1256 = vmatpush.msra.mxu0 0.0
    %1257 = vmatpush.msra.mxu0 0.0
    %1258 = vmatpush.msra.mxu0 0.0
    %1259 = vmatpush.msra.mxu0 0.0
    %1260 = vmatpush.msra.mxu0 %v165
    %1261 = vmatpush.msra.mxu0 %v164
    %1262 = vmatpush.msra.mxu0 %v163
    %1263 = vmatpush.msra.mxu0 %v162
    %1264 = vmatpush.msra.mxu0 %v161
    %1265 = vmatpush.msra.mxu0 %v160
    %1266 = vmatpush.msra.mxu0 %v159
    %1267 = vmatpush.msra.mxu0 %v158
    %1268 = vmatmul.f32.gmra.mxu0 %v1250
    %v1269 = vpop.f32.mrf.mxu0
    %v1270 = vadd.f32 %v249, %v1269
    %1271 = vdwg.mxu0
    %v1272 = vmul.f32 %v1270, %v104
    %v1273 = vxor.u32 %v1272, 2147483648
    %v1274 = vmul.f32 %v1273, 1.442695
    %v1275 = vpow.pop %v1274
    %v1276 = vadd.f32 %v1275, 1.0
    %v1277 = vrcp.pop %v1276
    %v1278 = vmul.f32 %v1276, %v1277
    %v1279 = vsub.f32 1.0, %v1278
    %v1280 = vmul.f32 %v1277, %v1279
    %v1281 = vadd.f32 %v1277, %v1280
    %vm1282 = vweird.f32 %v1276
    %vm1283 = vweird.f32 %v1277
    %vm1284 = vmor %vm1282, %vm1283
    %v1285 = vsel %vm1284, %v1277, %v1281
    %v1286 = vand.u32 2147483647, %v1276
    %vm1287 = vcmp.eq.f32.partialorder %v1286, 8.507059e+37
    %v1288 = vand.u32 %v1276, 2147483648
    %v1289 = vor.u32 1.1754944e-38, %v1288
    %v1290 = vsel %vm1287, %v1289, %v1285
    %v1291 = vmul.f32 1.0, %v1290
    %v1292 = vmul.f32 %v1291, %v104
    %v1293 = vadd.f32 %v1292, %v105
    %v1294 = vmul.f32 %v1293, %v1158
    %1296 = vrot.lane.b32.xlu0 %v1293, 64
    %v1297 = vpop.permute.xlu0 %1296
    %v1299 = vmul.f32 %v1293, %v1297
    %1301 = vrot.lane.b32.xlu0 %v1299, 32
    %v1302 = vpop.permute.xlu0 %1301
    %v1304 = vadd.f32 %v1294, %v1302
    %v1305 = vtanh.pop %v1304
    %1307 = vrot.lane.b32.xlu0 %v1305, 64
    %v1308 = vpop.permute.xlu0 %1307
    %v1310 = vmul.f32 %v1293, %v1308
    %v1311 = vld [vmem:[#allocation5] sm:$0xff]
    %v1312 = vld [vmem:[#allocation5 + $0x8] sm:$0xff]
    %v1313 = vld [vmem:[#allocation5 + $0x10] sm:$0xff]
    %v1314 = vld [vmem:[#allocation5 + $0x18] sm:$0xff]
    %v1315 = vld [vmem:[#allocation5 + $0x20] sm:$0xff]
    %v1316 = vld [vmem:[#allocation5 + $0x28] sm:$0xff]
    %v1317 = vld [vmem:[#allocation5 + $0x30] sm:$0xff]
    %v1318 = vld [vmem:[#allocation5 + $0x38] sm:$0xff]
    %s1319 = scalar_lea.vmem [#allocation5], 64
    %v1320 = vld [vmem:[%s1319] sm:$0xff]
    %v1321 = vld [vmem:[%s1319 + $0x8] sm:$0xff]
    %v1322 = vld [vmem:[%s1319 + $0x10] sm:$0xff]
    %v1323 = vld [vmem:[%s1319 + $0x18] sm:$0xff]
    %v1324 = vld [vmem:[%s1319 + $0x20] sm:$0xff]
    %v1325 = vld [vmem:[%s1319 + $0x28] sm:$0xff]
    %v1326 = vld [vmem:[%s1319 + $0x30] sm:$0xff]
    %v1327 = vld [vmem:[%s1319 + $0x38] sm:$0xff]
    %v1328 = vld [vmem:[%s11] sm:$0x1]
    %s1329 = scalar_lea.vmem %s11, 1
    %v1330 = vld [vmem:[%s1329] sm:$0x1]
    %1332 = vrot.lane.b32.xlu0 %v1310, 32
    %v1333 = vpop.permute.xlu0 %1332
    %vm1335 = vcmask 254976
    %1336 = vst.msk [vmem:[#allocation2] sm:$0x3] %vm1335, %v1333
    %1337 = vrot.lane.b32.xlu0 %v1239, 64
    %v1338 = vpop.permute.xlu0 %1337
    %v1340 = vsel %vm175, %v1333, %v1338
    %v1342 = vperm.slane %v1328, 0
    %v1345 = vsel %vm180, %v1340, 0
    %1347 = vmatpush.msra.mxu0 0.0
    %1348 = vmatpush.msra.mxu0 0.0
    %1349 = vmatpush.msra.mxu0 0.0
    %1350 = vmatpush.msra.mxu0 0.0
    %1351 = vmatpush.msra.mxu0 0.0
    %1352 = vmatpush.msra.mxu0 0.0
    %1353 = vmatpush.msra.mxu0 0.0
    %1354 = vmatpush.msra.mxu0 0.0
    %1355 = vmatpush.msra.mxu0 %v1318
    %1356 = vmatpush.msra.mxu0 %v1317
    %1357 = vmatpush.msra.mxu0 %v1316
    %1358 = vmatpush.msra.mxu0 %v1315
    %1359 = vmatpush.msra.mxu0 %v1314
    %1360 = vmatpush.msra.mxu0 %v1313
    %1361 = vmatpush.msra.mxu0 %v1312
    %1362 = vmatpush.msra.mxu0 %v1311
    %1363 = vmatmul.f32.gmra.mxu0 %v1345
    %v1364 = vpop.f32.mrf.mxu0
    %v1365 = vadd.f32 %v1342, %v1364
    %1366 = vdwg.mxu0
    %v1367 = vmul.f32 %v1365, %v104
    %v1368 = vxor.u32 %v1367, 2147483648
    %v1369 = vmul.f32 %v1368, 1.442695
    %v1370 = vpow.pop %v1369
    %v1371 = vadd.f32 %v1370, 1.0
    %v1372 = vrcp.pop %v1371
    %v1373 = vmul.f32 %v1371, %v1372
    %v1374 = vsub.f32 1.0, %v1373
    %v1375 = vmul.f32 %v1372, %v1374
    %v1376 = vadd.f32 %v1372, %v1375
    %vm1377 = vweird.f32 %v1371
    %vm1378 = vweird.f32 %v1372
    %vm1379 = vmor %vm1377, %vm1378
    %v1380 = vsel %vm1379, %v1372, %v1376
    %v1381 = vand.u32 2147483647, %v1371
    %vm1382 = vcmp.eq.f32.partialorder %v1381, 8.507059e+37
    %v1383 = vand.u32 %v1371, 2147483648
    %v1384 = vor.u32 1.1754944e-38, %v1383
    %v1385 = vsel %vm1382, %v1384, %v1380
    %v1386 = vmul.f32 1.0, %v1385
    %v1387 = vmul.f32 %v1386, %v104
    %v1388 = vadd.f32 %v1387, %v105
    %v1389 = vmul.f32 %v1388, %v1233
    %1391 = vrot.lane.b32.xlu0 %v1388, 64
    %v1392 = vpop.permute.xlu0 %1391
    %v1394 = vmul.f32 %v1388, %v1392
    %1396 = vrot.lane.b32.xlu0 %v1394, 32
    %v1397 = vpop.permute.xlu0 %1396
    %v1399 = vadd.f32 %v1389, %v1397
    %v1400 = vtanh.pop %v1399
    %1402 = vrot.lane.b32.xlu0 %v1400, 64
    %v1403 = vpop.permute.xlu0 %1402
    %v1405 = vmul.f32 %v1388, %v1403
    %1407 = vrot.lane.b32.xlu0 %v1405, 32
    %v1408 = vpop.permute.xlu0 %1407
    %1410 = vrot.lane.b32.xlu0 %v1310, 64
    %v1411 = vpop.permute.xlu0 %1410
    %v1413 = vsel %vm175, %v1408, %v1411
    %v1415 = vperm.slane %v1330, 0
    %v1418 = vsel %vm180, %v1413, 0
    %1420 = vmatpush.msra.mxu0 0.0
    %1421 = vmatpush.msra.mxu0 0.0
    %1422 = vmatpush.msra.mxu0 0.0
    %1423 = vmatpush.msra.mxu0 0.0
    %1424 = vmatpush.msra.mxu0 0.0
    %1425 = vmatpush.msra.mxu0 0.0
    %1426 = vmatpush.msra.mxu0 0.0
    %1427 = vmatpush.msra.mxu0 0.0
    %1428 = vmatpush.msra.mxu0 %v1327
    %1429 = vmatpush.msra.mxu0 %v1326
    %1430 = vmatpush.msra.mxu0 %v1325
    %1431 = vmatpush.msra.mxu0 %v1324
    %1432 = vmatpush.msra.mxu0 %v1323
    %1433 = vmatpush.msra.mxu0 %v1322
    %1434 = vmatpush.msra.mxu0 %v1321
    %1435 = vmatpush.msra.mxu0 %v1320
    %1436 = vmatmul.f32.gmra.mxu0 %v1418
    %v1437 = vpop.f32.mrf.mxu0
    %v1438 = vadd.f32 %v1415, %v1437
    %1439 = vdwg.mxu0
    %v1440 = vmul.f32 %v1438, %v104
    %v1441 = vxor.u32 %v1440, 2147483648
    %v1442 = vmul.f32 %v1441, 1.442695
    %v1443 = vpow.pop %v1442
    %v1444 = vadd.f32 %v1443, 1.0
    %v1445 = vrcp.pop %v1444
    %v1446 = vmul.f32 %v1444, %v1445
    %v1447 = vsub.f32 1.0, %v1446
    %v1448 = vmul.f32 %v1445, %v1447
    %v1449 = vadd.f32 %v1445, %v1448
    %vm1450 = vweird.f32 %v1444
    %vm1451 = vweird.f32 %v1445
    %vm1452 = vmor %vm1450, %vm1451
    %v1453 = vsel %vm1452, %v1445, %v1449
    %v1454 = vand.u32 2147483647, %v1444
    %vm1455 = vcmp.eq.f32.partialorder %v1454, 8.507059e+37
    %v1456 = vand.u32 %v1444, 2147483648
    %v1457 = vor.u32 1.1754944e-38, %v1456
    %v1458 = vsel %vm1455, %v1457, %v1453
    %v1459 = vmul.f32 1.0, %v1458
    %v1460 = vmul.f32 %v1459, %v104
    %v1461 = vadd.f32 %v1460, %v105
    %v1462 = vmul.f32 %v1461, %v1304
    %1464 = vrot.lane.b32.xlu0 %v1461, 64
    %v1465 = vpop.permute.xlu0 %1464
    %v1467 = vmul.f32 %v1461, %v1465
    %1469 = vrot.lane.b32.xlu0 %v1467, 32
    %v1470 = vpop.permute.xlu0 %1469
    %v1472 = vadd.f32 %v1462, %v1470
    %v1473 = vtanh.pop %v1472
    %1475 = vrot.lane.b32.xlu0 %v1473, 64
    %v1476 = vpop.permute.xlu0 %1475
    %v1478 = vmul.f32 %v1461, %v1476
    %1480 = vrot.lane.b32.xlu0 %v1478, 32
    %v1481 = vpop.permute.xlu0 %1480
    %1483 = vst.msk [vmem:[#allocation2 + $0x2] sm:$0x3] %vm1335, %v1481
    %1484 = vrot.lane.b32.xlu0 %v1405, 64
    %v1485 = vpop.permute.xlu0 %1484
    %v1487 = vsel %vm175, %v1481, %v1485
    %v1489 = vsel %vm180, %v1487, 0
    %1491 = vmatpush.msra.mxu0 0.0
    %1492 = vmatpush.msra.mxu0 0.0
    %1493 = vmatpush.msra.mxu0 0.0
    %1494 = vmatpush.msra.mxu0 0.0
    %1495 = vmatpush.msra.mxu0 0.0
    %1496 = vmatpush.msra.mxu0 0.0
    %1497 = vmatpush.msra.mxu0 0.0
    %1498 = vmatpush.msra.mxu0 0.0
    %1499 = vmatpush.msra.mxu0 %v1318
    %1500 = vmatpush.msra.mxu0 %v1317
    %1501 = vmatpush.msra.mxu0 %v1316
    %1502 = vmatpush.msra.mxu0 %v1315
    %1503 = vmatpush.msra.mxu0 %v1314
    %1504 = vmatpush.msra.mxu0 %v1313
    %1505 = vmatpush.msra.mxu0 %v1312
    %1506 = vmatpush.msra.mxu0 %v1311
    %1507 = vmatmul.f32.gmra.mxu0 %v1489
    %v1508 = vpop.f32.mrf.mxu0
    %v1509 = vadd.f32 %v1342, %v1508
    %1510 = vdwg.mxu0
    %v1511 = vmul.f32 %v1509, %v104
    %v1512 = vxor.u32 %v1511, 2147483648
    %v1513 = vmul.f32 %v1512, 1.442695
    %v1514 = vpow.pop %v1513
    %v1515 = vadd.f32 %v1514, 1.0
    %v1516 = vrcp.pop %v1515
    %v1517 = vmul.f32 %v1515, %v1516
    %v1518 = vsub.f32 1.0, %v1517
    %v1519 = vmul.f32 %v1516, %v1518
    %v1520 = vadd.f32 %v1516, %v1519
    %vm1521 = vweird.f32 %v1515
    %vm1522 = vweird.f32 %v1516
    %vm1523 = vmor %vm1521, %vm1522
    %v1524 = vsel %vm1523, %v1516, %v1520
    %v1525 = vand.u32 2147483647, %v1515
    %vm1526 = vcmp.eq.f32.partialorder %v1525, 8.507059e+37
    %v1527 = vand.u32 %v1515, 2147483648
    %v1528 = vor.u32 1.1754944e-38, %v1527
    %v1529 = vsel %vm1526, %v1528, %v1524
    %v1530 = vmul.f32 1.0, %v1529
    %v1531 = vmul.f32 %v1530, %v104
    %v1532 = vadd.f32 %v1531, %v105
    %v1533 = vmul.f32 %v1532, %v1399
    %1535 = vrot.lane.b32.xlu0 %v1532, 64
    %v1536 = vpop.permute.xlu0 %1535
    %v1538 = vmul.f32 %v1532, %v1536
    %1540 = vrot.lane.b32.xlu0 %v1538, 32
    %v1541 = vpop.permute.xlu0 %1540
    %v1543 = vadd.f32 %v1533, %v1541
    %v1544 = vtanh.pop %v1543
    %1546 = vrot.lane.b32.xlu0 %v1544, 64
    %v1547 = vpop.permute.xlu0 %1546
    %v1549 = vmul.f32 %v1532, %v1547
    %1551 = vrot.lane.b32.xlu0 %v1549, 32
    %v1552 = vpop.permute.xlu0 %1551
    %1554 = vrot.lane.b32.xlu0 %v1478, 64
    %v1555 = vpop.permute.xlu0 %1554
    %v1557 = vsel %vm175, %v1552, %v1555
    %v1559 = vsel %vm180, %v1557, 0
    %1561 = vmatpush.msra.mxu0 0.0
    %1562 = vmatpush.msra.mxu0 0.0
    %1563 = vmatpush.msra.mxu0 0.0
    %1564 = vmatpush.msra.mxu0 0.0
    %1565 = vmatpush.msra.mxu0 0.0
    %1566 = vmatpush.msra.mxu0 0.0
    %1567 = vmatpush.msra.mxu0 0.0
    %1568 = vmatpush.msra.mxu0 0.0
    %1569 = vmatpush.msra.mxu0 %v1327
    %1570 = vmatpush.msra.mxu0 %v1326
    %1571 = vmatpush.msra.mxu0 %v1325
    %1572 = vmatpush.msra.mxu0 %v1324
    %1573 = vmatpush.msra.mxu0 %v1323
    %1574 = vmatpush.msra.mxu0 %v1322
    %1575 = vmatpush.msra.mxu0 %v1321
    %1576 = vmatpush.msra.mxu0 %v1320
    %1577 = vmatmul.f32.gmra.mxu0 %v1559
    %v1578 = vpop.f32.mrf.mxu0
    %v1579 = vadd.f32 %v1415, %v1578
    %1580 = vdwg.mxu0
    %v1581 = vmul.f32 %v1579, %v104
    %v1582 = vxor.u32 %v1581, 2147483648
    %v1583 = vmul.f32 %v1582, 1.442695
    %v1584 = vpow.pop %v1583
    %v1585 = vadd.f32 %v1584, 1.0
    %v1586 = vrcp.pop %v1585
    %v1587 = vmul.f32 %v1585, %v1586
    %v1588 = vsub.f32 1.0, %v1587
    %v1589 = vmul.f32 %v1586, %v1588
    %v1590 = vadd.f32 %v1586, %v1589
    %vm1591 = vweird.f32 %v1585
    %vm1592 = vweird.f32 %v1586
    %vm1593 = vmor %vm1591, %vm1592
    %v1594 = vsel %vm1593, %v1586, %v1590
    %v1595 = vand.u32 2147483647, %v1585
    %vm1596 = vcmp.eq.f32.partialorder %v1595, 8.507059e+37
    %v1597 = vand.u32 %v1585, 2147483648
    %v1598 = vor.u32 1.1754944e-38, %v1597
    %v1599 = vsel %vm1596, %v1598, %v1594
    %v1600 = vmul.f32 1.0, %v1599
    %v1601 = vmul.f32 %v1600, %v104
    %v1602 = vadd.f32 %v1601, %v105
    %v1603 = vmul.f32 %v1602, %v1472
    %1605 = vrot.lane.b32.xlu0 %v1602, 64
    %v1606 = vpop.permute.xlu0 %1605
    %v1608 = vmul.f32 %v1602, %v1606
    %1610 = vrot.lane.b32.xlu0 %v1608, 32
    %v1611 = vpop.permute.xlu0 %1610
    %v1613 = vadd.f32 %v1603, %v1611
    %v1614 = vtanh.pop %v1613
    %1616 = vrot.lane.b32.xlu0 %v1614, 64
    %v1617 = vpop.permute.xlu0 %1616
    %v1619 = vmul.f32 %v1602, %v1617
    %1621 = vrot.lane.b32.xlu0 %v1619, 32
    %v1622 = vpop.permute.xlu0 %1621
    %1624 = vst.msk [vmem:[#allocation2 + $0x4] sm:$0x3] %vm1335, %v1622
    %1625 = vrot.lane.b32.xlu0 %v1549, 64
    %v1626 = vpop.permute.xlu0 %1625
    %v1628 = vsel %vm175, %v1622, %v1626
    %v1630 = vsel %vm180, %v1628, 0
    %1632 = vmatpush.msra.mxu0 0.0
    %1633 = vmatpush.msra.mxu0 0.0
    %1634 = vmatpush.msra.mxu0 0.0
    %1635 = vmatpush.msra.mxu0 0.0
    %1636 = vmatpush.msra.mxu0 0.0
    %1637 = vmatpush.msra.mxu0 0.0
    %1638 = vmatpush.msra.mxu0 0.0
    %1639 = vmatpush.msra.mxu0 0.0
    %1640 = vmatpush.msra.mxu0 %v1318
    %1641 = vmatpush.msra.mxu0 %v1317
    %1642 = vmatpush.msra.mxu0 %v1316
    %1643 = vmatpush.msra.mxu0 %v1315
    %1644 = vmatpush.msra.mxu0 %v1314
    %1645 = vmatpush.msra.mxu0 %v1313
    %1646 = vmatpush.msra.mxu0 %v1312
    %1647 = vmatpush.msra.mxu0 %v1311
    %1648 = vmatmul.f32.gmra.mxu0 %v1630
    %v1649 = vpop.f32.mrf.mxu0
    %v1650 = vadd.f32 %v1342, %v1649
    %1651 = vdwg.mxu0
    %v1652 = vmul.f32 %v1650, %v104
    %v1653 = vxor.u32 %v1652, 2147483648
    %v1654 = vmul.f32 %v1653, 1.442695
    %v1655 = vpow.pop %v1654
    %v1656 = vadd.f32 %v1655, 1.0
    %v1657 = vrcp.pop %v1656
    %v1658 = vmul.f32 %v1656, %v1657
    %v1659 = vsub.f32 1.0, %v1658
    %v1660 = vmul.f32 %v1657, %v1659
    %v1661 = vadd.f32 %v1657, %v1660
    %vm1662 = vweird.f32 %v1656
    %vm1663 = vweird.f32 %v1657
    %vm1664 = vmor %vm1662, %vm1663
    %v1665 = vsel %vm1664, %v1657, %v1661
    %v1666 = vand.u32 2147483647, %v1656
    %vm1667 = vcmp.eq.f32.partialorder %v1666, 8.507059e+37
    %v1668 = vand.u32 %v1656, 2147483648
    %v1669 = vor.u32 1.1754944e-38, %v1668
    %v1670 = vsel %vm1667, %v1669, %v1665
    %v1671 = vmul.f32 1.0, %v1670
    %v1672 = vmul.f32 %v1671, %v104
    %v1673 = vadd.f32 %v1672, %v105
    %v1674 = vmul.f32 %v1673, %v1543
    %1676 = vrot.lane.b32.xlu0 %v1673, 64
    %v1677 = vpop.permute.xlu0 %1676
    %v1679 = vmul.f32 %v1673, %v1677
    %1681 = vrot.lane.b32.xlu0 %v1679, 32
    %v1682 = vpop.permute.xlu0 %1681
    %v1684 = vadd.f32 %v1674, %v1682
    %v1685 = vtanh.pop %v1684
    %1687 = vrot.lane.b32.xlu0 %v1685, 64
    %v1688 = vpop.permute.xlu0 %1687
    %v1690 = vmul.f32 %v1673, %v1688
    %1692 = vrot.lane.b32.xlu0 %v1690, 32
    %v1693 = vpop.permute.xlu0 %1692
    %1695 = vrot.lane.b32.xlu0 %v1619, 64
    %v1696 = vpop.permute.xlu0 %1695
    %v1698 = vsel %vm175, %v1693, %v1696
    %v1700 = vsel %vm180, %v1698, 0
    %1702 = vmatpush.msra.mxu0 0.0
    %1703 = vmatpush.msra.mxu0 0.0
    %1704 = vmatpush.msra.mxu0 0.0
    %1705 = vmatpush.msra.mxu0 0.0
    %1706 = vmatpush.msra.mxu0 0.0
    %1707 = vmatpush.msra.mxu0 0.0
    %1708 = vmatpush.msra.mxu0 0.0
    %1709 = vmatpush.msra.mxu0 0.0
    %1710 = vmatpush.msra.mxu0 %v1327
    %1711 = vmatpush.msra.mxu0 %v1326
    %1712 = vmatpush.msra.mxu0 %v1325
    %1713 = vmatpush.msra.mxu0 %v1324
    %1714 = vmatpush.msra.mxu0 %v1323
    %1715 = vmatpush.msra.mxu0 %v1322
    %1716 = vmatpush.msra.mxu0 %v1321
    %1717 = vmatpush.msra.mxu0 %v1320
    %1718 = vmatmul.f32.gmra.mxu0 %v1700
    %v1719 = vpop.f32.mrf.mxu0
    %v1720 = vadd.f32 %v1415, %v1719
    %1721 = vdwg.mxu0
    %v1722 = vmul.f32 %v1720, %v104
    %v1723 = vxor.u32 %v1722, 2147483648
    %v1724 = vmul.f32 %v1723, 1.442695
    %v1725 = vpow.pop %v1724
    %v1726 = vadd.f32 %v1725, 1.0
    %v1727 = vrcp.pop %v1726
    %v1728 = vmul.f32 %v1726, %v1727
    %v1729 = vsub.f32 1.0, %v1728
    %v1730 = vmul.f32 %v1727, %v1729
    %v1731 = vadd.f32 %v1727, %v1730
    %vm1732 = vweird.f32 %v1726
    %vm1733 = vweird.f32 %v1727
    %vm1734 = vmor %vm1732, %vm1733
    %v1735 = vsel %vm1734, %v1727, %v1731
    %v1736 = vand.u32 2147483647, %v1726
    %vm1737 = vcmp.eq.f32.partialorder %v1736, 8.507059e+37
    %v1738 = vand.u32 %v1726, 2147483648
    %v1739 = vor.u32 1.1754944e-38, %v1738
    %v1740 = vsel %vm1737, %v1739, %v1735
    %v1741 = vmul.f32 1.0, %v1740
    %v1742 = vmul.f32 %v1741, %v104
    %v1743 = vadd.f32 %v1742, %v105
    %v1744 = vmul.f32 %v1743, %v1613
    %1746 = vrot.lane.b32.xlu0 %v1743, 64
    %v1747 = vpop.permute.xlu0 %1746
    %v1749 = vmul.f32 %v1743, %v1747
    %1751 = vrot.lane.b32.xlu0 %v1749, 32
    %v1752 = vpop.permute.xlu0 %1751
    %v1754 = vadd.f32 %v1744, %v1752
    %v1755 = vtanh.pop %v1754
    %1757 = vrot.lane.b32.xlu0 %v1755, 64
    %v1758 = vpop.permute.xlu0 %1757
    %v1760 = vmul.f32 %v1743, %v1758
    %1762 = vrot.lane.b32.xlu0 %v1760, 32
    %v1763 = vpop.permute.xlu0 %1762
    %1765 = vst.msk [vmem:[#allocation2 + $0x6] sm:$0x3] %vm1335, %v1763
    %1766 = vrot.lane.b32.xlu0 %v1690, 64
    %v1767 = vpop.permute.xlu0 %1766
    %v1769 = vsel %vm175, %v1763, %v1767
    %v1771 = vsel %vm180, %v1769, 0
    %1773 = vmatpush.msra.mxu0 0.0
    %1774 = vmatpush.msra.mxu0 0.0
    %1775 = vmatpush.msra.mxu0 0.0
    %1776 = vmatpush.msra.mxu0 0.0
    %1777 = vmatpush.msra.mxu0 0.0
    %1778 = vmatpush.msra.mxu0 0.0
    %1779 = vmatpush.msra.mxu0 0.0
    %1780 = vmatpush.msra.mxu0 0.0
    %1781 = vmatpush.msra.mxu0 %v1318
    %1782 = vmatpush.msra.mxu0 %v1317
    %1783 = vmatpush.msra.mxu0 %v1316
    %1784 = vmatpush.msra.mxu0 %v1315
    %1785 = vmatpush.msra.mxu0 %v1314
    %1786 = vmatpush.msra.mxu0 %v1313
    %1787 = vmatpush.msra.mxu0 %v1312
    %1788 = vmatpush.msra.mxu0 %v1311
    %1789 = vmatmul.f32.gmra.mxu0 %v1771
    %v1790 = vpop.f32.mrf.mxu0
    %v1791 = vadd.f32 %v1342, %v1790
    %1792 = vdwg.mxu0
    %v1793 = vmul.f32 %v1791, %v104
    %v1794 = vxor.u32 %v1793, 2147483648
    %v1795 = vmul.f32 %v1794, 1.442695
    %v1796 = vpow.pop %v1795
    %v1797 = vadd.f32 %v1796, 1.0
    %v1798 = vrcp.pop %v1797
    %v1799 = vmul.f32 %v1797, %v1798
    %v1800 = vsub.f32 1.0, %v1799
    %v1801 = vmul.f32 %v1798, %v1800
    %v1802 = vadd.f32 %v1798, %v1801
    %vm1803 = vweird.f32 %v1797
    %vm1804 = vweird.f32 %v1798
    %vm1805 = vmor %vm1803, %vm1804
    %v1806 = vsel %vm1805, %v1798, %v1802
    %v1807 = vand.u32 2147483647, %v1797
    %vm1808 = vcmp.eq.f32.partialorder %v1807, 8.507059e+37
    %v1809 = vand.u32 %v1797, 2147483648
    %v1810 = vor.u32 1.1754944e-38, %v1809
    %v1811 = vsel %vm1808, %v1810, %v1806
    %v1812 = vmul.f32 1.0, %v1811
    %v1813 = vmul.f32 %v1812, %v104
    %v1814 = vadd.f32 %v1813, %v105
    %v1815 = vmul.f32 %v1814, %v1684
    %1817 = vrot.lane.b32.xlu0 %v1814, 64
    %v1818 = vpop.permute.xlu0 %1817
    %v1820 = vmul.f32 %v1814, %v1818
    %1822 = vrot.lane.b32.xlu0 %v1820, 32
    %v1823 = vpop.permute.xlu0 %1822
    %v1825 = vadd.f32 %v1815, %v1823
    %v1826 = vtanh.pop %v1825
    %1828 = vrot.lane.b32.xlu0 %v1826, 64
    %v1829 = vpop.permute.xlu0 %1828
    %v1831 = vmul.f32 %v1814, %v1829
    %1833 = vrot.lane.b32.xlu0 %v1831, 32
    %v1834 = vpop.permute.xlu0 %1833
    %1836 = vrot.lane.b32.xlu0 %v1760, 64
    %v1837 = vpop.permute.xlu0 %1836
    %v1839 = vsel %vm175, %v1834, %v1837
    %v1841 = vsel %vm180, %v1839, 0
    %1843 = vmatpush.msra.mxu0 0.0
    %1844 = vmatpush.msra.mxu0 0.0
    %1845 = vmatpush.msra.mxu0 0.0
    %1846 = vmatpush.msra.mxu0 0.0
    %1847 = vmatpush.msra.mxu0 0.0
    %1848 = vmatpush.msra.mxu0 0.0
    %1849 = vmatpush.msra.mxu0 0.0
    %1850 = vmatpush.msra.mxu0 0.0
    %1851 = vmatpush.msra.mxu0 %v1327
    %1852 = vmatpush.msra.mxu0 %v1326
    %1853 = vmatpush.msra.mxu0 %v1325
    %1854 = vmatpush.msra.mxu0 %v1324
    %1855 = vmatpush.msra.mxu0 %v1323
    %1856 = vmatpush.msra.mxu0 %v1322
    %1857 = vmatpush.msra.mxu0 %v1321
    %1858 = vmatpush.msra.mxu0 %v1320
    %1859 = vmatmul.f32.gmra.mxu0 %v1841
    %v1860 = vpop.f32.mrf.mxu0
    %v1861 = vadd.f32 %v1415, %v1860
    %1862 = vdwg.mxu0
    %v1863 = vmul.f32 %v1861, %v104
    %v1864 = vxor.u32 %v1863, 2147483648
    %v1865 = vmul.f32 %v1864, 1.442695
    %v1866 = vpow.pop %v1865
    %v1867 = vadd.f32 %v1866, 1.0
    %v1868 = vrcp.pop %v1867
    %v1869 = vmul.f32 %v1867, %v1868
    %v1870 = vsub.f32 1.0, %v1869
    %v1871 = vmul.f32 %v1868, %v1870
    %v1872 = vadd.f32 %v1868, %v1871
    %vm1873 = vweird.f32 %v1867
    %vm1874 = vweird.f32 %v1868
    %vm1875 = vmor %vm1873, %vm1874
    %v1876 = vsel %vm1875, %v1868, %v1872
    %v1877 = vand.u32 2147483647, %v1867
    %vm1878 = vcmp.eq.f32.partialorder %v1877, 8.507059e+37
    %v1879 = vand.u32 %v1867, 2147483648
    %v1880 = vor.u32 1.1754944e-38, %v1879
    %v1881 = vsel %vm1878, %v1880, %v1876
    %v1882 = vmul.f32 1.0, %v1881
    %v1883 = vmul.f32 %v1882, %v104
    %v1884 = vadd.f32 %v1883, %v105
    %v1885 = vmul.f32 %v1884, %v1754
    %1887 = vrot.lane.b32.xlu0 %v1884, 64
    %v1888 = vpop.permute.xlu0 %1887
    %v1890 = vmul.f32 %v1884, %v1888
    %1892 = vrot.lane.b32.xlu0 %v1890, 32
    %v1893 = vpop.permute.xlu0 %1892
    %v1895 = vadd.f32 %v1885, %v1893
    %v1896 = vtanh.pop %v1895
    %1898 = vrot.lane.b32.xlu0 %v1896, 64
    %v1899 = vpop.permute.xlu0 %1898
    %v1901 = vmul.f32 %v1884, %v1899
    %1903 = vrot.lane.b32.xlu0 %v1901, 32
    %v1904 = vpop.permute.xlu0 %1903
    %1906 = vst.msk [vmem:[#allocation2 + $0x8] sm:$0x3] %vm1335, %v1904
    %1907 = vrot.lane.b32.xlu0 %v1831, 64
    %v1908 = vpop.permute.xlu0 %1907
    %v1910 = vsel %vm175, %v1904, %v1908
    %v1912 = vsel %vm180, %v1910, 0
    %1914 = vmatpush.msra.mxu0 0.0
    %1915 = vmatpush.msra.mxu0 0.0
    %1916 = vmatpush.msra.mxu0 0.0
    %1917 = vmatpush.msra.mxu0 0.0
    %1918 = vmatpush.msra.mxu0 0.0
    %1919 = vmatpush.msra.mxu0 0.0
    %1920 = vmatpush.msra.mxu0 0.0
    %1921 = vmatpush.msra.mxu0 0.0
    %1922 = vmatpush.msra.mxu0 %v1318
    %1923 = vmatpush.msra.mxu0 %v1317
    %1924 = vmatpush.msra.mxu0 %v1316
    %1925 = vmatpush.msra.mxu0 %v1315
    %1926 = vmatpush.msra.mxu0 %v1314
    %1927 = vmatpush.msra.mxu0 %v1313
    %1928 = vmatpush.msra.mxu0 %v1312
    %1929 = vmatpush.msra.mxu0 %v1311
    %1930 = vmatmul.f32.gmra.mxu0 %v1912
    %v1931 = vpop.f32.mrf.mxu0
    %v1932 = vadd.f32 %v1342, %v1931
    %1933 = vdwg.mxu0
    %v1934 = vmul.f32 %v1932, %v104
    %v1935 = vxor.u32 %v1934, 2147483648
    %v1936 = vmul.f32 %v1935, 1.442695
    %v1937 = vpow.pop %v1936
    %v1938 = vadd.f32 %v1937, 1.0
    %v1939 = vrcp.pop %v1938
    %v1940 = vmul.f32 %v1938, %v1939
    %v1941 = vsub.f32 1.0, %v1940
    %v1942 = vmul.f32 %v1939, %v1941
    %v1943 = vadd.f32 %v1939, %v1942
    %vm1944 = vweird.f32 %v1938
    %vm1945 = vweird.f32 %v1939
    %vm1946 = vmor %vm1944, %vm1945
    %v1947 = vsel %vm1946, %v1939, %v1943
    %v1948 = vand.u32 2147483647, %v1938
    %vm1949 = vcmp.eq.f32.partialorder %v1948, 8.507059e+37
    %v1950 = vand.u32 %v1938, 2147483648
    %v1951 = vor.u32 1.1754944e-38, %v1950
    %v1952 = vsel %vm1949, %v1951, %v1947
    %v1953 = vmul.f32 1.0, %v1952
    %v1954 = vmul.f32 %v1953, %v104
    %v1955 = vadd.f32 %v1954, %v105
    %v1956 = vmul.f32 %v1955, %v1825
    %1958 = vrot.lane.b32.xlu0 %v1955, 64
    %v1959 = vpop.permute.xlu0 %1958
    %v1961 = vmul.f32 %v1955, %v1959
    %1963 = vrot.lane.b32.xlu0 %v1961, 32
    %v1964 = vpop.permute.xlu0 %1963
    %v1966 = vadd.f32 %v1956, %v1964
    %v1967 = vtanh.pop %v1966
    %1969 = vrot.lane.b32.xlu0 %v1967, 64
    %v1970 = vpop.permute.xlu0 %1969
    %v1972 = vmul.f32 %v1955, %v1970
    %1974 = vrot.lane.b32.xlu0 %v1972, 32
    %v1975 = vpop.permute.xlu0 %1974
    %1977 = vrot.lane.b32.xlu0 %v1901, 64
    %v1978 = vpop.permute.xlu0 %1977
    %v1980 = vsel %vm175, %v1975, %v1978
    %v1982 = vsel %vm180, %v1980, 0
    %1984 = vmatpush.msra.mxu0 0.0
    %1985 = vmatpush.msra.mxu0 0.0
    %1986 = vmatpush.msra.mxu0 0.0
    %1987 = vmatpush.msra.mxu0 0.0
    %1988 = vmatpush.msra.mxu0 0.0
    %1989 = vmatpush.msra.mxu0 0.0
    %1990 = vmatpush.msra.mxu0 0.0
    %1991 = vmatpush.msra.mxu0 0.0
    %1992 = vmatpush.msra.mxu0 %v1327
    %1993 = vmatpush.msra.mxu0 %v1326
    %1994 = vmatpush.msra.mxu0 %v1325
    %1995 = vmatpush.msra.mxu0 %v1324
    %1996 = vmatpush.msra.mxu0 %v1323
    %1997 = vmatpush.msra.mxu0 %v1322
    %1998 = vmatpush.msra.mxu0 %v1321
    %1999 = vmatpush.msra.mxu0 %v1320
    %2000 = vmatmul.f32.gmra.mxu0 %v1982
    %v2001 = vpop.f32.mrf.mxu0
    %v2002 = vadd.f32 %v1415, %v2001
    %2003 = vdwg.mxu0
    %v2004 = vmul.f32 %v2002, %v104
    %v2005 = vxor.u32 %v2004, 2147483648
    %v2006 = vmul.f32 %v2005, 1.442695
    %v2007 = vpow.pop %v2006
    %v2008 = vadd.f32 %v2007, 1.0
    %v2009 = vrcp.pop %v2008
    %v2010 = vmul.f32 %v2008, %v2009
    %v2011 = vsub.f32 1.0, %v2010
    %v2012 = vmul.f32 %v2009, %v2011
    %v2013 = vadd.f32 %v2009, %v2012
    %vm2014 = vweird.f32 %v2008
    %vm2015 = vweird.f32 %v2009
    %vm2016 = vmor %vm2014, %vm2015
    %v2017 = vsel %vm2016, %v2009, %v2013
    %v2018 = vand.u32 2147483647, %v2008
    %vm2019 = vcmp.eq.f32.partialorder %v2018, 8.507059e+37
    %v2020 = vand.u32 %v2008, 2147483648
    %v2021 = vor.u32 1.1754944e-38, %v2020
    %v2022 = vsel %vm2019, %v2021, %v2017
    %v2023 = vmul.f32 1.0, %v2022
    %v2024 = vmul.f32 %v2023, %v104
    %v2025 = vadd.f32 %v2024, %v105
    %v2026 = vmul.f32 %v2025, %v1895
    %2028 = vrot.lane.b32.xlu0 %v2025, 64
    %v2029 = vpop.permute.xlu0 %2028
    %v2031 = vmul.f32 %v2025, %v2029
    %2033 = vrot.lane.b32.xlu0 %v2031, 32
    %v2034 = vpop.permute.xlu0 %2033
    %v2036 = vadd.f32 %v2026, %v2034
    %v2037 = vtanh.pop %v2036
    %2039 = vrot.lane.b32.xlu0 %v2037, 64
    %v2040 = vpop.permute.xlu0 %2039
    %v2042 = vmul.f32 %v2025, %v2040
    %2044 = vrot.lane.b32.xlu0 %v2042, 32
    %v2045 = vpop.permute.xlu0 %2044
    %2047 = vst.msk [vmem:[#allocation2 + $0xa] sm:$0x3] %vm1335, %v2045
    %2048 = vrot.lane.b32.xlu0 %v1972, 64
    %v2049 = vpop.permute.xlu0 %2048
    %v2051 = vsel %vm175, %v2045, %v2049
    %v2053 = vsel %vm180, %v2051, 0
    %2055 = vmatpush.msra.mxu0 0.0
    %2056 = vmatpush.msra.mxu0 0.0
    %2057 = vmatpush.msra.mxu0 0.0
    %2058 = vmatpush.msra.mxu0 0.0
    %2059 = vmatpush.msra.mxu0 0.0
    %2060 = vmatpush.msra.mxu0 0.0
    %2061 = vmatpush.msra.mxu0 0.0
    %2062 = vmatpush.msra.mxu0 0.0
    %2063 = vmatpush.msra.mxu0 %v1318
    %2064 = vmatpush.msra.mxu0 %v1317
    %2065 = vmatpush.msra.mxu0 %v1316
    %2066 = vmatpush.msra.mxu0 %v1315
    %2067 = vmatpush.msra.mxu0 %v1314
    %2068 = vmatpush.msra.mxu0 %v1313
    %2069 = vmatpush.msra.mxu0 %v1312
    %2070 = vmatpush.msra.mxu0 %v1311
    %2071 = vmatmul.f32.gmra.mxu0 %v2053
    %v2072 = vpop.f32.mrf.mxu0
    %v2073 = vadd.f32 %v1342, %v2072
    %2074 = vdwg.mxu0
    %v2075 = vmul.f32 %v2073, %v104
    %v2076 = vxor.u32 %v2075, 2147483648
    %v2077 = vmul.f32 %v2076, 1.442695
    %v2078 = vpow.pop %v2077
    %v2079 = vadd.f32 %v2078, 1.0
    %v2080 = vrcp.pop %v2079
    %v2081 = vmul.f32 %v2079, %v2080
    %v2082 = vsub.f32 1.0, %v2081
    %v2083 = vmul.f32 %v2080, %v2082
    %v2084 = vadd.f32 %v2080, %v2083
    %vm2085 = vweird.f32 %v2079
    %vm2086 = vweird.f32 %v2080
    %vm2087 = vmor %vm2085, %vm2086
    %v2088 = vsel %vm2087, %v2080, %v2084
    %v2089 = vand.u32 2147483647, %v2079
    %vm2090 = vcmp.eq.f32.partialorder %v2089, 8.507059e+37
    %v2091 = vand.u32 %v2079, 2147483648
    %v2092 = vor.u32 1.1754944e-38, %v2091
    %v2093 = vsel %vm2090, %v2092, %v2088
    %v2094 = vmul.f32 1.0, %v2093
    %v2095 = vmul.f32 %v2094, %v104
    %v2096 = vadd.f32 %v2095, %v105
    %v2097 = vmul.f32 %v2096, %v1966
    %2099 = vrot.lane.b32.xlu0 %v2096, 64
    %v2100 = vpop.permute.xlu0 %2099
    %v2102 = vmul.f32 %v2096, %v2100
    %2104 = vrot.lane.b32.xlu0 %v2102, 32
    %v2105 = vpop.permute.xlu0 %2104
    %v2107 = vadd.f32 %v2097, %v2105
    %v2108 = vtanh.pop %v2107
    %2110 = vrot.lane.b32.xlu0 %v2108, 64
    %v2111 = vpop.permute.xlu0 %2110
    %v2113 = vmul.f32 %v2096, %v2111
    %2115 = vrot.lane.b32.xlu0 %v2113, 32
    %v2116 = vpop.permute.xlu0 %2115
    %2118 = vrot.lane.b32.xlu0 %v2042, 64
    %v2119 = vpop.permute.xlu0 %2118
    %v2121 = vsel %vm175, %v2116, %v2119
    %v2123 = vsel %vm180, %v2121, 0
    %2125 = vmatpush.msra.mxu0 0.0
    %2126 = vmatpush.msra.mxu0 0.0
    %2127 = vmatpush.msra.mxu0 0.0
    %2128 = vmatpush.msra.mxu0 0.0
    %2129 = vmatpush.msra.mxu0 0.0
    %2130 = vmatpush.msra.mxu0 0.0
    %2131 = vmatpush.msra.mxu0 0.0
    %2132 = vmatpush.msra.mxu0 0.0
    %2133 = vmatpush.msra.mxu0 %v1327
    %2134 = vmatpush.msra.mxu0 %v1326
    %2135 = vmatpush.msra.mxu0 %v1325
    %2136 = vmatpush.msra.mxu0 %v1324
    %2137 = vmatpush.msra.mxu0 %v1323
    %2138 = vmatpush.msra.mxu0 %v1322
    %2139 = vmatpush.msra.mxu0 %v1321
    %2140 = vmatpush.msra.mxu0 %v1320
    %2141 = vmatmul.f32.gmra.mxu0 %v2123
    %v2142 = vpop.f32.mrf.mxu0
    %v2143 = vadd.f32 %v1415, %v2142
    %2144 = vdwg.mxu0
    %v2145 = vmul.f32 %v2143, %v104
    %v2146 = vxor.u32 %v2145, 2147483648
    %v2147 = vmul.f32 %v2146, 1.442695
    %v2148 = vpow.pop %v2147
    %v2149 = vadd.f32 %v2148, 1.0
    %v2150 = vrcp.pop %v2149
    %v2151 = vmul.f32 %v2149, %v2150
    %v2152 = vsub.f32 1.0, %v2151
    %v2153 = vmul.f32 %v2150, %v2152
    %v2154 = vadd.f32 %v2150, %v2153
    %vm2155 = vweird.f32 %v2149
    %vm2156 = vweird.f32 %v2150
    %vm2157 = vmor %vm2155, %vm2156
    %v2158 = vsel %vm2157, %v2150, %v2154
    %v2159 = vand.u32 2147483647, %v2149
    %vm2160 = vcmp.eq.f32.partialorder %v2159, 8.507059e+37
    %v2161 = vand.u32 %v2149, 2147483648
    %v2162 = vor.u32 1.1754944e-38, %v2161
    %v2163 = vsel %vm2160, %v2162, %v2158
    %v2164 = vmul.f32 1.0, %v2163
    %v2165 = vmul.f32 %v2164, %v104
    %v2166 = vadd.f32 %v2165, %v105
    %v2167 = vmul.f32 %v2166, %v2036
    %2169 = vrot.lane.b32.xlu0 %v2166, 64
    %v2170 = vpop.permute.xlu0 %2169
    %v2172 = vmul.f32 %v2166, %v2170
    %2174 = vrot.lane.b32.xlu0 %v2172, 32
    %v2175 = vpop.permute.xlu0 %2174
    %v2177 = vadd.f32 %v2167, %v2175
    %v2178 = vtanh.pop %v2177
    %2180 = vrot.lane.b32.xlu0 %v2178, 64
    %v2181 = vpop.permute.xlu0 %2180
    %v2183 = vmul.f32 %v2166, %v2181
    %2185 = vrot.lane.b32.xlu0 %v2183, 32
    %v2186 = vpop.permute.xlu0 %2185
    %2188 = vst.msk [vmem:[#allocation2 + $0xc] sm:$0x3] %vm1335, %v2186
    %2189 = vrot.lane.b32.xlu0 %v2113, 64
    %v2190 = vpop.permute.xlu0 %2189
    %v2192 = vsel %vm175, %v2186, %v2190
    %v2194 = vsel %vm180, %v2192, 0
    %2196 = vmatpush.msra.mxu0 0.0
    %2197 = vmatpush.msra.mxu0 0.0
    %2198 = vmatpush.msra.mxu0 0.0
    %2199 = vmatpush.msra.mxu0 0.0
    %2200 = vmatpush.msra.mxu0 0.0
    %2201 = vmatpush.msra.mxu0 0.0
    %2202 = vmatpush.msra.mxu0 0.0
    %2203 = vmatpush.msra.mxu0 0.0
    %2204 = vmatpush.msra.mxu0 %v1318
    %2205 = vmatpush.msra.mxu0 %v1317
    %2206 = vmatpush.msra.mxu0 %v1316
    %2207 = vmatpush.msra.mxu0 %v1315
    %2208 = vmatpush.msra.mxu0 %v1314
    %2209 = vmatpush.msra.mxu0 %v1313
    %2210 = vmatpush.msra.mxu0 %v1312
    %2211 = vmatpush.msra.mxu0 %v1311
    %2212 = vmatmul.f32.gmra.mxu0 %v2194
    %v2213 = vpop.f32.mrf.mxu0
    %v2214 = vadd.f32 %v1342, %v2213
    %2215 = vdwg.mxu0
    %v2216 = vmul.f32 %v2214, %v104
    %v2217 = vxor.u32 %v2216, 2147483648
    %v2218 = vmul.f32 %v2217, 1.442695
    %v2219 = vpow.pop %v2218
    %v2220 = vadd.f32 %v2219, 1.0
    %v2221 = vrcp.pop %v2220
    %v2222 = vmul.f32 %v2220, %v2221
    %v2223 = vsub.f32 1.0, %v2222
    %v2224 = vmul.f32 %v2221, %v2223
    %v2225 = vadd.f32 %v2221, %v2224
    %vm2226 = vweird.f32 %v2220
    %vm2227 = vweird.f32 %v2221
    %vm2228 = vmor %vm2226, %vm2227
    %v2229 = vsel %vm2228, %v2221, %v2225
    %v2230 = vand.u32 2147483647, %v2220
    %vm2231 = vcmp.eq.f32.partialorder %v2230, 8.507059e+37
    %v2232 = vand.u32 %v2220, 2147483648
    %v2233 = vor.u32 1.1754944e-38, %v2232
    %v2234 = vsel %vm2231, %v2233, %v2229
    %v2235 = vmul.f32 1.0, %v2234
    %v2236 = vmul.f32 %v2235, %v104
    %v2237 = vadd.f32 %v2236, %v105
    %v2238 = vmul.f32 %v2237, %v2107
    %2240 = vrot.lane.b32.xlu0 %v2237, 64
    %v2241 = vpop.permute.xlu0 %2240
    %v2243 = vmul.f32 %v2237, %v2241
    %2245 = vrot.lane.b32.xlu0 %v2243, 32
    %v2246 = vpop.permute.xlu0 %2245
    %v2248 = vadd.f32 %v2238, %v2246
    %v2249 = vtanh.pop %v2248
    %2251 = vrot.lane.b32.xlu0 %v2249, 64
    %v2252 = vpop.permute.xlu0 %2251
    %v2254 = vmul.f32 %v2237, %v2252
    %2256 = vrot.lane.b32.xlu0 %v2254, 32
    %v2257 = vpop.permute.xlu0 %2256
    %2259 = vrot.lane.b32.xlu0 %v2183, 64
    %v2260 = vpop.permute.xlu0 %2259
    %v2262 = vsel %vm175, %v2257, %v2260
    %v2264 = vsel %vm180, %v2262, 0
    %2266 = vmatpush.msra.mxu0 0.0
    %2267 = vmatpush.msra.mxu0 0.0
    %2268 = vmatpush.msra.mxu0 0.0
    %2269 = vmatpush.msra.mxu0 0.0
    %2270 = vmatpush.msra.mxu0 0.0
    %2271 = vmatpush.msra.mxu0 0.0
    %2272 = vmatpush.msra.mxu0 0.0
    %2273 = vmatpush.msra.mxu0 0.0
    %2274 = vmatpush.msra.mxu0 %v1327
    %2275 = vmatpush.msra.mxu0 %v1326
    %2276 = vmatpush.msra.mxu0 %v1325
    %2277 = vmatpush.msra.mxu0 %v1324
    %2278 = vmatpush.msra.mxu0 %v1323
    %2279 = vmatpush.msra.mxu0 %v1322
    %2280 = vmatpush.msra.mxu0 %v1321
    %2281 = vmatpush.msra.mxu0 %v1320
    %2282 = vmatmul.f32.gmra.mxu0 %v2264
    %v2283 = vpop.f32.mrf.mxu0
    %v2284 = vadd.f32 %v1415, %v2283
    %2285 = vdwg.mxu0
    %v2286 = vmul.f32 %v2284, %v104
    %v2287 = vxor.u32 %v2286, 2147483648
    %v2288 = vmul.f32 %v2287, 1.442695
    %v2289 = vpow.pop %v2288
    %v2290 = vadd.f32 %v2289, 1.0
    %v2291 = vrcp.pop %v2290
    %v2292 = vmul.f32 %v2290, %v2291
    %v2293 = vsub.f32 1.0, %v2292
    %v2294 = vmul.f32 %v2291, %v2293
    %v2295 = vadd.f32 %v2291, %v2294
    %vm2296 = vweird.f32 %v2290
    %vm2297 = vweird.f32 %v2291
    %vm2298 = vmor %vm2296, %vm2297
    %v2299 = vsel %vm2298, %v2291, %v2295
    %v2300 = vand.u32 2147483647, %v2290
    %vm2301 = vcmp.eq.f32.partialorder %v2300, 8.507059e+37
    %v2302 = vand.u32 %v2290, 2147483648
    %v2303 = vor.u32 1.1754944e-38, %v2302
    %v2304 = vsel %vm2301, %v2303, %v2299
    %v2305 = vmul.f32 1.0, %v2304
    %v2306 = vmul.f32 %v2305, %v104
    %v2307 = vadd.f32 %v2306, %v105
    %v2308 = vmul.f32 %v2307, %v2177
    %2310 = vrot.lane.b32.xlu0 %v2307, 64
    %v2311 = vpop.permute.xlu0 %2310
    %v2313 = vmul.f32 %v2307, %v2311
    %2315 = vrot.lane.b32.xlu0 %v2313, 32
    %v2316 = vpop.permute.xlu0 %2315
    %v2318 = vadd.f32 %v2308, %v2316
    %v2319 = vtanh.pop %v2318
    %2321 = vrot.lane.b32.xlu0 %v2319, 64
    %v2322 = vpop.permute.xlu0 %2321
    %v2324 = vmul.f32 %v2307, %v2322
    %2326 = vrot.lane.b32.xlu0 %v2324, 32
    %v2327 = vpop.permute.xlu0 %2326
    %2329 = vst.msk [vmem:[#allocation2 + $0xe] sm:$0x3] %vm1335, %v2327
    %v2330 = vld [vmem:[#allocation2] sm:$0xff]
    %v2331 = vld [vmem:[#allocation2 + $0x8] sm:$0xff]
    %v2333 = vperm.slane %v98, 0
    %v2336 = vsel %vm175, %v2330, 0
    %v2339 = vsel %vm175, %v2331, 0
    %2341 = vmatpush.msra.mxu0 0.0
    %2342 = vmatpush.msra.mxu0 0.0
    %2343 = vmatpush.msra.mxu0 0.0
    %2344 = vmatpush.msra.mxu0 0.0
    %2345 = vmatpush.msra.mxu0 0.0
    %2346 = vmatpush.msra.mxu0 0.0
    %2347 = vmatpush.msra.mxu0 0.0
    %2348 = vmatpush.msra.mxu0 0.0
    %2349 = vmatpush.msra.mxu0 0.0
    %2350 = vmatpush.msra.mxu0 0.0
    %2351 = vmatpush.msra.mxu0 0.0
    %2352 = vmatpush.msra.mxu0 0.0
    %2353 = vmatpush.msra.mxu0 %v97
    %2354 = vmatpush.msra.mxu0 %v96
    %2355 = vmatpush.msra.mxu0 %v95
    %2356 = vmatpush.msra.mxu0 %v94
    %2357 = vmatmul.f32.gmra.mxu0 %v2336
    %v2358 = vpop.f32.mrf.mxu0
    %v2359 = vadd.f32 %v2333, %v2358
    %2360 = vmatmul.f32.gmra.mxu0 %v2339
    %v2361 = vpop.f32.mrf.mxu0
    %v2362 = vadd.f32 %v2333, %v2361
    %2363 = vdwg.mxu0
    %v2364 = vld [vmem:[%s0 + $0x7] sm:$0x1]
    %v2365 = vld [vmem:[%s0 + $0xf] sm:$0x1]
    %v2367 = vrot.slane %v2359, 1
    %vm2369 = vcmask 8192
    %2370 = vst.msk [vmem:[%s13] sm:$0x1] %vm2369, %v2359
    %2371 = vst.msk [vmem:[%s13 + $0x8] sm:$0x1] %vm2369, %v2367
    %v2373 = vperm.slane %v76, 0
    %v2375 = vmul.f32 %v2359, %v2373
    %v2376 = vadd.f32 %v2375, %v109
    %v2378 = vrot.slane %v2376, 1
    %v2381 = vadd.f32 %v2364, %v2376
    %v2382 = vadd.f32 %v2365, %v2378
    %2383 = vst.msk [vmem:[%s12] sm:$0x1] %vm2369, %v2381
    %2384 = vst.msk [vmem:[%s12 + $0x8] sm:$0x1] %vm2369, %v2382
    %2385 = vst [vmem:[#allocation1] sm:$0xff] %v2359
    %s2386 = scalar_lea.vmem [#allocation1], 2
    %v2387 = vld [vmem:[%s2386] ss:$9 sm:$0xff]
    %s2388 = scalar_lea.vmem [#allocation1], 3
    %v2389 = vld [vmem:[%s2388] ss:$9 sm:$0xff]
    %2392 = vst.msk [vmem:[%s13 + $0x1] sm:$0x1] %vm2369, %v2387
    %2393 = vst.msk [vmem:[%s13 + $0x9] sm:$0x1] %vm2369, %v2389
    %v2394 = vrot.slane %v2376, 2
    %v2395 = vrot.slane %v2376, 3
    %v2398 = vadd.f32 %v2381, %v2394
    %v2399 = vadd.f32 %v2382, %v2395
    %2400 = vst.msk [vmem:[%s12 + $0x1] sm:$0x1] %vm2369, %v2398
    %2401 = vst.msk [vmem:[%s12 + $0x9] sm:$0x1] %vm2369, %v2399
    %2402 = vst [vmem:[#allocation1] sm:$0xff] %v2359
    %s2403 = scalar_lea.vmem [#allocation1], 4
    %v2404 = vld [vmem:[%s2403] ss:$9 sm:$0xff]
    %s2405 = scalar_lea.vmem [#allocation1], 5
    %v2406 = vld [vmem:[%s2405] ss:$9 sm:$0xff]
    %2409 = vst.msk [vmem:[%s13 + $0x2] sm:$0x1] %vm2369, %v2404
    %2410 = vst.msk [vmem:[%s13 + $0xa] sm:$0x1] %vm2369, %v2406
    %v2411 = vrot.slane %v2376, 4
    %v2412 = vrot.slane %v2376, 5
    %v2415 = vadd.f32 %v2398, %v2411
    %v2416 = vadd.f32 %v2399, %v2412
    %2417 = vst.msk [vmem:[%s12 + $0x2] sm:$0x1] %vm2369, %v2415
    %2418 = vst.msk [vmem:[%s12 + $0xa] sm:$0x1] %vm2369, %v2416
    %2419 = vst [vmem:[#allocation1] sm:$0xff] %v2359
    %s2420 = scalar_lea.vmem [#allocation1], 6
    %v2421 = vld [vmem:[%s2420] ss:$9 sm:$0xff]
    %s2422 = scalar_lea.vmem [#allocation1], 7
    %v2423 = vld [vmem:[%s2422] ss:$9 sm:$0xff]
    %2426 = vst.msk [vmem:[%s13 + $0x3] sm:$0x1] %vm2369, %v2421
    %2427 = vst.msk [vmem:[%s13 + $0xb] sm:$0x1] %vm2369, %v2423
    %v2428 = vrot.slane %v2376, 6
    %v2429 = vrot.slane %v2376, 7
    %v2432 = vadd.f32 %v2415, %v2428
    %v2433 = vadd.f32 %v2416, %v2429
    %2434 = vst.msk [vmem:[%s12 + $0x3] sm:$0x1] %vm2369, %v2432
    %2435 = vst.msk [vmem:[%s12 + $0xb] sm:$0x1] %vm2369, %v2433
    %v2437 = vrot.slane %v2362, 1
    %2439 = vst.msk [vmem:[%s13 + $0x4] sm:$0x1] %vm2369, %v2362
    %2440 = vst.msk [vmem:[%s13 + $0xc] sm:$0x1] %vm2369, %v2437
    %v2441 = vmul.f32 %v2362, %v2373
    %v2442 = vadd.f32 %v2441, %v109
    %v2444 = vrot.slane %v2442, 1
    %v2447 = vadd.f32 %v2432, %v2442
    %v2448 = vadd.f32 %v2433, %v2444
    %2449 = vst.msk [vmem:[%s12 + $0x4] sm:$0x1] %vm2369, %v2447
    %2450 = vst.msk [vmem:[%s12 + $0xc] sm:$0x1] %vm2369, %v2448
    %2451 = vst [vmem:[#allocation1] sm:$0xff] %v2362
    %s2452 = scalar_lea.vmem [#allocation1], 2
    %v2453 = vld [vmem:[%s2452] ss:$9 sm:$0xff]
    %s2454 = scalar_lea.vmem [#allocation1], 3
    %v2455 = vld [vmem:[%s2454] ss:$9 sm:$0xff]
    %2458 = vst.msk [vmem:[%s13 + $0x5] sm:$0x1] %vm2369, %v2453
    %2459 = vst.msk [vmem:[%s13 + $0xd] sm:$0x1] %vm2369, %v2455
    %v2460 = vrot.slane %v2442, 2
    %v2461 = vrot.slane %v2442, 3
    %v2464 = vadd.f32 %v2447, %v2460
    %v2465 = vadd.f32 %v2448, %v2461
    %2466 = vst.msk [vmem:[%s12 + $0x5] sm:$0x1] %vm2369, %v2464
    %2467 = vst.msk [vmem:[%s12 + $0xd] sm:$0x1] %vm2369, %v2465
    %2468 = vst [vmem:[#allocation1] sm:$0xff] %v2362
    %s2469 = scalar_lea.vmem [#allocation1], 4
    %v2470 = vld [vmem:[%s2469] ss:$9 sm:$0xff]
    %s2471 = scalar_lea.vmem [#allocation1], 5
    %v2472 = vld [vmem:[%s2471] ss:$9 sm:$0xff]
    %2475 = vst.msk [vmem:[%s13 + $0x6] sm:$0x1] %vm2369, %v2470
    %2476 = vst.msk [vmem:[%s13 + $0xe] sm:$0x1] %vm2369, %v2472
    %v2477 = vrot.slane %v2442, 4
    %v2478 = vrot.slane %v2442, 5
    %v2481 = vadd.f32 %v2464, %v2477
    %v2482 = vadd.f32 %v2465, %v2478
    %2483 = vst.msk [vmem:[%s12 + $0x6] sm:$0x1] %vm2369, %v2481
    %2484 = vst.msk [vmem:[%s12 + $0xe] sm:$0x1] %vm2369, %v2482
    %2485 = vst [vmem:[#allocation1] sm:$0xff] %v2362
    %s2486 = scalar_lea.vmem [#allocation1], 6
    %v2487 = vld [vmem:[%s2486] ss:$9 sm:$0xff]
    %s2488 = scalar_lea.vmem [#allocation1], 7
    %v2489 = vld [vmem:[%s2488] ss:$9 sm:$0xff]
    %2492 = vst.msk [vmem:[%s13 + $0x7] sm:$0x1] %vm2369, %v2487
    %2493 = vst.msk [vmem:[%s13 + $0xf] sm:$0x1] %vm2369, %v2489
    %v2494 = vrot.slane %v2442, 6
    %v2495 = vrot.slane %v2442, 7
    %v2498 = vadd.f32 %v2481, %v2494
    %v2499 = vadd.f32 %v2482, %v2495
    %2500 = vst.msk [vmem:[%s12 + $0x7] sm:$0x1] %vm2369, %v2498
    %2501 = vst.msk [vmem:[%s12 + $0xf] sm:$0x1] %vm2369, %v2499
    // Predicated region
    $region58: #{double_lstm_forward.1} parent=1 // pred_check
      _
    $region59: #{double_lstm_forward.1} parent=1 // pred_check_branch
      %2503 = sbr.rel (0) target = $region61
    $region60: #{double_lstm_forward.1} parent=1 // pred_region
      _
    $region61: #{double_lstm_forward.1} parent=1 // pred_fallthru
      _
    // Predicated region
    $region62: #{double_lstm_forward.1} parent=1 // pred_check
      _
    $region63: #{double_lstm_forward.1} parent=1 // pred_check_branch
      %2505 = sbr.rel (0) target = $region65
    $region64: #{double_lstm_forward.1} parent=1 // pred_region
      _
    $region65: #{double_lstm_forward.1} parent=1 // pred_fallthru
      _
    // Predicated region
    $region66: #{double_lstm_forward.1} parent=1 // pred_check
      _
    $region67: #{double_lstm_forward.1} parent=1 // pred_check_branch
      %2507 = sbr.rel (0) target = $region69
    $region68: #{double_lstm_forward.1} parent=1 // pred_region
      _
    $region69: #{double_lstm_forward.1} parent=1 // pred_fallthru
      _
    // Predicated region
    $region70: #{double_lstm_forward.1} parent=1 // pred_check
      _
    $region71: #{double_lstm_forward.1} parent=1 // pred_check_branch
      %2509 = sbr.rel (0) target = $region73
    $region72: #{double_lstm_forward.1} parent=1 // pred_region
      _
    $region73: #{double_lstm_forward.1} parent=1 // pred_fallthru
      _
    %2510 = vsyncpa [#allocation4], 1
    %2511 = vsyncpa [#allocation6], 1

</llo_original>
